<compile_context>
chip_gen: v5e
topology: v5e:2x2
jax: 0.10.0
libtpu: 0.0.40
codegen_flags: <defaults>
</compile_context>

<pallas_src>
import functools
import math

import jax
import jax.numpy as jnp
from jax import lax
from jax.experimental import pallas as pl
from jax.experimental.pallas import tpu as pltpu

_LANE = 128


def _bilstm_kernel(x_ref,        # (1, seq*bs_blk, E)   time-major rows of this batch block
                   wih_ref,      # (E, 8Hp)   fused [W_ih_fwd | W_ih_bwd]
                   whh_f_ref,    # (Hp, 4Hp)
                   whh_b_ref,    # (Hp, 4Hp)
                   b_ref,        # (1, 8Hp)   fused (b_ih + b_hh) for both dirs
                   wc_f_ref,     # (1, Hp)    classifier weights (fwd half)
                   wc_b_ref,     # (1, Hp)    classifier weights (bwd half)
                   bc_ref,       # (1, 1)     classifier bias
                   scores_ref,   # out block: (1, seq, bs_blk) f32
                   gx_ref,       # scratch (seq*bs_blk, 8Hp) f32  gate preactivations
                   accf_ref,     # scratch (seq, bs_blk) f32      fwd classifier acc
                   accb_ref,     # scratch (seq, bs_blk) f32      bwd classifier acc
                   *, seq, bs_blk, hidden_p, unroll):
    Hp = hidden_p
    H4 = 4 * Hp
    f32 = jnp.float32

    # ---- 1) hoisted + fused input projection: ONE big MXU GEMM for both
    #         directions, biases folded in.  x is read from VMEM once.
    x2 = x_ref[0]                                            # (seq*bs_blk, E)
    gx_ref[...] = (jnp.dot(x2, wih_ref[...], preferred_element_type=f32)
                   + b_ref[...])

    wc_f = wc_f_ref[...].astype(f32)                         # (1, Hp)
    wc_b = wc_b_ref[...].astype(f32)
    whh_dt = whh_f_ref.dtype

    def gates(g, c):
        # PyTorch gate order [i, f, g, o]; each slice is a lane-aligned
        # 128-multiple because Hp % 128 == 0 (gates padded in the wrapper).
        i = jax.nn.sigmoid(g[:, 0:Hp])
        f = jax.nn.sigmoid(g[:, Hp:2 * Hp])
        gg = jnp.tanh(g[:, 2 * Hp:3 * Hp])
        o = jax.nn.sigmoid(g[:, 3 * Hp:4 * Hp])
        c_new = f * c + i * gg
        h_new = o * jnp.tanh(c_new)
        return h_new, c_new

    # ---- 2) fused fwd/bwd recurrence: only h @ W_hh left on the MXU per step.
    def step(t, carry):
        h_f, c_f, h_b, c_b = carry
        rt = seq - 1 - t
        row_f = pl.multiple_of(t * bs_blk, bs_blk)
        row_b = pl.multiple_of(rt * bs_blk, bs_blk)

        g_f = gx_ref[pl.ds(row_f, bs_blk), pl.ds(0, H4)] + jnp.dot(
            h_f.astype(whh_dt), whh_f_ref[...], preferred_element_type=f32)
        g_b = gx_ref[pl.ds(row_b, bs_blk), pl.ds(H4, H4)] + jnp.dot(
            h_b.astype(whh_dt), whh_b_ref[...], preferred_element_type=f32)

        h_f, c_f = gates(g_f, c_f)
        h_b, c_b = gates(g_b, c_b)

        # classifier contribution on VPU (mul) + XLU (cross-lane reduce):
        # no M=1 MXU matmul serializing on the recurrence critical path.
        accf_ref[pl.ds(t, 1), :] = jnp.sum(h_f * wc_f, axis=-1)[None, :]
        accb_ref[pl.ds(rt, 1), :] = jnp.sum(h_b * wc_b, axis=-1)[None, :]
        return h_f, c_f, h_b, c_b

    z = jnp.zeros((bs_blk, Hp), f32)
    lax.fori_loop(0, seq, step, (z, z, z, z), unroll=unroll)

    # ---- 3) combine + single dense write (lane-dense when bs_blk >= 128).
    scores_ref[0] = accf_ref[...] + accb_ref[...] + bc_ref[...]


def _pad_gate_cols(a, H, Hp):
    """(..., 4H) -> (..., 4Hp): zero-pad each of the 4 gate blocks to Hp lanes."""
    if Hp == H:
        return a
    lead = a.shape[:-1]
    a4 = a.reshape(lead + (4, H))
    a4 = jnp.pad(a4, [(0, 0)] * len(lead) + [(0, 0), (0, Hp - H)])
    return a4.reshape(lead + (4 * Hp,))


def simple_bilstm_forward(x, params, threshold=0.4, bs_block=None,
                          mxu_dtype=None):
    """x: (bs, seq, emb) float32, batch_first like the PyTorch module.

    Returns (scores (bs, seq, 1) f32, tags (bs, seq) int32).

    bs_block : batch tile.  Default = whole padded batch (best on the 1-TC
               v5e/v6e).  On v7x pass a value giving >= 2 blocks so both
               TensorCores are used, sized so the per-block VMEM footprint
               stays under ~48 MiB.
    mxu_dtype: pass jnp.bfloat16 on v6e/v7x to run the MXU operands
               (x, W_ih, W_hh) in bf16 with f32 accumulation; keep None on v5e.
    """
    bs, seq, emb = x.shape
    H = params["whh_f"].shape[0]
    Hp = ((H + _LANE - 1) // _LANE) * _LANE
    H4, H8 = 4 * Hp, 8 * Hp

    # ---- pack + lane-align the weights.  Padded hidden units provably stay
    #      exactly 0 (zero wih/whh columns and zero bias -> g_pad = 0 ->
    #      c_pad, h_pad stay 0), so real outputs are numerically unchanged.
    whh_f = _pad_gate_cols(jnp.pad(params["whh_f"], ((0, Hp - H), (0, 0))), H, Hp)
    whh_b = _pad_gate_cols(jnp.pad(params["whh_b"], ((0, Hp - H), (0, 0))), H, Hp)
    wih = jnp.concatenate([_pad_gate_cols(params["wih_f"], H, Hp),
                           _pad_gate_cols(params["wih_b"], H, Hp)], axis=1)   # (E, 8Hp)
    b_pk = jnp.concatenate([_pad_gate_cols(params["b_f"], H, Hp),
                            _pad_gate_cols(params["b_b"], H, Hp)], axis=1)    # (1, 8Hp)
    wc_f = jnp.pad(params["wc_f"], ((0, 0), (0, Hp - H)))
    wc_b = jnp.pad(params["wc_b"], ((0, 0), (0, Hp - H)))
    bc = params["bc"]

    x = x.astype(jnp.float32)
    if mxu_dtype is not None:            # bf16 MXU operands (v6e / v7x)
        x = x.astype(mxu_dtype)
        wih = wih.astype(mxu_dtype)
        whh_f = whh_f.astype(mxu_dtype)
        whh_b = whh_b.astype(mxu_dtype)

    # ---- batch padding / tiling (full sublanes; batches that are multiples of
    #      128 additionally make the recurrent-matmul M dim MXU-sized and the
    #      output store lane-dense).
    bs_pad = max(8, ((bs + 7) // 8) * 8)
    if bs_block is None:
        bs_block = bs_pad                # single block = best default for 1 TC
    assert bs_pad % bs_block == 0 and bs_block % 8 == 0
    n_b = bs_pad // bs_block

    xp = jnp.pad(x, ((0, bs_pad - bs), (0, 0), (0, 0)))
    # per batch block: time-major 2D slab (seq*bs_block, E) -> one clean GEMM,
    # contiguous per-timestep rows, no in-kernel reshapes.
    # TODO(synk): for large seq*bs*E fold this relayout into a seq-chunked,
    #             double-buffered gx pipeline inside the kernel.
    xk = (xp.reshape(n_b, bs_block, seq, emb)
            .transpose(0, 2, 1, 3)
            .reshape(n_b, seq * bs_block, emb))

    # ---- unroll vs vreg pressure: the 4 (bs_block, Hp) f32 carries alone take
    #      4*bs_block*Hp/1024 vregs; over-unrolling spills onto the serial path.
    carry_vregs = (4 * bs_block * Hp) // (8 * 128)
    if carry_vregs <= 8:
        unroll = True if seq <= 64 else 8
    elif carry_vregs <= 24:
        unroll = 4
    else:
        unroll = 2

    # ---- explicit VMEM budget (default scoped limit of 16/32 MiB is far below
    #      the resident gate slab for realistic shapes).
    itm_x = jnp.dtype(xk.dtype).itemsize
    itm_w = jnp.dtype(wih.dtype).itemsize
    rows = seq * bs_block
    scratch_bytes = rows * H8 * 4 + 2 * seq * bs_block * 4
    io_bytes = 2 * (rows * emb * itm_x + seq * bs_block * 4)      # dbl-buffered x + out
    w_bytes = 2 * ((emb * H8 + 2 * Hp * H4) * itm_w + (H8 + 2 * Hp + 1) * 4)
    need = scratch_bytes + io_bytes + w_bytes
    vmem_limit = int(min(max(1.25 * need + (2 << 20), 32 << 20), 100 << 20))

    kernel = functools.partial(_bilstm_kernel, seq=seq, bs_blk=bs_block,
                               hidden_p=Hp, unroll=unroll)

    scores_blocks = pl.pallas_call(
        kernel,
        out_shape=jax.ShapeDtypeStruct((n_b, seq, bs_block), jnp.float32),
        grid=(n_b,),
        in_specs=[
            pl.BlockSpec((1, seq * bs_block, emb), lambda i: (i, 0, 0)),
            pl.BlockSpec((emb, H8), lambda i: (0, 0)),
            pl.BlockSpec((Hp, H4), lambda i: (0, 0)),
            pl.BlockSpec((Hp, H4), lambda i: (0, 0)),
            pl.BlockSpec((1, H8), lambda i: (0, 0)),
            pl.BlockSpec((1, Hp), lambda i: (0, 0)),
            pl.BlockSpec((1, Hp), lambda i: (0, 0)),
            pl.BlockSpec((1, 1), lambda i: (0, 0)),
        ],
        out_specs=pl.BlockSpec((1, seq, bs_block), lambda i: (i, 0, 0)),
        scratch_shapes=[
            pltpu.VMEM((seq * bs_block, H8), jnp.float32),   # fused gate preacts
            pltpu.VMEM((seq, bs_block), jnp.float32),        # fwd classifier acc
            pltpu.VMEM((seq, bs_block), jnp.float32),        # bwd classifier acc
        ],
        compiler_params=pltpu.CompilerParams(
            dimension_semantics=("parallel",),
            vmem_limit_bytes=vmem_limit),
    )(xk, wih, whh_f, whh_b, b_pk, wc_f, wc_b, bc)

    # (n_b, seq, bs_block) -> (bs, seq): tiny score relayout done by XLA.
    scores2d = scores_blocks.transpose(0, 2, 1).reshape(bs_pad, seq)[:bs]
    scores = scores2d[:, :, None]                        # (bs, seq, 1) raw logits
    # sigmoid(s) > th  <=>  s > logit(th): no in-kernel sigmoid / int output.
    logit_th = math.log(threshold / (1.0 - threshold))
    tags = (scores2d > logit_th).astype(jnp.int32)       # (bs, seq)
    return scores, tags


def init_params(key, input_size, hidden_units):
    """Deterministic synthetic init matching the nn.LSTM / nn.Linear shapes."""
    E, H = input_size, hidden_units
    keys = jax.random.split(key, 5)

    def u(kk, shape, lim):
        return jax.random.uniform(kk, shape, jnp.float32, minval=-lim, maxval=lim)

    # combined bias (b_ih + b_hh); forget-gate bias 1 (TF-like init of module).
    b = jnp.zeros((1, 4 * H), jnp.float32).at[0, H:2 * H].set(1.0)
    lim_ih = math.sqrt(6.0 / (E + 4 * H))        # xavier_uniform for weight_ih
    k_hh = 1.0 / math.sqrt(H)                    # TODO(synk): orthogonal init not reproduced (forward semantics unaffected)
    lim_cls = math.sqrt(6.0 / (2 * H + 1))       # xavier_uniform for Linear(2H,1)
    wc = u(keys[4], (1, 2 * H), lim_cls)
    return {
        # weights stored pre-transposed for the kernel: x @ W_ih^T, h @ W_hh^T
        "wih_f": u(keys[0], (E, 4 * H), lim_ih),
        "whh_f": u(keys[1], (H, 4 * H), k_hh),
        "b_f": b,
        "wih_b": u(keys[2], (E, 4 * H), lim_ih),
        "whh_b": u(keys[3], (H, 4 * H), k_hh),
        "b_b": b,
        "wc_f": wc[:, :H],
        "wc_b": wc[:, H:],
        "bc": jnp.zeros((1, 1), jnp.float32),
    }


def _reference(x, params, threshold=0.4):
    """Pure-JAX reference of the same forward pass (sanity check)."""
    bs, seq, emb = x.shape
    H = params["whh_f"].shape[0]

    def make_step(wih, whh, b):
        def stepfn(carry, x_t):
            h, c = carry
            g = x_t @ wih + h @ whh + b
            i = jax.nn.sigmoid(g[:, 0:H])
            f = jax.nn.sigmoid(g[:, H:2 * H])
            gg = jnp.tanh(g[:, 2 * H:3 * H])
            o = jax.nn.sigmoid(g[:, 3 * H:4 * H])
            c = f * c + i * gg
            h = o * jnp.tanh(c)
            return (h, c), h
        return stepfn

    x_tm = jnp.transpose(x, (1, 0, 2))
    z = jnp.zeros((bs, H), jnp.float32)
    _, hf = lax.scan(make_step(params["wih_f"], params["whh_f"], params["b_f"]),
                     (z, z), x_tm)
    _, hb = lax.scan(make_step(params["wih_b"], params["whh_b"], params["b_b"]),
                     (z, z), x_tm[::-1])
    hb = hb[::-1]
    scores_tm = (jnp.einsum('sbh,h->sb', hf, params["wc_f"][0])
                 + jnp.einsum('sbh,h->sb', hb, params["wc_b"][0])
                 + params["bc"][0, 0])                       # (seq, bs)
    scores = jnp.transpose(scores_tm)[:, :, None]            # (bs, seq, 1)
    tags = (jax.nn.sigmoid(scores)[:, :, 0] > threshold).astype(jnp.int32)
    return scores, tags


if __name__ == "__main__":
    bs, seq, emb, hidden = 2, 8, 16, 32
    key = jax.random.PRNGKey(0)
    kx, kp = jax.random.split(key)

    x = jax.random.normal(kx, (bs, seq, emb), jnp.float32)
    params = init_params(kp, emb, hidden)

    scores, tags = simple_bilstm_forward(x, params, threshold=0.4)
    scores = jax.block_until_ready(scores)
    tags = jax.block_until_ready(tags)

    ref_scores, ref_tags = _reference(x, params, threshold=0.4)
    assert jnp.allclose(scores, ref_scores, atol=1e-3, rtol=1e-3), \
        float(jnp.max(jnp.abs(scores - ref_scores)))
    assert jnp.array_equal(tags, ref_tags)

    # optional bf16 MXU-operand path (v6e / v7x): check it runs and is sane.
    scores_bf16, _ = simple_bilstm_forward(x, params, threshold=0.4,
                                           mxu_dtype=jnp.bfloat16)
    scores_bf16 = jax.block_until_ready(scores_bf16)
    assert scores_bf16.shape == scores.shape
    assert bool(jnp.all(jnp.isfinite(scores_bf16)))

    # mimic the module's Python-list-of-bools output per batch element
    tag_seq = [list(map(bool, row)) for row in jax.device_get(tags)]
    assert len(tag_seq) == bs and len(tag_seq[0]) == seq

    print("KERNEL_OK")
</pallas_src>

<mosaic_0001>
module attributes {stable_mosaic.version = 11 : i64} {
  func.func @_bilstm_kernel(%arg0: i32, %arg1: memref<1x64x16xf32, #tpu.memory_space<vmem>>, %arg2: memref<16x1024xf32, #tpu.memory_space<vmem>>, %arg3: memref<128x512xf32, #tpu.memory_space<vmem>>, %arg4: memref<128x512xf32, #tpu.memory_space<vmem>>, %arg5: memref<1x1024xf32, #tpu.memory_space<vmem>>, %arg6: memref<1x128xf32, #tpu.memory_space<vmem>>, %arg7: memref<1x128xf32, #tpu.memory_space<vmem>>, %arg8: memref<1x1xf32, #tpu.memory_space<vmem>>, %arg9: memref<1x8x8xf32, #tpu.memory_space<vmem>>, %arg10: memref<64x1024xf32, #tpu.memory_space<vmem>>, %arg11: memref<8x8xf32, #tpu.memory_space<vmem>>, %arg12: memref<8x8xf32, #tpu.memory_space<vmem>>) attributes {dimension_semantics = [#tpu.dimension_semantics<parallel>], iteration_bounds = array<i64: 1>, scalar_prefetch = 0 : i64, scratch_operands = 3 : i64, tpu.core_type = #tpu.core_type<tc>, window_params = [{transform_indices = @transform_0, window_bounds = array<i64: 1, 64, 16>}, {pipeline_mode = #tpu.pipeline_mode<synchronous>, transform_indices = @transform_1, window_bounds = array<i64: 16, 1024>}, {pipeline_mode = #tpu.pipeline_mode<synchronous>, transform_indices = @transform_2, window_bounds = array<i64: 128, 512>}, {pipeline_mode = #tpu.pipeline_mode<synchronous>, transform_indices = @transform_3, window_bounds = array<i64: 128, 512>}, {pipeline_mode = #tpu.pipeline_mode<synchronous>, transform_indices = @transform_4, window_bounds = array<i64: 1, 1024>}, {pipeline_mode = #tpu.pipeline_mode<synchronous>, transform_indices = @transform_5, window_bounds = array<i64: 1, 128>}, {pipeline_mode = #tpu.pipeline_mode<synchronous>, transform_indices = @transform_6, window_bounds = array<i64: 1, 128>}, {pipeline_mode = #tpu.pipeline_mode<synchronous>, transform_indices = @transform_7, window_bounds = array<i64: 1, 1>}, {transform_indices = @transform_8, window_bounds = array<i64: 1, 8, 8>}]} {
    %c0 = arith.constant 0 : index
    %c0_0 = arith.constant 0 : index
    %c0_1 = arith.constant 0 : index
    %0 = vector.load %arg1[%c0, %c0_0, %c0_1] : memref<1x64x16xf32, #tpu.memory_space<vmem>>, vector<1x64x16xf32>
    %1 = vector.shape_cast %0 : vector<1x64x16xf32> to vector<64x16xf32>
    %c0_2 = arith.constant 0 : index
    %c0_3 = arith.constant 0 : index
    %2 = vector.load %arg2[%c0_2, %c0_3] : memref<16x1024xf32, #tpu.memory_space<vmem>>, vector<16x1024xf32>
    %cst = arith.constant dense<0.000000e+00> : vector<64x1024xf32>
    %3 = tpu.matmul %1, %2, %cst {dimension_numbers = #tpu.dot_dimension_numbers<[1], [0], [0], [1], [0, 0, 1, 1], [], []>} : vector<64x16xf32>, vector<16x1024xf32>, vector<64x1024xf32> -> vector<64x1024xf32>
    %c0_4 = arith.constant 0 : index
    %c0_5 = arith.constant 0 : index
    %4 = vector.load %arg5[%c0_4, %c0_5] : memref<1x1024xf32, #tpu.memory_space<vmem>>, vector<1x1024xf32>
    %5 = vector.broadcast %4 : vector<1x1024xf32> to vector<64x1024xf32>
    %6 = arith.addf %3, %5 : vector<64x1024xf32>
    %c0_6 = arith.constant 0 : index
    %c0_7 = arith.constant 0 : index
    %7 = vector.load %arg10[%c0_6, %c0_7] : memref<64x1024xf32, #tpu.memory_space<vmem>>, vector<64x1024xf32>
    tpu.vector_store %arg10[%c0_6, %c0_7], %6 {strides = array<i32>} : memref<64x1024xf32, #tpu.memory_space<vmem>>, vector<64x1024xf32>,
    %c0_8 = arith.constant 0 : index
    %c0_9 = arith.constant 0 : index
    %8 = vector.load %arg6[%c0_8, %c0_9] : memref<1x128xf32, #tpu.memory_space<vmem>>, vector<1x128xf32>
    %c0_10 = arith.constant 0 : index
    %c0_11 = arith.constant 0 : index
    %9 = vector.load %arg7[%c0_10, %c0_11] : memref<1x128xf32, #tpu.memory_space<vmem>>, vector<1x128xf32>
    %cst_12 = arith.constant 0.000000e+00 : f32
    %10 = vector.broadcast %cst_12 : f32 to vector<8x128xf32>
    %c0_i32 = arith.constant 0 : i32
    %c7_i32 = arith.constant 7 : i32
    %11 = arith.subi %c7_i32, %c0_i32 : i32
    %c8_i32 = arith.constant 8 : i32
    %12 = arith.muli %c0_i32, %c8_i32 : i32
    %13 = tpu.assume_multiple %12, 8 : i32
    %c8_i32_13 = arith.constant 8 : i32
    %14 = arith.muli %11, %c8_i32_13 : i32
    %15 = tpu.assume_multiple %14, 8 : i32
    %16 = arith.index_cast %13 : i32 to index
    %c0_14 = arith.constant 0 : index
    %17 = vector.load %arg10[%16, %c0_14] : memref<64x1024xf32, #tpu.memory_space<vmem>>, vector<8x512xf32>
    %c0_15 = arith.constant 0 : index
    %c0_16 = arith.constant 0 : index
    %18 = vector.load %arg3[%c0_15, %c0_16] : memref<128x512xf32, #tpu.memory_space<vmem>>, vector<128x512xf32>
    %cst_17 = arith.constant dense<0.000000e+00> : vector<8x512xf32>
    %19 = tpu.matmul %10, %18, %cst_17 {dimension_numbers = #tpu.dot_dimension_numbers<[1], [0], [0], [1], [0, 0, 1, 1], [], []>} : vector<8x128xf32>, vector<128x512xf32>, vector<8x512xf32> -> vector<8x512xf32>
    %20 = arith.addf %17, %19 : vector<8x512xf32>
    %21 = arith.index_cast %15 : i32 to index
    %c512 = arith.constant 512 : index
    %22 = vector.load %arg10[%21, %c512] : memref<64x1024xf32, #tpu.memory_space<vmem>>, vector<8x512xf32>
    %c0_18 = arith.constant 0 : index
    %c0_19 = arith.constant 0 : index
    %23 = vector.load %arg4[%c0_18, %c0_19] : memref<128x512xf32, #tpu.memory_space<vmem>>, vector<128x512xf32>
    %cst_20 = arith.constant dense<0.000000e+00> : vector<8x512xf32>
    %24 = tpu.matmul %10, %23, %cst_20 {dimension_numbers = #tpu.dot_dimension_numbers<[1], [0], [0], [1], [0, 0, 1, 1], [], []>} : vector<8x128xf32>, vector<128x512xf32>, vector<8x512xf32> -> vector<8x512xf32>
    %25 = arith.addf %22, %24 : vector<8x512xf32>
    %26 = vector.extract_strided_slice %20 {offsets = [0, 0], sizes = [8, 128], strides = [1, 1]} : vector<8x512xf32> to vector<8x128xf32>
    %27 = arith.negf %26 : vector<8x128xf32>
    %28 = math.exp %27 : vector<8x128xf32>
    %cst_21 = arith.constant 1.000000e+00 : f32
    %29 = vector.broadcast %cst_21 : f32 to vector<8x128xf32>
    %30 = arith.addf %29, %28 : vector<8x128xf32>
    %31 = arith.divf %29, %30 : vector<8x128xf32>
    %32 = vector.extract_strided_slice %20 {offsets = [0, 128], sizes = [8, 128], strides = [1, 1]} : vector<8x512xf32> to vector<8x128xf32>
    %33 = arith.negf %32 : vector<8x128xf32>
    %34 = math.exp %33 : vector<8x128xf32>
    %cst_22 = arith.constant 1.000000e+00 : f32
    %35 = vector.broadcast %cst_22 : f32 to vector<8x128xf32>
    %36 = arith.addf %35, %34 : vector<8x128xf32>
    %37 = arith.divf %35, %36 : vector<8x128xf32>
    %38 = vector.extract_strided_slice %20 {offsets = [0, 256], sizes = [8, 128], strides = [1, 1]} : vector<8x512xf32> to vector<8x128xf32>
    %39 = math.tanh %38 : vector<8x128xf32>
    %40 = vector.extract_strided_slice %20 {offsets = [0, 384], sizes = [8, 128], strides = [1, 1]} : vector<8x512xf32> to vector<8x128xf32>
    %41 = arith.negf %40 : vector<8x128xf32>
    %42 = math.exp %41 : vector<8x128xf32>
    %cst_23 = arith.constant 1.000000e+00 : f32
    %43 = vector.broadcast %cst_23 : f32 to vector<8x128xf32>
    %44 = arith.addf %43, %42 : vector<8x128xf32>
    %45 = arith.divf %43, %44 : vector<8x128xf32>
    %46 = arith.mulf %37, %10 : vector<8x128xf32>
    %47 = arith.mulf %31, %39 : vector<8x128xf32>
    %48 = arith.addf %46, %47 : vector<8x128xf32>
    %49 = math.tanh %48 : vector<8x128xf32>
    %50 = arith.mulf %45, %49 : vector<8x128xf32>
    %51 = vector.extract_strided_slice %25 {offsets = [0, 0], sizes = [8, 128], strides = [1, 1]} : vector<8x512xf32> to vector<8x128xf32>
    %52 = arith.negf %51 : vector<8x128xf32>
    %53 = math.exp %52 : vector<8x128xf32>
    %cst_24 = arith.constant 1.000000e+00 : f32
    %54 = vector.broadcast %cst_24 : f32 to vector<8x128xf32>
    %55 = arith.addf %54, %53 : vector<8x128xf32>
    %56 = arith.divf %54, %55 : vector<8x128xf32>
    %57 = vector.extract_strided_slice %25 {offsets = [0, 128], sizes = [8, 128], strides = [1, 1]} : vector<8x512xf32> to vector<8x128xf32>
    %58 = arith.negf %57 : vector<8x128xf32>
    %59 = math.exp %58 : vector<8x128xf32>
    %cst_25 = arith.constant 1.000000e+00 : f32
    %60 = vector.broadcast %cst_25 : f32 to vector<8x128xf32>
    %61 = arith.addf %60, %59 : vector<8x128xf32>
    %62 = arith.divf %60, %61 : vector<8x128xf32>
    %63 = vector.extract_strided_slice %25 {offsets = [0, 256], sizes = [8, 128], strides = [1, 1]} : vector<8x512xf32> to vector<8x128xf32>
    %64 = math.tanh %63 : vector<8x128xf32>
    %65 = vector.extract_strided_slice %25 {offsets = [0, 384], sizes = [8, 128], strides = [1, 1]} : vector<8x512xf32> to vector<8x128xf32>
    %66 = arith.negf %65 : vector<8x128xf32>
    %67 = math.exp %66 : vector<8x128xf32>
    %cst_26 = arith.constant 1.000000e+00 : f32
    %68 = vector.broadcast %cst_26 : f32 to vector<8x128xf32>
    %69 = arith.addf %68, %67 : vector<8x128xf32>
    %70 = arith.divf %68, %69 : vector<8x128xf32>
    %71 = arith.mulf %62, %10 : vector<8x128xf32>
    %72 = arith.mulf %56, %64 : vector<8x128xf32>
    %73 = arith.addf %71, %72 : vector<8x128xf32>
    %74 = math.tanh %73 : vector<8x128xf32>
    %75 = arith.mulf %70, %74 : vector<8x128xf32>
    %76 = vector.broadcast %8 : vector<1x128xf32> to vector<8x128xf32>
    %77 = arith.mulf %50, %76 : vector<8x128xf32>
    %cst_27 = arith.constant dense<0.000000e+00> : vector<8xf32>
    %78 = vector.multi_reduction <add>, %77, %cst_27 [1] : vector<8x128xf32> to vector<8xf32>
    %79 = vector.shape_cast %78 : vector<8xf32> to vector<1x8xf32>
    %80 = arith.index_cast %c0_i32 : i32 to index
    %c0_28 = arith.constant 0 : index
    %81 = vector.load %arg11[%80, %c0_28] : memref<8x8xf32, #tpu.memory_space<vmem>>, vector<1x8xf32>
    tpu.vector_store %arg11[%80, %c0_28], %79 {strides = array<i32>} : memref<8x8xf32, #tpu.memory_space<vmem>>, vector<1x8xf32>,
    %82 = vector.broadcast %9 : vector<1x128xf32> to vector<8x128xf32>
    %83 = arith.mulf %75, %82 : vector<8x128xf32>
    %cst_29 = arith.constant dense<0.000000e+00> : vector<8xf32>
    %84 = vector.multi_reduction <add>, %83, %cst_29 [1] : vector<8x128xf32> to vector<8xf32>
    %85 = vector.shape_cast %84 : vector<8xf32> to vector<1x8xf32>
    %86 = arith.index_cast %11 : i32 to index
    %c0_30 = arith.constant 0 : index
    %87 = vector.load %arg12[%86, %c0_30] : memref<8x8xf32, #tpu.memory_space<vmem>>, vector<1x8xf32>
    tpu.vector_store %arg12[%86, %c0_30], %85 {strides = array<i32>} : memref<8x8xf32, #tpu.memory_space<vmem>>, vector<1x8xf32>,
    %c1_i32 = arith.constant 1 : i32
    %c7_i32_31 = arith.constant 7 : i32
    %88 = arith.subi %c7_i32_31, %c1_i32 : i32
    %c8_i32_32 = arith.constant 8 : i32
    %89 = arith.muli %c1_i32, %c8_i32_32 : i32
    %90 = tpu.assume_multiple %89, 8 : i32
    %c8_i32_33 = arith.constant 8 : i32
    %91 = arith.muli %88, %c8_i32_33 : i32
    %92 = tpu.assume_multiple %91, 8 : i32
    %93 = arith.index_cast %90 : i32 to index
    %c0_34 = arith.constant 0 : index
    %94 = vector.load %arg10[%93, %c0_34] : memref<64x1024xf32, #tpu.memory_space<vmem>>, vector<8x512xf32>
    %c0_35 = arith.constant 0 : index
    %c0_36 = arith.constant 0 : index
    %95 = vector.load %arg3[%c0_35, %c0_36] : memref<128x512xf32, #tpu.memory_space<vmem>>, vector<128x512xf32>
    %cst_37 = arith.constant dense<0.000000e+00> : vector<8x512xf32>
    %96 = tpu.matmul %50, %95, %cst_37 {dimension_numbers = #tpu.dot_dimension_numbers<[1], [0], [0], [1], [0, 0, 1, 1], [], []>} : vector<8x128xf32>, vector<128x512xf32>, vector<8x512xf32> -> vector<8x512xf32>
    %97 = arith.addf %94, %96 : vector<8x512xf32>
    %98 = arith.index_cast %92 : i32 to index
    %c512_38 = arith.constant 512 : index
    %99 = vector.load %arg10[%98, %c512_38] : memref<64x1024xf32, #tpu.memory_space<vmem>>, vector<8x512xf32>
    %c0_39 = arith.constant 0 : index
    %c0_40 = arith.constant 0 : index
    %100 = vector.load %arg4[%c0_39, %c0_40] : memref<128x512xf32, #tpu.memory_space<vmem>>, vector<128x512xf32>
    %cst_41 = arith.constant dense<0.000000e+00> : vector<8x512xf32>
    %101 = tpu.matmul %75, %100, %cst_41 {dimension_numbers = #tpu.dot_dimension_numbers<[1], [0], [0], [1], [0, 0, 1, 1], [], []>} : vector<8x128xf32>, vector<128x512xf32>, vector<8x512xf32> -> vector<8x512xf32>
    %102 = arith.addf %99, %101 : vector<8x512xf32>
    %103 = vector.extract_strided_slice %97 {offsets = [0, 0], sizes = [8, 128], strides = [1, 1]} : vector<8x512xf32> to vector<8x128xf32>
    %104 = arith.negf %103 : vector<8x128xf32>
    %105 = math.exp %104 : vector<8x128xf32>
    %cst_42 = arith.constant 1.000000e+00 : f32
    %106 = vector.broadcast %cst_42 : f32 to vector<8x128xf32>
    %107 = arith.addf %106, %105 : vector<8x128xf32>
    %108 = arith.divf %106, %107 : vector<8x128xf32>
    %109 = vector.extract_strided_slice %97 {offsets = [0, 128], sizes = [8, 128], strides = [1, 1]} : vector<8x512xf32> to vector<8x128xf32>
    %110 = arith.negf %109 : vector<8x128xf32>
    %111 = math.exp %110 : vector<8x128xf32>
    %cst_43 = arith.constant 1.000000e+00 : f32
    %112 = vector.broadcast %cst_43 : f32 to vector<8x128xf32>
    %113 = arith.addf %112, %111 : vector<8x128xf32>
    %114 = arith.divf %112, %113 : vector<8x128xf32>
    %115 = vector.extract_strided_slice %97 {offsets = [0, 256], sizes = [8, 128], strides = [1, 1]} : vector<8x512xf32> to vector<8x128xf32>
    %116 = math.tanh %115 : vector<8x128xf32>
    %117 = vector.extract_strided_slice %97 {offsets = [0, 384], sizes = [8, 128], strides = [1, 1]} : vector<8x512xf32> to vector<8x128xf32>
    %118 = arith.negf %117 : vector<8x128xf32>
    %119 = math.exp %118 : vector<8x128xf32>
    %cst_44 = arith.constant 1.000000e+00 : f32
    %120 = vector.broadcast %cst_44 : f32 to vector<8x128xf32>
    %121 = arith.addf %120, %119 : vector<8x128xf32>
    %122 = arith.divf %120, %121 : vector<8x128xf32>
    %123 = arith.mulf %114, %48 : vector<8x128xf32>
    %124 = arith.mulf %108, %116 : vector<8x128xf32>
    %125 = arith.addf %123, %124 : vector<8x128xf32>
    %126 = math.tanh %125 : vector<8x128xf32>
    %127 = arith.mulf %122, %126 : vector<8x128xf32>
    %128 = vector.extract_strided_slice %102 {offsets = [0, 0], sizes = [8, 128], strides = [1, 1]} : vector<8x512xf32> to vector<8x128xf32>
    %129 = arith.negf %128 : vector<8x128xf32>
    %130 = math.exp %129 : vector<8x128xf32>
    %cst_45 = arith.constant 1.000000e+00 : f32
    %131 = vector.broadcast %cst_45 : f32 to vector<8x128xf32>
    %132 = arith.addf %131, %130 : vector<8x128xf32>
    %133 = arith.divf %131, %132 : vector<8x128xf32>
    %134 = vector.extract_strided_slice %102 {offsets = [0, 128], sizes = [8, 128], strides = [1, 1]} : vector<8x512xf32> to vector<8x128xf32>
    %135 = arith.negf %134 : vector<8x128xf32>
    %136 = math.exp %135 : vector<8x128xf32>
    %cst_46 = arith.constant 1.000000e+00 : f32
    %137 = vector.broadcast %cst_46 : f32 to vector<8x128xf32>
    %138 = arith.addf %137, %136 : vector<8x128xf32>
    %139 = arith.divf %137, %138 : vector<8x128xf32>
    %140 = vector.extract_strided_slice %102 {offsets = [0, 256], sizes = [8, 128], strides = [1, 1]} : vector<8x512xf32> to vector<8x128xf32>
    %141 = math.tanh %140 : vector<8x128xf32>
    %142 = vector.extract_strided_slice %102 {offsets = [0, 384], sizes = [8, 128], strides = [1, 1]} : vector<8x512xf32> to vector<8x128xf32>
    %143 = arith.negf %142 : vector<8x128xf32>
    %144 = math.exp %143 : vector<8x128xf32>
    %cst_47 = arith.constant 1.000000e+00 : f32
    %145 = vector.broadcast %cst_47 : f32 to vector<8x128xf32>
    %146 = arith.addf %145, %144 : vector<8x128xf32>
    %147 = arith.divf %145, %146 : vector<8x128xf32>
    %148 = arith.mulf %139, %73 : vector<8x128xf32>
    %149 = arith.mulf %133, %141 : vector<8x128xf32>
    %150 = arith.addf %148, %149 : vector<8x128xf32>
    %151 = math.tanh %150 : vector<8x128xf32>
    %152 = arith.mulf %147, %151 : vector<8x128xf32>
    %153 = vector.broadcast %8 : vector<1x128xf32> to vector<8x128xf32>
    %154 = arith.mulf %127, %153 : vector<8x128xf32>
    %cst_48 = arith.constant dense<0.000000e+00> : vector<8xf32>
    %155 = vector.multi_reduction <add>, %154, %cst_48 [1] : vector<8x128xf32> to vector<8xf32>
    %156 = vector.shape_cast %155 : vector<8xf32> to vector<1x8xf32>
    %157 = arith.index_cast %c1_i32 : i32 to index
    %c0_49 = arith.constant 0 : index
    %158 = vector.load %arg11[%157, %c0_49] : memref<8x8xf32, #tpu.memory_space<vmem>>, vector<1x8xf32>
    tpu.vector_store %arg11[%157, %c0_49], %156 {strides = array<i32>} : memref<8x8xf32, #tpu.memory_space<vmem>>, vector<1x8xf32>,
    %159 = vector.broadcast %9 : vector<1x128xf32> to vector<8x128xf32>
    %160 = arith.mulf %152, %159 : vector<8x128xf32>
    %cst_50 = arith.constant dense<0.000000e+00> : vector<8xf32>
    %161 = vector.multi_reduction <add>, %160, %cst_50 [1] : vector<8x128xf32> to vector<8xf32>
    %162 = vector.shape_cast %161 : vector<8xf32> to vector<1x8xf32>
    %163 = arith.index_cast %88 : i32 to index
    %c0_51 = arith.constant 0 : index
    %164 = vector.load %arg12[%163, %c0_51] : memref<8x8xf32, #tpu.memory_space<vmem>>, vector<1x8xf32>
    tpu.vector_store %arg12[%163, %c0_51], %162 {strides = array<i32>} : memref<8x8xf32, #tpu.memory_space<vmem>>, vector<1x8xf32>,
    %c2_i32 = arith.constant 2 : i32
    %c7_i32_52 = arith.constant 7 : i32
    %165 = arith.subi %c7_i32_52, %c2_i32 : i32
    %c8_i32_53 = arith.constant 8 : i32
    %166 = arith.muli %c2_i32, %c8_i32_53 : i32
    %167 = tpu.assume_multiple %166, 8 : i32
    %c8_i32_54 = arith.constant 8 : i32
    %168 = arith.muli %165, %c8_i32_54 : i32
    %169 = tpu.assume_multiple %168, 8 : i32
    %170 = arith.index_cast %167 : i32 to index
    %c0_55 = arith.constant 0 : index
    %171 = vector.load %arg10[%170, %c0_55] : memref<64x1024xf32, #tpu.memory_space<vmem>>, vector<8x512xf32>
    %c0_56 = arith.constant 0 : index
    %c0_57 = arith.constant 0 : index
    %172 = vector.load %arg3[%c0_56, %c0_57] : memref<128x512xf32, #tpu.memory_space<vmem>>, vector<128x512xf32>
    %cst_58 = arith.constant dense<0.000000e+00> : vector<8x512xf32>
    %173 = tpu.matmul %127, %172, %cst_58 {dimension_numbers = #tpu.dot_dimension_numbers<[1], [0], [0], [1], [0, 0, 1, 1], [], []>} : vector<8x128xf32>, vector<128x512xf32>, vector<8x512xf32> -> vector<8x512xf32>
    %174 = arith.addf %171, %173 : vector<8x512xf32>
    %175 = arith.index_cast %169 : i32 to index
    %c512_59 = arith.constant 512 : index
    %176 = vector.load %arg10[%175, %c512_59] : memref<64x1024xf32, #tpu.memory_space<vmem>>, vector<8x512xf32>
    %c0_60 = arith.constant 0 : index
    %c0_61 = arith.constant 0 : index
    %177 = vector.load %arg4[%c0_60, %c0_61] : memref<128x512xf32, #tpu.memory_space<vmem>>, vector<128x512xf32>
    %cst_62 = arith.constant dense<0.000000e+00> : vector<8x512xf32>
    %178 = tpu.matmul %152, %177, %cst_62 {dimension_numbers = #tpu.dot_dimension_numbers<[1], [0], [0], [1], [0, 0, 1, 1], [], []>} : vector<8x128xf32>, vector<128x512xf32>, vector<8x512xf32> -> vector<8x512xf32>
    %179 = arith.addf %176, %178 : vector<8x512xf32>
    %180 = vector.extract_strided_slice %174 {offsets = [0, 0], sizes = [8, 128], strides = [1, 1]} : vector<8x512xf32> to vector<8x128xf32>
    %181 = arith.negf %180 : vector<8x128xf32>
    %182 = math.exp %181 : vector<8x128xf32>
    %cst_63 = arith.constant 1.000000e+00 : f32
    %183 = vector.broadcast %cst_63 : f32 to vector<8x128xf32>
    %184 = arith.addf %183, %182 : vector<8x128xf32>
    %185 = arith.divf %183, %184 : vector<8x128xf32>
    %186 = vector.extract_strided_slice %174 {offsets = [0, 128], sizes = [8, 128], strides = [1, 1]} : vector<8x512xf32> to vector<8x128xf32>
    %187 = arith.negf %186 : vector<8x128xf32>
    %188 = math.exp %187 : vector<8x128xf32>
    %cst_64 = arith.constant 1.000000e+00 : f32
    %189 = vector.broadcast %cst_64 : f32 to vector<8x128xf32>
    %190 = arith.addf %189, %188 : vector<8x128xf32>
    %191 = arith.divf %189, %190 : vector<8x128xf32>
    %192 = vector.extract_strided_slice %174 {offsets = [0, 256], sizes = [8, 128], strides = [1, 1]} : vector<8x512xf32> to vector<8x128xf32>
    %193 = math.tanh %192 : vector<8x128xf32>
    %194 = vector.extract_strided_slice %174 {offsets = [0, 384], sizes = [8, 128], strides = [1, 1]} : vector<8x512xf32> to vector<8x128xf32>
    %195 = arith.negf %194 : vector<8x128xf32>
    %196 = math.exp %195 : vector<8x128xf32>
    %cst_65 = arith.constant 1.000000e+00 : f32
    %197 = vector.broadcast %cst_65 : f32 to vector<8x128xf32>
    %198 = arith.addf %197, %196 : vector<8x128xf32>
    %199 = arith.divf %197, %198 : vector<8x128xf32>
    %200 = arith.mulf %191, %125 : vector<8x128xf32>
    %201 = arith.mulf %185, %193 : vector<8x128xf32>
    %202 = arith.addf %200, %201 : vector<8x128xf32>
    %203 = math.tanh %202 : vector<8x128xf32>
    %204 = arith.mulf %199, %203 : vector<8x128xf32>
    %205 = vector.extract_strided_slice %179 {offsets = [0, 0], sizes = [8, 128], strides = [1, 1]} : vector<8x512xf32> to vector<8x128xf32>
    %206 = arith.negf %205 : vector<8x128xf32>
    %207 = math.exp %206 : vector<8x128xf32>
    %cst_66 = arith.constant 1.000000e+00 : f32
    %208 = vector.broadcast %cst_66 : f32 to vector<8x128xf32>
    %209 = arith.addf %208, %207 : vector<8x128xf32>
    %210 = arith.divf %208, %209 : vector<8x128xf32>
    %211 = vector.extract_strided_slice %179 {offsets = [0, 128], sizes = [8, 128], strides = [1, 1]} : vector<8x512xf32> to vector<8x128xf32>
    %212 = arith.negf %211 : vector<8x128xf32>
    %213 = math.exp %212 : vector<8x128xf32>
    %cst_67 = arith.constant 1.000000e+00 : f32
    %214 = vector.broadcast %cst_67 : f32 to vector<8x128xf32>
    %215 = arith.addf %214, %213 : vector<8x128xf32>
    %216 = arith.divf %214, %215 : vector<8x128xf32>
    %217 = vector.extract_strided_slice %179 {offsets = [0, 256], sizes = [8, 128], strides = [1, 1]} : vector<8x512xf32> to vector<8x128xf32>
    %218 = math.tanh %217 : vector<8x128xf32>
    %219 = vector.extract_strided_slice %179 {offsets = [0, 384], sizes = [8, 128], strides = [1, 1]} : vector<8x512xf32> to vector<8x128xf32>
    %220 = arith.negf %219 : vector<8x128xf32>
    %221 = math.exp %220 : vector<8x128xf32>
    %cst_68 = arith.constant 1.000000e+00 : f32
    %222 = vector.broadcast %cst_68 : f32 to vector<8x128xf32>
    %223 = arith.addf %222, %221 : vector<8x128xf32>
    %224 = arith.divf %222, %223 : vector<8x128xf32>
    %225 = arith.mulf %216, %150 : vector<8x128xf32>
    %226 = arith.mulf %210, %218 : vector<8x128xf32>
    %227 = arith.addf %225, %226 : vector<8x128xf32>
    %228 = math.tanh %227 : vector<8x128xf32>
    %229 = arith.mulf %224, %228 : vector<8x128xf32>
    %230 = vector.broadcast %8 : vector<1x128xf32> to vector<8x128xf32>
    %231 = arith.mulf %204, %230 : vector<8x128xf32>
    %cst_69 = arith.constant dense<0.000000e+00> : vector<8xf32>
    %232 = vector.multi_reduction <add>, %231, %cst_69 [1] : vector<8x128xf32> to vector<8xf32>
    %233 = vector.shape_cast %232 : vector<8xf32> to vector<1x8xf32>
    %234 = arith.index_cast %c2_i32 : i32 to index
    %c0_70 = arith.constant 0 : index
    %235 = vector.load %arg11[%234, %c0_70] : memref<8x8xf32, #tpu.memory_space<vmem>>, vector<1x8xf32>
    tpu.vector_store %arg11[%234, %c0_70], %233 {strides = array<i32>} : memref<8x8xf32, #tpu.memory_space<vmem>>, vector<1x8xf32>,
    %236 = vector.broadcast %9 : vector<1x128xf32> to vector<8x128xf32>
    %237 = arith.mulf %229, %236 : vector<8x128xf32>
    %cst_71 = arith.constant dense<0.000000e+00> : vector<8xf32>
    %238 = vector.multi_reduction <add>, %237, %cst_71 [1] : vector<8x128xf32> to vector<8xf32>
    %239 = vector.shape_cast %238 : vector<8xf32> to vector<1x8xf32>
    %240 = arith.index_cast %165 : i32 to index
    %c0_72 = arith.constant 0 : index
    %241 = vector.load %arg12[%240, %c0_72] : memref<8x8xf32, #tpu.memory_space<vmem>>, vector<1x8xf32>
    tpu.vector_store %arg12[%240, %c0_72], %239 {strides = array<i32>} : memref<8x8xf32, #tpu.memory_space<vmem>>, vector<1x8xf32>,
    %c3_i32 = arith.constant 3 : i32
    %c7_i32_73 = arith.constant 7 : i32
    %242 = arith.subi %c7_i32_73, %c3_i32 : i32
    %c8_i32_74 = arith.constant 8 : i32
    %243 = arith.muli %c3_i32, %c8_i32_74 : i32
    %244 = tpu.assume_multiple %243, 8 : i32
    %c8_i32_75 = arith.constant 8 : i32
    %245 = arith.muli %242, %c8_i32_75 : i32
    %246 = tpu.assume_multiple %245, 8 : i32
    %247 = arith.index_cast %244 : i32 to index
    %c0_76 = arith.constant 0 : index
    %248 = vector.load %arg10[%247, %c0_76] : memref<64x1024xf32, #tpu.memory_space<vmem>>, vector<8x512xf32>
    %c0_77 = arith.constant 0 : index
    %c0_78 = arith.constant 0 : index
    %249 = vector.load %arg3[%c0_77, %c0_78] : memref<128x512xf32, #tpu.memory_space<vmem>>, vector<128x512xf32>
    %cst_79 = arith.constant dense<0.000000e+00> : vector<8x512xf32>
    %250 = tpu.matmul %204, %249, %cst_79 {dimension_numbers = #tpu.dot_dimension_numbers<[1], [0], [0], [1], [0, 0, 1, 1], [], []>} : vector<8x128xf32>, vector<128x512xf32>, vector<8x512xf32> -> vector<8x512xf32>
    %251 = arith.addf %248, %250 : vector<8x512xf32>
    %252 = arith.index_cast %246 : i32 to index
    %c512_80 = arith.constant 512 : index
    %253 = vector.load %arg10[%252, %c512_80] : memref<64x1024xf32, #tpu.memory_space<vmem>>, vector<8x512xf32>
    %c0_81 = arith.constant 0 : index
    %c0_82 = arith.constant 0 : index
    %254 = vector.load %arg4[%c0_81, %c0_82] : memref<128x512xf32, #tpu.memory_space<vmem>>, vector<128x512xf32>
    %cst_83 = arith.constant dense<0.000000e+00> : vector<8x512xf32>
    %255 = tpu.matmul %229, %254, %cst_83 {dimension_numbers = #tpu.dot_dimension_numbers<[1], [0], [0], [1], [0, 0, 1, 1], [], []>} : vector<8x128xf32>, vector<128x512xf32>, vector<8x512xf32> -> vector<8x512xf32>
    %256 = arith.addf %253, %255 : vector<8x512xf32>
    %257 = vector.extract_strided_slice %251 {offsets = [0, 0], sizes = [8, 128], strides = [1, 1]} : vector<8x512xf32> to vector<8x128xf32>
    %258 = arith.negf %257 : vector<8x128xf32>
    %259 = math.exp %258 : vector<8x128xf32>
    %cst_84 = arith.constant 1.000000e+00 : f32
    %260 = vector.broadcast %cst_84 : f32 to vector<8x128xf32>
    %261 = arith.addf %260, %259 : vector<8x128xf32>
    %262 = arith.divf %260, %261 : vector<8x128xf32>
    %263 = vector.extract_strided_slice %251 {offsets = [0, 128], sizes = [8, 128], strides = [1, 1]} : vector<8x512xf32> to vector<8x128xf32>
    %264 = arith.negf %263 : vector<8x128xf32>
    %265 = math.exp %264 : vector<8x128xf32>
    %cst_85 = arith.constant 1.000000e+00 : f32
    %266 = vector.broadcast %cst_85 : f32 to vector<8x128xf32>
    %267 = arith.addf %266, %265 : vector<8x128xf32>
    %268 = arith.divf %266, %267 : vector<8x128xf32>
    %269 = vector.extract_strided_slice %251 {offsets = [0, 256], sizes = [8, 128], strides = [1, 1]} : vector<8x512xf32> to vector<8x128xf32>
    %270 = math.tanh %269 : vector<8x128xf32>
    %271 = vector.extract_strided_slice %251 {offsets = [0, 384], sizes = [8, 128], strides = [1, 1]} : vector<8x512xf32> to vector<8x128xf32>
    %272 = arith.negf %271 : vector<8x128xf32>
    %273 = math.exp %272 : vector<8x128xf32>
    %cst_86 = arith.constant 1.000000e+00 : f32
    %274 = vector.broadcast %cst_86 : f32 to vector<8x128xf32>
    %275 = arith.addf %274, %273 : vector<8x128xf32>
    %276 = arith.divf %274, %275 : vector<8x128xf32>
    %277 = arith.mulf %268, %202 : vector<8x128xf32>
    %278 = arith.mulf %262, %270 : vector<8x128xf32>
    %279 = arith.addf %277, %278 : vector<8x128xf32>
    %280 = math.tanh %279 : vector<8x128xf32>
    %281 = arith.mulf %276, %280 : vector<8x128xf32>
    %282 = vector.extract_strided_slice %256 {offsets = [0, 0], sizes = [8, 128], strides = [1, 1]} : vector<8x512xf32> to vector<8x128xf32>
    %283 = arith.negf %282 : vector<8x128xf32>
    %284 = math.exp %283 : vector<8x128xf32>
    %cst_87 = arith.constant 1.000000e+00 : f32
    %285 = vector.broadcast %cst_87 : f32 to vector<8x128xf32>
    %286 = arith.addf %285, %284 : vector<8x128xf32>
    %287 = arith.divf %285, %286 : vector<8x128xf32>
    %288 = vector.extract_strided_slice %256 {offsets = [0, 128], sizes = [8, 128], strides = [1, 1]} : vector<8x512xf32> to vector<8x128xf32>
    %289 = arith.negf %288 : vector<8x128xf32>
    %290 = math.exp %289 : vector<8x128xf32>
    %cst_88 = arith.constant 1.000000e+00 : f32
    %291 = vector.broadcast %cst_88 : f32 to vector<8x128xf32>
    %292 = arith.addf %291, %290 : vector<8x128xf32>
    %293 = arith.divf %291, %292 : vector<8x128xf32>
    %294 = vector.extract_strided_slice %256 {offsets = [0, 256], sizes = [8, 128], strides = [1, 1]} : vector<8x512xf32> to vector<8x128xf32>
    %295 = math.tanh %294 : vector<8x128xf32>
    %296 = vector.extract_strided_slice %256 {offsets = [0, 384], sizes = [8, 128], strides = [1, 1]} : vector<8x512xf32> to vector<8x128xf32>
    %297 = arith.negf %296 : vector<8x128xf32>
    %298 = math.exp %297 : vector<8x128xf32>
    %cst_89 = arith.constant 1.000000e+00 : f32
    %299 = vector.broadcast %cst_89 : f32 to vector<8x128xf32>
    %300 = arith.addf %299, %298 : vector<8x128xf32>
    %301 = arith.divf %299, %300 : vector<8x128xf32>
    %302 = arith.mulf %293, %227 : vector<8x128xf32>
    %303 = arith.mulf %287, %295 : vector<8x128xf32>
    %304 = arith.addf %302, %303 : vector<8x128xf32>
    %305 = math.tanh %304 : vector<8x128xf32>
    %306 = arith.mulf %301, %305 : vector<8x128xf32>
    %307 = vector.broadcast %8 : vector<1x128xf32> to vector<8x128xf32>
    %308 = arith.mulf %281, %307 : vector<8x128xf32>
    %cst_90 = arith.constant dense<0.000000e+00> : vector<8xf32>
    %309 = vector.multi_reduction <add>, %308, %cst_90 [1] : vector<8x128xf32> to vector<8xf32>
    %310 = vector.shape_cast %309 : vector<8xf32> to vector<1x8xf32>
    %311 = arith.index_cast %c3_i32 : i32 to index
    %c0_91 = arith.constant 0 : index
    %312 = vector.load %arg11[%311, %c0_91] : memref<8x8xf32, #tpu.memory_space<vmem>>, vector<1x8xf32>
    tpu.vector_store %arg11[%311, %c0_91], %310 {strides = array<i32>} : memref<8x8xf32, #tpu.memory_space<vmem>>, vector<1x8xf32>,
    %313 = vector.broadcast %9 : vector<1x128xf32> to vector<8x128xf32>
    %314 = arith.mulf %306, %313 : vector<8x128xf32>
    %cst_92 = arith.constant dense<0.000000e+00> : vector<8xf32>
    %315 = vector.multi_reduction <add>, %314, %cst_92 [1] : vector<8x128xf32> to vector<8xf32>
    %316 = vector.shape_cast %315 : vector<8xf32> to vector<1x8xf32>
    %317 = arith.index_cast %242 : i32 to index
    %c0_93 = arith.constant 0 : index
    %318 = vector.load %arg12[%317, %c0_93] : memref<8x8xf32, #tpu.memory_space<vmem>>, vector<1x8xf32>
    tpu.vector_store %arg12[%317, %c0_93], %316 {strides = array<i32>} : memref<8x8xf32, #tpu.memory_space<vmem>>, vector<1x8xf32>,
    %c4_i32 = arith.constant 4 : i32
    %c7_i32_94 = arith.constant 7 : i32
    %319 = arith.subi %c7_i32_94, %c4_i32 : i32
    %c8_i32_95 = arith.constant 8 : i32
    %320 = arith.muli %c4_i32, %c8_i32_95 : i32
    %321 = tpu.assume_multiple %320, 8 : i32
    %c8_i32_96 = arith.constant 8 : i32
    %322 = arith.muli %319, %c8_i32_96 : i32
    %323 = tpu.assume_multiple %322, 8 : i32
    %324 = arith.index_cast %321 : i32 to index
    %c0_97 = arith.constant 0 : index
    %325 = vector.load %arg10[%324, %c0_97] : memref<64x1024xf32, #tpu.memory_space<vmem>>, vector<8x512xf32>
    %c0_98 = arith.constant 0 : index
    %c0_99 = arith.constant 0 : index
    %326 = vector.load %arg3[%c0_98, %c0_99] : memref<128x512xf32, #tpu.memory_space<vmem>>, vector<128x512xf32>
    %cst_100 = arith.constant dense<0.000000e+00> : vector<8x512xf32>
    %327 = tpu.matmul %281, %326, %cst_100 {dimension_numbers = #tpu.dot_dimension_numbers<[1], [0], [0], [1], [0, 0, 1, 1], [], []>} : vector<8x128xf32>, vector<128x512xf32>, vector<8x512xf32> -> vector<8x512xf32>
    %328 = arith.addf %325, %327 : vector<8x512xf32>
    %329 = arith.index_cast %323 : i32 to index
    %c512_101 = arith.constant 512 : index
    %330 = vector.load %arg10[%329, %c512_101] : memref<64x1024xf32, #tpu.memory_space<vmem>>, vector<8x512xf32>
    %c0_102 = arith.constant 0 : index
    %c0_103 = arith.constant 0 : index
    %331 = vector.load %arg4[%c0_102, %c0_103] : memref<128x512xf32, #tpu.memory_space<vmem>>, vector<128x512xf32>
    %cst_104 = arith.constant dense<0.000000e+00> : vector<8x512xf32>
    %332 = tpu.matmul %306, %331, %cst_104 {dimension_numbers = #tpu.dot_dimension_numbers<[1], [0], [0], [1], [0, 0, 1, 1], [], []>} : vector<8x128xf32>, vector<128x512xf32>, vector<8x512xf32> -> vector<8x512xf32>
    %333 = arith.addf %330, %332 : vector<8x512xf32>
    %334 = vector.extract_strided_slice %328 {offsets = [0, 0], sizes = [8, 128], strides = [1, 1]} : vector<8x512xf32> to vector<8x128xf32>
    %335 = arith.negf %334 : vector<8x128xf32>
    %336 = math.exp %335 : vector<8x128xf32>
    %cst_105 = arith.constant 1.000000e+00 : f32
    %337 = vector.broadcast %cst_105 : f32 to vector<8x128xf32>
    %338 = arith.addf %337, %336 : vector<8x128xf32>
    %339 = arith.divf %337, %338 : vector<8x128xf32>
    %340 = vector.extract_strided_slice %328 {offsets = [0, 128], sizes = [8, 128], strides = [1, 1]} : vector<8x512xf32> to vector<8x128xf32>
    %341 = arith.negf %340 : vector<8x128xf32>
    %342 = math.exp %341 : vector<8x128xf32>
    %cst_106 = arith.constant 1.000000e+00 : f32
    %343 = vector.broadcast %cst_106 : f32 to vector<8x128xf32>
    %344 = arith.addf %343, %342 : vector<8x128xf32>
    %345 = arith.divf %343, %344 : vector<8x128xf32>
    %346 = vector.extract_strided_slice %328 {offsets = [0, 256], sizes = [8, 128], strides = [1, 1]} : vector<8x512xf32> to vector<8x128xf32>
    %347 = math.tanh %346 : vector<8x128xf32>
    %348 = vector.extract_strided_slice %328 {offsets = [0, 384], sizes = [8, 128], strides = [1, 1]} : vector<8x512xf32> to vector<8x128xf32>
    %349 = arith.negf %348 : vector<8x128xf32>
    %350 = math.exp %349 : vector<8x128xf32>
    %cst_107 = arith.constant 1.000000e+00 : f32
    %351 = vector.broadcast %cst_107 : f32 to vector<8x128xf32>
    %352 = arith.addf %351, %350 : vector<8x128xf32>
    %353 = arith.divf %351, %352 : vector<8x128xf32>
    %354 = arith.mulf %345, %279 : vector<8x128xf32>
    %355 = arith.mulf %339, %347 : vector<8x128xf32>
    %356 = arith.addf %354, %355 : vector<8x128xf32>
    %357 = math.tanh %356 : vector<8x128xf32>
    %358 = arith.mulf %353, %357 : vector<8x128xf32>
    %359 = vector.extract_strided_slice %333 {offsets = [0, 0], sizes = [8, 128], strides = [1, 1]} : vector<8x512xf32> to vector<8x128xf32>
    %360 = arith.negf %359 : vector<8x128xf32>
    %361 = math.exp %360 : vector<8x128xf32>
    %cst_108 = arith.constant 1.000000e+00 : f32
    %362 = vector.broadcast %cst_108 : f32 to vector<8x128xf32>
    %363 = arith.addf %362, %361 : vector<8x128xf32>
    %364 = arith.divf %362, %363 : vector<8x128xf32>
    %365 = vector.extract_strided_slice %333 {offsets = [0, 128], sizes = [8, 128], strides = [1, 1]} : vector<8x512xf32> to vector<8x128xf32>
    %366 = arith.negf %365 : vector<8x128xf32>
    %367 = math.exp %366 : vector<8x128xf32>
    %cst_109 = arith.constant 1.000000e+00 : f32
    %368 = vector.broadcast %cst_109 : f32 to vector<8x128xf32>
    %369 = arith.addf %368, %367 : vector<8x128xf32>
    %370 = arith.divf %368, %369 : vector<8x128xf32>
    %371 = vector.extract_strided_slice %333 {offsets = [0, 256], sizes = [8, 128], strides = [1, 1]} : vector<8x512xf32> to vector<8x128xf32>
    %372 = math.tanh %371 : vector<8x128xf32>
    %373 = vector.extract_strided_slice %333 {offsets = [0, 384], sizes = [8, 128], strides = [1, 1]} : vector<8x512xf32> to vector<8x128xf32>
    %374 = arith.negf %373 : vector<8x128xf32>
    %375 = math.exp %374 : vector<8x128xf32>
    %cst_110 = arith.constant 1.000000e+00 : f32
    %376 = vector.broadcast %cst_110 : f32 to vector<8x128xf32>
    %377 = arith.addf %376, %375 : vector<8x128xf32>
    %378 = arith.divf %376, %377 : vector<8x128xf32>
    %379 = arith.mulf %370, %304 : vector<8x128xf32>
    %380 = arith.mulf %364, %372 : vector<8x128xf32>
    %381 = arith.addf %379, %380 : vector<8x128xf32>
    %382 = math.tanh %381 : vector<8x128xf32>
    %383 = arith.mulf %378, %382 : vector<8x128xf32>
    %384 = vector.broadcast %8 : vector<1x128xf32> to vector<8x128xf32>
    %385 = arith.mulf %358, %384 : vector<8x128xf32>
    %cst_111 = arith.constant dense<0.000000e+00> : vector<8xf32>
    %386 = vector.multi_reduction <add>, %385, %cst_111 [1] : vector<8x128xf32> to vector<8xf32>
    %387 = vector.shape_cast %386 : vector<8xf32> to vector<1x8xf32>
    %388 = arith.index_cast %c4_i32 : i32 to index
    %c0_112 = arith.constant 0 : index
    %389 = vector.load %arg11[%388, %c0_112] : memref<8x8xf32, #tpu.memory_space<vmem>>, vector<1x8xf32>
    tpu.vector_store %arg11[%388, %c0_112], %387 {strides = array<i32>} : memref<8x8xf32, #tpu.memory_space<vmem>>, vector<1x8xf32>,
    %390 = vector.broadcast %9 : vector<1x128xf32> to vector<8x128xf32>
    %391 = arith.mulf %383, %390 : vector<8x128xf32>
    %cst_113 = arith.constant dense<0.000000e+00> : vector<8xf32>
    %392 = vector.multi_reduction <add>, %391, %cst_113 [1] : vector<8x128xf32> to vector<8xf32>
    %393 = vector.shape_cast %392 : vector<8xf32> to vector<1x8xf32>
    %394 = arith.index_cast %319 : i32 to index
    %c0_114 = arith.constant 0 : index
    %395 = vector.load %arg12[%394, %c0_114] : memref<8x8xf32, #tpu.memory_space<vmem>>, vector<1x8xf32>
    tpu.vector_store %arg12[%394, %c0_114], %393 {strides = array<i32>} : memref<8x8xf32, #tpu.memory_space<vmem>>, vector<1x8xf32>,
    %c5_i32 = arith.constant 5 : i32
    %c7_i32_115 = arith.constant 7 : i32
    %396 = arith.subi %c7_i32_115, %c5_i32 : i32
    %c8_i32_116 = arith.constant 8 : i32
    %397 = arith.muli %c5_i32, %c8_i32_116 : i32
    %398 = tpu.assume_multiple %397, 8 : i32
    %c8_i32_117 = arith.constant 8 : i32
    %399 = arith.muli %396, %c8_i32_117 : i32
    %400 = tpu.assume_multiple %399, 8 : i32
    %401 = arith.index_cast %398 : i32 to index
    %c0_118 = arith.constant 0 : index
    %402 = vector.load %arg10[%401, %c0_118] : memref<64x1024xf32, #tpu.memory_space<vmem>>, vector<8x512xf32>
    %c0_119 = arith.constant 0 : index
    %c0_120 = arith.constant 0 : index
    %403 = vector.load %arg3[%c0_119, %c0_120] : memref<128x512xf32, #tpu.memory_space<vmem>>, vector<128x512xf32>
    %cst_121 = arith.constant dense<0.000000e+00> : vector<8x512xf32>
    %404 = tpu.matmul %358, %403, %cst_121 {dimension_numbers = #tpu.dot_dimension_numbers<[1], [0], [0], [1], [0, 0, 1, 1], [], []>} : vector<8x128xf32>, vector<128x512xf32>, vector<8x512xf32> -> vector<8x512xf32>
    %405 = arith.addf %402, %404 : vector<8x512xf32>
    %406 = arith.index_cast %400 : i32 to index
    %c512_122 = arith.constant 512 : index
    %407 = vector.load %arg10[%406, %c512_122] : memref<64x1024xf32, #tpu.memory_space<vmem>>, vector<8x512xf32>
    %c0_123 = arith.constant 0 : index
    %c0_124 = arith.constant 0 : index
    %408 = vector.load %arg4[%c0_123, %c0_124] : memref<128x512xf32, #tpu.memory_space<vmem>>, vector<128x512xf32>
    %cst_125 = arith.constant dense<0.000000e+00> : vector<8x512xf32>
    %409 = tpu.matmul %383, %408, %cst_125 {dimension_numbers = #tpu.dot_dimension_numbers<[1], [0], [0], [1], [0, 0, 1, 1], [], []>} : vector<8x128xf32>, vector<128x512xf32>, vector<8x512xf32> -> vector<8x512xf32>
    %410 = arith.addf %407, %409 : vector<8x512xf32>
    %411 = vector.extract_strided_slice %405 {offsets = [0, 0], sizes = [8, 128], strides = [1, 1]} : vector<8x512xf32> to vector<8x128xf32>
    %412 = arith.negf %411 : vector<8x128xf32>
    %413 = math.exp %412 : vector<8x128xf32>
    %cst_126 = arith.constant 1.000000e+00 : f32
    %414 = vector.broadcast %cst_126 : f32 to vector<8x128xf32>
    %415 = arith.addf %414, %413 : vector<8x128xf32>
    %416 = arith.divf %414, %415 : vector<8x128xf32>
    %417 = vector.extract_strided_slice %405 {offsets = [0, 128], sizes = [8, 128], strides = [1, 1]} : vector<8x512xf32> to vector<8x128xf32>
    %418 = arith.negf %417 : vector<8x128xf32>
    %419 = math.exp %418 : vector<8x128xf32>
    %cst_127 = arith.constant 1.000000e+00 : f32
    %420 = vector.broadcast %cst_127 : f32 to vector<8x128xf32>
    %421 = arith.addf %420, %419 : vector<8x128xf32>
    %422 = arith.divf %420, %421 : vector<8x128xf32>
    %423 = vector.extract_strided_slice %405 {offsets = [0, 256], sizes = [8, 128], strides = [1, 1]} : vector<8x512xf32> to vector<8x128xf32>
    %424 = math.tanh %423 : vector<8x128xf32>
    %425 = vector.extract_strided_slice %405 {offsets = [0, 384], sizes = [8, 128], strides = [1, 1]} : vector<8x512xf32> to vector<8x128xf32>
    %426 = arith.negf %425 : vector<8x128xf32>
    %427 = math.exp %426 : vector<8x128xf32>
    %cst_128 = arith.constant 1.000000e+00 : f32
    %428 = vector.broadcast %cst_128 : f32 to vector<8x128xf32>
    %429 = arith.addf %428, %427 : vector<8x128xf32>
    %430 = arith.divf %428, %429 : vector<8x128xf32>
    %431 = arith.mulf %422, %356 : vector<8x128xf32>
    %432 = arith.mulf %416, %424 : vector<8x128xf32>
    %433 = arith.addf %431, %432 : vector<8x128xf32>
    %434 = math.tanh %433 : vector<8x128xf32>
    %435 = arith.mulf %430, %434 : vector<8x128xf32>
    %436 = vector.extract_strided_slice %410 {offsets = [0, 0], sizes = [8, 128], strides = [1, 1]} : vector<8x512xf32> to vector<8x128xf32>
    %437 = arith.negf %436 : vector<8x128xf32>
    %438 = math.exp %437 : vector<8x128xf32>
    %cst_129 = arith.constant 1.000000e+00 : f32
    %439 = vector.broadcast %cst_129 : f32 to vector<8x128xf32>
    %440 = arith.addf %439, %438 : vector<8x128xf32>
    %441 = arith.divf %439, %440 : vector<8x128xf32>
    %442 = vector.extract_strided_slice %410 {offsets = [0, 128], sizes = [8, 128], strides = [1, 1]} : vector<8x512xf32> to vector<8x128xf32>
    %443 = arith.negf %442 : vector<8x128xf32>
    %444 = math.exp %443 : vector<8x128xf32>
    %cst_130 = arith.constant 1.000000e+00 : f32
    %445 = vector.broadcast %cst_130 : f32 to vector<8x128xf32>
    %446 = arith.addf %445, %444 : vector<8x128xf32>
    %447 = arith.divf %445, %446 : vector<8x128xf32>
    %448 = vector.extract_strided_slice %410 {offsets = [0, 256], sizes = [8, 128], strides = [1, 1]} : vector<8x512xf32> to vector<8x128xf32>
    %449 = math.tanh %448 : vector<8x128xf32>
    %450 = vector.extract_strided_slice %410 {offsets = [0, 384], sizes = [8, 128], strides = [1, 1]} : vector<8x512xf32> to vector<8x128xf32>
    %451 = arith.negf %450 : vector<8x128xf32>
    %452 = math.exp %451 : vector<8x128xf32>
    %cst_131 = arith.constant 1.000000e+00 : f32
    %453 = vector.broadcast %cst_131 : f32 to vector<8x128xf32>
    %454 = arith.addf %453, %452 : vector<8x128xf32>
    %455 = arith.divf %453, %454 : vector<8x128xf32>
    %456 = arith.mulf %447, %381 : vector<8x128xf32>
    %457 = arith.mulf %441, %449 : vector<8x128xf32>
    %458 = arith.addf %456, %457 : vector<8x128xf32>
    %459 = math.tanh %458 : vector<8x128xf32>
    %460 = arith.mulf %455, %459 : vector<8x128xf32>
    %461 = vector.broadcast %8 : vector<1x128xf32> to vector<8x128xf32>
    %462 = arith.mulf %435, %461 : vector<8x128xf32>
    %cst_132 = arith.constant dense<0.000000e+00> : vector<8xf32>
    %463 = vector.multi_reduction <add>, %462, %cst_132 [1] : vector<8x128xf32> to vector<8xf32>
    %464 = vector.shape_cast %463 : vector<8xf32> to vector<1x8xf32>
    %465 = arith.index_cast %c5_i32 : i32 to index
    %c0_133 = arith.constant 0 : index
    %466 = vector.load %arg11[%465, %c0_133] : memref<8x8xf32, #tpu.memory_space<vmem>>, vector<1x8xf32>
    tpu.vector_store %arg11[%465, %c0_133], %464 {strides = array<i32>} : memref<8x8xf32, #tpu.memory_space<vmem>>, vector<1x8xf32>,
    %467 = vector.broadcast %9 : vector<1x128xf32> to vector<8x128xf32>
    %468 = arith.mulf %460, %467 : vector<8x128xf32>
    %cst_134 = arith.constant dense<0.000000e+00> : vector<8xf32>
    %469 = vector.multi_reduction <add>, %468, %cst_134 [1] : vector<8x128xf32> to vector<8xf32>
    %470 = vector.shape_cast %469 : vector<8xf32> to vector<1x8xf32>
    %471 = arith.index_cast %396 : i32 to index
    %c0_135 = arith.constant 0 : index
    %472 = vector.load %arg12[%471, %c0_135] : memref<8x8xf32, #tpu.memory_space<vmem>>, vector<1x8xf32>
    tpu.vector_store %arg12[%471, %c0_135], %470 {strides = array<i32>} : memref<8x8xf32, #tpu.memory_space<vmem>>, vector<1x8xf32>,
    %c6_i32 = arith.constant 6 : i32
    %c7_i32_136 = arith.constant 7 : i32
    %473 = arith.subi %c7_i32_136, %c6_i32 : i32
    %c8_i32_137 = arith.constant 8 : i32
    %474 = arith.muli %c6_i32, %c8_i32_137 : i32
    %475 = tpu.assume_multiple %474, 8 : i32
    %c8_i32_138 = arith.constant 8 : i32
    %476 = arith.muli %473, %c8_i32_138 : i32
    %477 = tpu.assume_multiple %476, 8 : i32
    %478 = arith.index_cast %475 : i32 to index
    %c0_139 = arith.constant 0 : index
    %479 = vector.load %arg10[%478, %c0_139] : memref<64x1024xf32, #tpu.memory_space<vmem>>, vector<8x512xf32>
    %c0_140 = arith.constant 0 : index
    %c0_141 = arith.constant 0 : index
    %480 = vector.load %arg3[%c0_140, %c0_141] : memref<128x512xf32, #tpu.memory_space<vmem>>, vector<128x512xf32>
    %cst_142 = arith.constant dense<0.000000e+00> : vector<8x512xf32>
    %481 = tpu.matmul %435, %480, %cst_142 {dimension_numbers = #tpu.dot_dimension_numbers<[1], [0], [0], [1], [0, 0, 1, 1], [], []>} : vector<8x128xf32>, vector<128x512xf32>, vector<8x512xf32> -> vector<8x512xf32>
    %482 = arith.addf %479, %481 : vector<8x512xf32>
    %483 = arith.index_cast %477 : i32 to index
    %c512_143 = arith.constant 512 : index
    %484 = vector.load %arg10[%483, %c512_143] : memref<64x1024xf32, #tpu.memory_space<vmem>>, vector<8x512xf32>
    %c0_144 = arith.constant 0 : index
    %c0_145 = arith.constant 0 : index
    %485 = vector.load %arg4[%c0_144, %c0_145] : memref<128x512xf32, #tpu.memory_space<vmem>>, vector<128x512xf32>
    %cst_146 = arith.constant dense<0.000000e+00> : vector<8x512xf32>
    %486 = tpu.matmul %460, %485, %cst_146 {dimension_numbers = #tpu.dot_dimension_numbers<[1], [0], [0], [1], [0, 0, 1, 1], [], []>} : vector<8x128xf32>, vector<128x512xf32>, vector<8x512xf32> -> vector<8x512xf32>
    %487 = arith.addf %484, %486 : vector<8x512xf32>
    %488 = vector.extract_strided_slice %482 {offsets = [0, 0], sizes = [8, 128], strides = [1, 1]} : vector<8x512xf32> to vector<8x128xf32>
    %489 = arith.negf %488 : vector<8x128xf32>
    %490 = math.exp %489 : vector<8x128xf32>
    %cst_147 = arith.constant 1.000000e+00 : f32
    %491 = vector.broadcast %cst_147 : f32 to vector<8x128xf32>
    %492 = arith.addf %491, %490 : vector<8x128xf32>
    %493 = arith.divf %491, %492 : vector<8x128xf32>
    %494 = vector.extract_strided_slice %482 {offsets = [0, 128], sizes = [8, 128], strides = [1, 1]} : vector<8x512xf32> to vector<8x128xf32>
    %495 = arith.negf %494 : vector<8x128xf32>
    %496 = math.exp %495 : vector<8x128xf32>
    %cst_148 = arith.constant 1.000000e+00 : f32
    %497 = vector.broadcast %cst_148 : f32 to vector<8x128xf32>
    %498 = arith.addf %497, %496 : vector<8x128xf32>
    %499 = arith.divf %497, %498 : vector<8x128xf32>
    %500 = vector.extract_strided_slice %482 {offsets = [0, 256], sizes = [8, 128], strides = [1, 1]} : vector<8x512xf32> to vector<8x128xf32>
    %501 = math.tanh %500 : vector<8x128xf32>
    %502 = vector.extract_strided_slice %482 {offsets = [0, 384], sizes = [8, 128], strides = [1, 1]} : vector<8x512xf32> to vector<8x128xf32>
    %503 = arith.negf %502 : vector<8x128xf32>
    %504 = math.exp %503 : vector<8x128xf32>
    %cst_149 = arith.constant 1.000000e+00 : f32
    %505 = vector.broadcast %cst_149 : f32 to vector<8x128xf32>
    %506 = arith.addf %505, %504 : vector<8x128xf32>
    %507 = arith.divf %505, %506 : vector<8x128xf32>
    %508 = arith.mulf %499, %433 : vector<8x128xf32>
    %509 = arith.mulf %493, %501 : vector<8x128xf32>
    %510 = arith.addf %508, %509 : vector<8x128xf32>
    %511 = math.tanh %510 : vector<8x128xf32>
    %512 = arith.mulf %507, %511 : vector<8x128xf32>
    %513 = vector.extract_strided_slice %487 {offsets = [0, 0], sizes = [8, 128], strides = [1, 1]} : vector<8x512xf32> to vector<8x128xf32>
    %514 = arith.negf %513 : vector<8x128xf32>
    %515 = math.exp %514 : vector<8x128xf32>
    %cst_150 = arith.constant 1.000000e+00 : f32
    %516 = vector.broadcast %cst_150 : f32 to vector<8x128xf32>
    %517 = arith.addf %516, %515 : vector<8x128xf32>
    %518 = arith.divf %516, %517 : vector<8x128xf32>
    %519 = vector.extract_strided_slice %487 {offsets = [0, 128], sizes = [8, 128], strides = [1, 1]} : vector<8x512xf32> to vector<8x128xf32>
    %520 = arith.negf %519 : vector<8x128xf32>
    %521 = math.exp %520 : vector<8x128xf32>
    %cst_151 = arith.constant 1.000000e+00 : f32
    %522 = vector.broadcast %cst_151 : f32 to vector<8x128xf32>
    %523 = arith.addf %522, %521 : vector<8x128xf32>
    %524 = arith.divf %522, %523 : vector<8x128xf32>
    %525 = vector.extract_strided_slice %487 {offsets = [0, 256], sizes = [8, 128], strides = [1, 1]} : vector<8x512xf32> to vector<8x128xf32>
    %526 = math.tanh %525 : vector<8x128xf32>
    %527 = vector.extract_strided_slice %487 {offsets = [0, 384], sizes = [8, 128], strides = [1, 1]} : vector<8x512xf32> to vector<8x128xf32>
    %528 = arith.negf %527 : vector<8x128xf32>
    %529 = math.exp %528 : vector<8x128xf32>
    %cst_152 = arith.constant 1.000000e+00 : f32
    %530 = vector.broadcast %cst_152 : f32 to vector<8x128xf32>
    %531 = arith.addf %530, %529 : vector<8x128xf32>
    %532 = arith.divf %530, %531 : vector<8x128xf32>
    %533 = arith.mulf %524, %458 : vector<8x128xf32>
    %534 = arith.mulf %518, %526 : vector<8x128xf32>
    %535 = arith.addf %533, %534 : vector<8x128xf32>
    %536 = math.tanh %535 : vector<8x128xf32>
    %537 = arith.mulf %532, %536 : vector<8x128xf32>
    %538 = vector.broadcast %8 : vector<1x128xf32> to vector<8x128xf32>
    %539 = arith.mulf %512, %538 : vector<8x128xf32>
    %cst_153 = arith.constant dense<0.000000e+00> : vector<8xf32>
    %540 = vector.multi_reduction <add>, %539, %cst_153 [1] : vector<8x128xf32> to vector<8xf32>
    %541 = vector.shape_cast %540 : vector<8xf32> to vector<1x8xf32>
    %542 = arith.index_cast %c6_i32 : i32 to index
    %c0_154 = arith.constant 0 : index
    %543 = vector.load %arg11[%542, %c0_154] : memref<8x8xf32, #tpu.memory_space<vmem>>, vector<1x8xf32>
    tpu.vector_store %arg11[%542, %c0_154], %541 {strides = array<i32>} : memref<8x8xf32, #tpu.memory_space<vmem>>, vector<1x8xf32>,
    %544 = vector.broadcast %9 : vector<1x128xf32> to vector<8x128xf32>
    %545 = arith.mulf %537, %544 : vector<8x128xf32>
    %cst_155 = arith.constant dense<0.000000e+00> : vector<8xf32>
    %546 = vector.multi_reduction <add>, %545, %cst_155 [1] : vector<8x128xf32> to vector<8xf32>
    %547 = vector.shape_cast %546 : vector<8xf32> to vector<1x8xf32>
    %548 = arith.index_cast %473 : i32 to index
    %c0_156 = arith.constant 0 : index
    %549 = vector.load %arg12[%548, %c0_156] : memref<8x8xf32, #tpu.memory_space<vmem>>, vector<1x8xf32>
    tpu.vector_store %arg12[%548, %c0_156], %547 {strides = array<i32>} : memref<8x8xf32, #tpu.memory_space<vmem>>, vector<1x8xf32>,
    %c7_i32_157 = arith.constant 7 : i32
    %c7_i32_158 = arith.constant 7 : i32
    %550 = arith.subi %c7_i32_158, %c7_i32_157 : i32
    %c8_i32_159 = arith.constant 8 : i32
    %551 = arith.muli %c7_i32_157, %c8_i32_159 : i32
    %552 = tpu.assume_multiple %551, 8 : i32
    %c8_i32_160 = arith.constant 8 : i32
    %553 = arith.muli %550, %c8_i32_160 : i32
    %554 = tpu.assume_multiple %553, 8 : i32
    %555 = arith.index_cast %552 : i32 to index
    %c0_161 = arith.constant 0 : index
    %556 = vector.load %arg10[%555, %c0_161] : memref<64x1024xf32, #tpu.memory_space<vmem>>, vector<8x512xf32>
    %c0_162 = arith.constant 0 : index
    %c0_163 = arith.constant 0 : index
    %557 = vector.load %arg3[%c0_162, %c0_163] : memref<128x512xf32, #tpu.memory_space<vmem>>, vector<128x512xf32>
    %cst_164 = arith.constant dense<0.000000e+00> : vector<8x512xf32>
    %558 = tpu.matmul %512, %557, %cst_164 {dimension_numbers = #tpu.dot_dimension_numbers<[1], [0], [0], [1], [0, 0, 1, 1], [], []>} : vector<8x128xf32>, vector<128x512xf32>, vector<8x512xf32> -> vector<8x512xf32>
    %559 = arith.addf %556, %558 : vector<8x512xf32>
    %560 = arith.index_cast %554 : i32 to index
    %c512_165 = arith.constant 512 : index
    %561 = vector.load %arg10[%560, %c512_165] : memref<64x1024xf32, #tpu.memory_space<vmem>>, vector<8x512xf32>
    %c0_166 = arith.constant 0 : index
    %c0_167 = arith.constant 0 : index
    %562 = vector.load %arg4[%c0_166, %c0_167] : memref<128x512xf32, #tpu.memory_space<vmem>>, vector<128x512xf32>
    %cst_168 = arith.constant dense<0.000000e+00> : vector<8x512xf32>
    %563 = tpu.matmul %537, %562, %cst_168 {dimension_numbers = #tpu.dot_dimension_numbers<[1], [0], [0], [1], [0, 0, 1, 1], [], []>} : vector<8x128xf32>, vector<128x512xf32>, vector<8x512xf32> -> vector<8x512xf32>
    %564 = arith.addf %561, %563 : vector<8x512xf32>
    %565 = vector.extract_strided_slice %559 {offsets = [0, 0], sizes = [8, 128], strides = [1, 1]} : vector<8x512xf32> to vector<8x128xf32>
    %566 = arith.negf %565 : vector<8x128xf32>
    %567 = math.exp %566 : vector<8x128xf32>
    %cst_169 = arith.constant 1.000000e+00 : f32
    %568 = vector.broadcast %cst_169 : f32 to vector<8x128xf32>
    %569 = arith.addf %568, %567 : vector<8x128xf32>
    %570 = arith.divf %568, %569 : vector<8x128xf32>
    %571 = vector.extract_strided_slice %559 {offsets = [0, 128], sizes = [8, 128], strides = [1, 1]} : vector<8x512xf32> to vector<8x128xf32>
    %572 = arith.negf %571 : vector<8x128xf32>
    %573 = math.exp %572 : vector<8x128xf32>
    %cst_170 = arith.constant 1.000000e+00 : f32
    %574 = vector.broadcast %cst_170 : f32 to vector<8x128xf32>
    %575 = arith.addf %574, %573 : vector<8x128xf32>
    %576 = arith.divf %574, %575 : vector<8x128xf32>
    %577 = vector.extract_strided_slice %559 {offsets = [0, 256], sizes = [8, 128], strides = [1, 1]} : vector<8x512xf32> to vector<8x128xf32>
    %578 = math.tanh %577 : vector<8x128xf32>
    %579 = vector.extract_strided_slice %559 {offsets = [0, 384], sizes = [8, 128], strides = [1, 1]} : vector<8x512xf32> to vector<8x128xf32>
    %580 = arith.negf %579 : vector<8x128xf32>
    %581 = math.exp %580 : vector<8x128xf32>
    %cst_171 = arith.constant 1.000000e+00 : f32
    %582 = vector.broadcast %cst_171 : f32 to vector<8x128xf32>
    %583 = arith.addf %582, %581 : vector<8x128xf32>
    %584 = arith.divf %582, %583 : vector<8x128xf32>
    %585 = arith.mulf %576, %510 : vector<8x128xf32>
    %586 = arith.mulf %570, %578 : vector<8x128xf32>
    %587 = arith.addf %585, %586 : vector<8x128xf32>
    %588 = math.tanh %587 : vector<8x128xf32>
    %589 = arith.mulf %584, %588 : vector<8x128xf32>
    %590 = vector.extract_strided_slice %564 {offsets = [0, 0], sizes = [8, 128], strides = [1, 1]} : vector<8x512xf32> to vector<8x128xf32>
    %591 = arith.negf %590 : vector<8x128xf32>
    %592 = math.exp %591 : vector<8x128xf32>
    %cst_172 = arith.constant 1.000000e+00 : f32
    %593 = vector.broadcast %cst_172 : f32 to vector<8x128xf32>
    %594 = arith.addf %593, %592 : vector<8x128xf32>
    %595 = arith.divf %593, %594 : vector<8x128xf32>
    %596 = vector.extract_strided_slice %564 {offsets = [0, 128], sizes = [8, 128], strides = [1, 1]} : vector<8x512xf32> to vector<8x128xf32>
    %597 = arith.negf %596 : vector<8x128xf32>
    %598 = math.exp %597 : vector<8x128xf32>
    %cst_173 = arith.constant 1.000000e+00 : f32
    %599 = vector.broadcast %cst_173 : f32 to vector<8x128xf32>
    %600 = arith.addf %599, %598 : vector<8x128xf32>
    %601 = arith.divf %599, %600 : vector<8x128xf32>
    %602 = vector.extract_strided_slice %564 {offsets = [0, 256], sizes = [8, 128], strides = [1, 1]} : vector<8x512xf32> to vector<8x128xf32>
    %603 = math.tanh %602 : vector<8x128xf32>
    %604 = vector.extract_strided_slice %564 {offsets = [0, 384], sizes = [8, 128], strides = [1, 1]} : vector<8x512xf32> to vector<8x128xf32>
    %605 = arith.negf %604 : vector<8x128xf32>
    %606 = math.exp %605 : vector<8x128xf32>
    %cst_174 = arith.constant 1.000000e+00 : f32
    %607 = vector.broadcast %cst_174 : f32 to vector<8x128xf32>
    %608 = arith.addf %607, %606 : vector<8x128xf32>
    %609 = arith.divf %607, %608 : vector<8x128xf32>
    %610 = arith.mulf %601, %535 : vector<8x128xf32>
    %611 = arith.mulf %595, %603 : vector<8x128xf32>
    %612 = arith.addf %610, %611 : vector<8x128xf32>
    %613 = math.tanh %612 : vector<8x128xf32>
    %614 = arith.mulf %609, %613 : vector<8x128xf32>
    %615 = vector.broadcast %8 : vector<1x128xf32> to vector<8x128xf32>
    %616 = arith.mulf %589, %615 : vector<8x128xf32>
    %cst_175 = arith.constant dense<0.000000e+00> : vector<8xf32>
    %617 = vector.multi_reduction <add>, %616, %cst_175 [1] : vector<8x128xf32> to vector<8xf32>
    %618 = vector.shape_cast %617 : vector<8xf32> to vector<1x8xf32>
    %619 = arith.index_cast %c7_i32_157 : i32 to index
    %c0_176 = arith.constant 0 : index
    %620 = vector.load %arg11[%619, %c0_176] : memref<8x8xf32, #tpu.memory_space<vmem>>, vector<1x8xf32>
    tpu.vector_store %arg11[%619, %c0_176], %618 {strides = array<i32>} : memref<8x8xf32, #tpu.memory_space<vmem>>, vector<1x8xf32>,
    %621 = vector.broadcast %9 : vector<1x128xf32> to vector<8x128xf32>
    %622 = arith.mulf %614, %621 : vector<8x128xf32>
    %cst_177 = arith.constant dense<0.000000e+00> : vector<8xf32>
    %623 = vector.multi_reduction <add>, %622, %cst_177 [1] : vector<8x128xf32> to vector<8xf32>
    %624 = vector.shape_cast %623 : vector<8xf32> to vector<1x8xf32>
    %625 = arith.index_cast %550 : i32 to index
    %c0_178 = arith.constant 0 : index
    %626 = vector.load %arg12[%625, %c0_178] : memref<8x8xf32, #tpu.memory_space<vmem>>, vector<1x8xf32>
    tpu.vector_store %arg12[%625, %c0_178], %624 {strides = array<i32>} : memref<8x8xf32, #tpu.memory_space<vmem>>, vector<1x8xf32>,
    %c8_i32_179 = arith.constant 8 : i32
    %c0_180 = arith.constant 0 : index
    %c0_181 = arith.constant 0 : index
    %627 = vector.load %arg11[%c0_180, %c0_181] : memref<8x8xf32, #tpu.memory_space<vmem>>, vector<8x8xf32>
    %c0_182 = arith.constant 0 : index
    %c0_183 = arith.constant 0 : index
    %628 = vector.load %arg12[%c0_182, %c0_183] : memref<8x8xf32, #tpu.memory_space<vmem>>, vector<8x8xf32>
    %629 = arith.addf %627, %628 : vector<8x8xf32>
    %c0_184 = arith.constant 0 : index
    %c0_185 = arith.constant 0 : index
    %630 = vector.load %arg8[%c0_184, %c0_185] : memref<1x1xf32, #tpu.memory_space<vmem>>, vector<1x1xf32>
    %631 = vector.broadcast %630 : vector<1x1xf32> to vector<8x8xf32>
    %632 = arith.addf %629, %631 : vector<8x8xf32>
    %c0_186 = arith.constant 0 : index
    %c0_187 = arith.constant 0 : index
    %c0_188 = arith.constant 0 : index
    %633 = vector.load %arg9[%c0_186, %c0_187, %c0_188] : memref<1x8x8xf32, #tpu.memory_space<vmem>>, vector<1x8x8xf32>
    %634 = vector.shape_cast %633 : vector<1x8x8xf32> to vector<8x8xf32>
    %635 = vector.shape_cast %632 : vector<8x8xf32> to vector<1x8x8xf32>
    tpu.vector_store %arg9[%c0_186, %c0_187, %c0_188], %635 {strides = array<i32>} : memref<1x8x8xf32, #tpu.memory_space<vmem>>, vector<1x8x8xf32>,
    return
  }
  func.func @transform_0(%arg0: i32) -> (i32, i32, i32) {
    %c0_i32 = arith.constant 0 : i32
    %c0_i32_0 = arith.constant 0 : i32
    %c0_i32_1 = arith.constant 0 : i32
    return %arg0, %c0_i32, %c0_i32_0 : i32, i32, i32
  }
  func.func @transform_1(%arg0: i32) -> (i32, i32) {
    %c0_i32 = arith.constant 0 : i32
    %c0_i32_0 = arith.constant 0 : i32
    %c0_i32_1 = arith.constant 0 : i32
    return %c0_i32, %c0_i32_0 : i32, i32
  }
  func.func @transform_2(%arg0: i32) -> (i32, i32) {
    %c0_i32 = arith.constant 0 : i32
    %c0_i32_0 = arith.constant 0 : i32
    %c0_i32_1 = arith.constant 0 : i32
    return %c0_i32, %c0_i32_0 : i32, i32
  }
  func.func @transform_3(%arg0: i32) -> (i32, i32) {
    %c0_i32 = arith.constant 0 : i32
    %c0_i32_0 = arith.constant 0 : i32
    %c0_i32_1 = arith.constant 0 : i32
    return %c0_i32, %c0_i32_0 : i32, i32
  }
  func.func @transform_4(%arg0: i32) -> (i32, i32) {
    %c0_i32 = arith.constant 0 : i32
    %c0_i32_0 = arith.constant 0 : i32
    %c0_i32_1 = arith.constant 0 : i32
    return %c0_i32, %c0_i32_0 : i32, i32
  }
  func.func @transform_5(%arg0: i32) -> (i32, i32) {
    %c0_i32 = arith.constant 0 : i32
    %c0_i32_0 = arith.constant 0 : i32
    %c0_i32_1 = arith.constant 0 : i32
    return %c0_i32, %c0_i32_0 : i32, i32
  }
  func.func @transform_6(%arg0: i32) -> (i32, i32) {
    %c0_i32 = arith.constant 0 : i32
    %c0_i32_0 = arith.constant 0 : i32
    %c0_i32_1 = arith.constant 0 : i32
    return %c0_i32, %c0_i32_0 : i32, i32
  }
  func.func @transform_7(%arg0: i32) -> (i32, i32) {
    %c0_i32 = arith.constant 0 : i32
    %c0_i32_0 = arith.constant 0 : i32
    %c0_i32_1 = arith.constant 0 : i32
    return %c0_i32, %c0_i32_0 : i32, i32
  }
  func.func @transform_8(%arg0: i32) -> (i32, i32, i32) {
    %c0_i32 = arith.constant 0 : i32
    %c0_i32_0 = arith.constant 0 : i32
    %c0_i32_1 = arith.constant 0 : i32
    return %arg0, %c0_i32, %c0_i32_0 : i32, i32, i32
  }
}

</mosaic_0001>

<llo_original>
// kernel: tpu_custom_call.1
$region0: #{tpu_custom_call.1}
  #allocation0 [shape = 'u32[]', space=smem, size = 0x4, offset = 0x4, fixed_abs, tag = 'smem constant byte address 0x4 - core index']
  #allocation1 [shape = 'u32[72,128]{1,0:T(1,128)}', space=vmem, size = 0x9000, scoped, tag = 'internal scratch']
  #allocation2 [shape = 'f32[64,1024]{1,0:T(8,128)}', space=vmem, size = 0x40000, scoped, tag = 'scratch operand']
  #allocation3 [shape = 'f32[8,8]{1,0:T(8,128)}', space=vmem, size = 0x1000, scoped, tag = 'scratch operand']
  #allocation4 [shape = 'f32[8,8]{1,0:T(8,128)}', space=vmem, size = 0x1000, scoped, tag = 'scratch operand']
  #allocation5 [shape = 'f32[1,1]{1,0:T(1,128)S(1)}', space=vmem, size = 0x200, scoped, tag = 'scoped memory for tpu_custom_call.1']
  %s0 = inlined_call_operand.vmem [shape: f32[1,64,16], index: 0, kind: input, shape index: {}]
  %s1 = inlined_call_operand.hbm [shape: f32[16,1024], index: 1, kind: input, shape index: {}]
  %s2 = inlined_call_operand.hbm [shape: f32[128,512], index: 2, kind: input, shape index: {}]
  %s3 = inlined_call_operand.hbm [shape: f32[128,512], index: 3, kind: input, shape index: {}]
  %s4 = inlined_call_operand.vmem [shape: f32[1,1024], index: 4, kind: input, shape index: {}]
  %s5 = inlined_call_operand.vmem [shape: f32[1,128], index: 5, kind: input, shape index: {}]
  %s6 = inlined_call_operand.vmem [shape: f32[1,128], index: 6, kind: input, shape index: {}]
  %s7 = inlined_call_operand.<no memory space> [shape: f32[1,1], index: 7, kind: input, shape index: {}]
  %s8 = inlined_call_operand.hbm [shape: f32[1,8,8], index: 8, kind: output, shape index: {}]
  %s9 = sld [smem:[#allocation0]]
  $region54: #{tpu_custom_call.1} parent=0
    _
  %s11 = ssub.s32 1, %s9
  %s12 = scalar_select 0, %s11, %s9
  %v13 = vstv %s7
  %14 = vst [vmem:[#allocation5] sm:$0x1] %v13
  $region1: #{tpu_custom_call.1} parent=0
    #allocation6 [shape = 'u8[65536]{0}', space=vmem, size = 0x10000, scoped, tag = 'input window, operand 1, single buffered']
    #allocation7 [shape = 's32[1]{0}', space=sflag, size = 0x4, scoped, tag = 'scoped memory for tpu_custom_call.1']
    #allocation8 [shape = 's32[1]{0}', space=sflag, size = 0x4, scoped, tag = 'scoped memory for tpu_custom_call.1']
    #allocation9 [shape = 'u8[262144]{0}', space=vmem, size = 0x40000, scoped, tag = 'input window, operand 2, single buffered']
    #allocation10 [shape = 's32[1]{0}', space=sflag, size = 0x4, scoped, tag = 'scoped memory for tpu_custom_call.1']
    #allocation11 [shape = 'u8[262144]{0}', space=vmem, size = 0x40000, scoped, tag = 'input window, operand 3, single buffered']
    #allocation12 [shape = 'u8[4096]{0}', space=vmem, size = 0x1000, scoped, tag = 'output window, operand 0, single buffered']
    %15 = vsyncpa [#allocation7], 0
    %16 = vsyncpa [#allocation10], 0
    %17 = vsyncpa [#allocation8], 0
    // Predicated region
    $region2: #{tpu_custom_call.1} parent=1 // pred_check
      _
    $region3: #{tpu_custom_call.1} parent=1 // pred_check_branch
      %19 = sbr.rel (0) target = $region5
    $region4: #{tpu_custom_call.1} parent=1 // pred_region
      _
    $region5: #{tpu_custom_call.1} parent=1 // pred_fallthru
      _
    // Predicated region
    $region6: #{tpu_custom_call.1} parent=1 // pred_check
      _
    $region7: #{tpu_custom_call.1} parent=1 // pred_check_branch
      %21 = sbr.rel (0) target = $region9
    $region8: #{tpu_custom_call.1} parent=1 // pred_region
      %23 = vsyncadd [#allocation7], 0
      %s24 = sshll.u32 %s1, 4
      %s25 = int_to_ptr.hbm [resolvable:$true] %s24
      %s26 = sshll.u32 [#allocation6], 4
      %s27 = int_to_ptr.vmem [resolvable:$true] %s26
      %32 = dma.hbm_to_vmem [thread:$0]  %s25, 2048, %s27, [#allocation7], 1024, 1024, 64
    $region9: #{tpu_custom_call.1} parent=1 // pred_fallthru
      _
    // Predicated region
    $region10: #{tpu_custom_call.1} parent=1 // pred_check
      _
    $region11: #{tpu_custom_call.1} parent=1 // pred_check_branch
      %34 = sbr.rel (0) target = $region13
    $region12: #{tpu_custom_call.1} parent=1 // pred_region
      %36 = vsyncadd [#allocation10], 0
      %s37 = sshll.u32 %s2, 4
      %s38 = int_to_ptr.hbm [resolvable:$true] %s37
      %s39 = sshll.u32 [#allocation9], 4
      %s40 = int_to_ptr.vmem [resolvable:$true] %s39
      %45 = dma.hbm_to_vmem [thread:$0]  %s38, 8192, %s40, [#allocation10], 512, 512, 32
    $region13: #{tpu_custom_call.1} parent=1 // pred_fallthru
      _
    // Predicated region
    $region14: #{tpu_custom_call.1} parent=1 // pred_check
      _
    $region15: #{tpu_custom_call.1} parent=1 // pred_check_branch
      %47 = sbr.rel (0) target = $region17
    $region16: #{tpu_custom_call.1} parent=1 // pred_region
      %49 = vsyncadd [#allocation10], 0
      %s50 = sshll.u32 %s3, 4
      %s51 = int_to_ptr.hbm [resolvable:$true] %s50
      %s52 = sshll.u32 [#allocation11], 4
      %s53 = int_to_ptr.vmem [resolvable:$true] %s52
      %58 = dma.hbm_to_vmem [thread:$0]  %s51, 8192, %s53, [#allocation10], 512, 512, 32
    $region17: #{tpu_custom_call.1} parent=1 // pred_fallthru
      _
    // Predicated region
    $region18: #{tpu_custom_call.1} parent=1 // pred_check
      _
    $region19: #{tpu_custom_call.1} parent=1 // pred_check_branch
      %60 = sbr.rel (0) target = $region21
    $region20: #{tpu_custom_call.1} parent=1 // pred_region
      _
    $region21: #{tpu_custom_call.1} parent=1 // pred_fallthru
      _
    // Predicated region
    $region22: #{tpu_custom_call.1} parent=1 // pred_check
      _
    $region23: #{tpu_custom_call.1} parent=1 // pred_check_branch
      %62 = sbr.rel (0) target = $region25
    $region24: #{tpu_custom_call.1} parent=1 // pred_region
      _
    $region25: #{tpu_custom_call.1} parent=1 // pred_fallthru
      _
    // Predicated region
    $region26: #{tpu_custom_call.1} parent=1 // pred_check
      _
    $region27: #{tpu_custom_call.1} parent=1 // pred_check_branch
      %64 = sbr.rel (0) target = $region29
    $region28: #{tpu_custom_call.1} parent=1 // pred_region
      _
    $region29: #{tpu_custom_call.1} parent=1 // pred_fallthru
      _
    // Predicated region
    $region30: #{tpu_custom_call.1} parent=1 // pred_check
      _
    $region31: #{tpu_custom_call.1} parent=1 // pred_check_branch
      %66 = sbr.rel (0) target = $region33
    $region32: #{tpu_custom_call.1} parent=1 // pred_region
      _
    $region33: #{tpu_custom_call.1} parent=1 // pred_fallthru
      _
    // Predicated region
    $region34: #{tpu_custom_call.1} parent=1 // pred_check
      _
    $region35: #{tpu_custom_call.1} parent=1 // pred_check_branch
      %68 = sbr.rel (0) target = $region37
    $region36: #{tpu_custom_call.1} parent=1 // pred_region
      %70 = dma.done [#allocation7], 2048
    $region37: #{tpu_custom_call.1} parent=1 // pred_fallthru
      _
    // Predicated region
    $region38: #{tpu_custom_call.1} parent=1 // pred_check
      _
    $region39: #{tpu_custom_call.1} parent=1 // pred_check_branch
      %72 = sbr.rel (0) target = $region41
    $region40: #{tpu_custom_call.1} parent=1 // pred_region
      %74 = dma.done [#allocation10], 8192
    $region41: #{tpu_custom_call.1} parent=1 // pred_fallthru
      _
    // Predicated region
    $region42: #{tpu_custom_call.1} parent=1 // pred_check
      _
    $region43: #{tpu_custom_call.1} parent=1 // pred_check_branch
      %76 = sbr.rel (0) target = $region45
    $region44: #{tpu_custom_call.1} parent=1 // pred_region
      %78 = dma.done [#allocation10], 8192
    $region45: #{tpu_custom_call.1} parent=1 // pred_fallthru
      _
    %v79 = vld [vmem:[%s0] sm:$0xff]
    %v80 = vld [vmem:[%s0 + $0x8] sm:$0xff]
    %v81 = vld [vmem:[%s0 + $0x10] sm:$0xff]
    %v82 = vld [vmem:[%s0 + $0x18] sm:$0xff]
    %v83 = vld [vmem:[%s0 + $0x20] sm:$0xff]
    %v84 = vld [vmem:[%s0 + $0x28] sm:$0xff]
    %v85 = vld [vmem:[%s0 + $0x30] sm:$0xff]
    %v86 = vld [vmem:[%s0 + $0x38] sm:$0xff]
    %v87 = vld [vmem:[#allocation6] sm:$0xff]
    %v88 = vld [vmem:[#allocation6 + $0x8] sm:$0xff]
    %v89 = vld [vmem:[#allocation6 + $0x10] sm:$0xff]
    %v90 = vld [vmem:[#allocation6 + $0x18] sm:$0xff]
    %v91 = vld [vmem:[#allocation6 + $0x20] sm:$0xff]
    %v92 = vld [vmem:[#allocation6 + $0x28] sm:$0xff]
    %v93 = vld [vmem:[#allocation6 + $0x30] sm:$0xff]
    %v94 = vld [vmem:[#allocation6 + $0x38] sm:$0xff]
    %v95 = vld [vmem:[#allocation6 + $0x40] sm:$0xff]
    %v96 = vld [vmem:[#allocation6 + $0x48] sm:$0xff]
    %v97 = vld [vmem:[#allocation6 + $0x50] sm:$0xff]
    %v98 = vld [vmem:[#allocation6 + $0x58] sm:$0xff]
    %v99 = vld [vmem:[#allocation6 + $0x60] sm:$0xff]
    %v100 = vld [vmem:[#allocation6 + $0x68] sm:$0xff]
    %v101 = vld [vmem:[#allocation6 + $0x70] sm:$0xff]
    %v102 = vld [vmem:[#allocation6 + $0x78] sm:$0xff]
    %v103 = vld [vmem:[%s4] sm:$0xff]
    %v105 = vperm.slane %v103, 0
    %v106 = vperm.slane %v103, 1
    %v107 = vperm.slane %v103, 2
    %v108 = vperm.slane %v103, 3
    %v109 = vperm.slane %v103, 4
    %v110 = vperm.slane %v103, 5
    %v111 = vperm.slane %v103, 6
    %v112 = vperm.slane %v103, 7
    %vm121 = vcmask 130048
    %v123 = vsel %vm121, %v79, 0
    %v126 = vsel %vm121, %v80, 0
    %v129 = vsel %vm121, %v81, 0
    %v132 = vsel %vm121, %v82, 0
    %v135 = vsel %vm121, %v83, 0
    %v138 = vsel %vm121, %v84, 0
    %v141 = vsel %vm121, %v85, 0
    %v144 = vsel %vm121, %v86, 0
    %146 = vmatpush.msra.mxu0 0.0
    %147 = vmatpush.msra.mxu0 0.0
    %148 = vmatpush.msra.mxu0 0.0
    %149 = vmatpush.msra.mxu0 0.0
    %150 = vmatpush.msra.mxu0 0.0
    %151 = vmatpush.msra.mxu0 0.0
    %152 = vmatpush.msra.mxu0 0.0
    %153 = vmatpush.msra.mxu0 0.0
    %154 = vmatpush.msra.mxu0 0.0
    %155 = vmatpush.msra.mxu0 0.0
    %156 = vmatpush.msra.mxu0 0.0
    %157 = vmatpush.msra.mxu0 0.0
    %158 = vmatpush.msra.mxu0 0.0
    %159 = vmatpush.msra.mxu0 0.0
    %160 = vmatpush.msra.mxu0 %v95
    %161 = vmatpush.msra.mxu0 %v87
    %162 = vmatmul.f32.gmra.mxu0 %v123
    %v163 = vpop.f32.mrf.mxu0
    %v164 = vadd.f32 %v105, %v163
    %165 = vmatmul.f32.gmra.mxu0 %v126
    %v166 = vpop.f32.mrf.mxu0
    %v167 = vadd.f32 %v105, %v166
    %168 = vmatmul.f32.gmra.mxu0 %v129
    %v169 = vpop.f32.mrf.mxu0
    %v170 = vadd.f32 %v105, %v169
    %171 = vmatmul.f32.gmra.mxu0 %v132
    %v172 = vpop.f32.mrf.mxu0
    %v173 = vadd.f32 %v105, %v172
    %174 = vmatmul.f32.gmra.mxu0 %v135
    %v175 = vpop.f32.mrf.mxu0
    %v176 = vadd.f32 %v105, %v175
    %177 = vmatmul.f32.gmra.mxu0 %v138
    %v178 = vpop.f32.mrf.mxu0
    %v179 = vadd.f32 %v105, %v178
    %180 = vmatmul.f32.gmra.mxu0 %v141
    %v181 = vpop.f32.mrf.mxu0
    %v182 = vadd.f32 %v105, %v181
    %183 = vmatmul.f32.gmra.mxu0 %v144
    %v184 = vpop.f32.mrf.mxu0
    %v185 = vadd.f32 %v105, %v184
    %186 = vdwg.mxu0
    %187 = vmatpush.msra.mxu0 0.0
    %188 = vmatpush.msra.mxu0 0.0
    %189 = vmatpush.msra.mxu0 0.0
    %190 = vmatpush.msra.mxu0 0.0
    %191 = vmatpush.msra.mxu0 0.0
    %192 = vmatpush.msra.mxu0 0.0
    %193 = vmatpush.msra.mxu0 0.0
    %194 = vmatpush.msra.mxu0 0.0
    %195 = vmatpush.msra.mxu0 0.0
    %196 = vmatpush.msra.mxu0 0.0
    %197 = vmatpush.msra.mxu0 0.0
    %198 = vmatpush.msra.mxu0 0.0
    %199 = vmatpush.msra.mxu0 0.0
    %200 = vmatpush.msra.mxu0 0.0
    %201 = vmatpush.msra.mxu0 %v96
    %202 = vmatpush.msra.mxu0 %v88
    %203 = vmatmul.f32.gmra.mxu0 %v123
    %v204 = vpop.f32.mrf.mxu0
    %v205 = vadd.f32 %v106, %v204
    %206 = vmatmul.f32.gmra.mxu0 %v126
    %v207 = vpop.f32.mrf.mxu0
    %v208 = vadd.f32 %v106, %v207
    %209 = vmatmul.f32.gmra.mxu0 %v129
    %v210 = vpop.f32.mrf.mxu0
    %v211 = vadd.f32 %v106, %v210
    %212 = vmatmul.f32.gmra.mxu0 %v132
    %v213 = vpop.f32.mrf.mxu0
    %v214 = vadd.f32 %v106, %v213
    %215 = vmatmul.f32.gmra.mxu0 %v135
    %v216 = vpop.f32.mrf.mxu0
    %v217 = vadd.f32 %v106, %v216
    %218 = vmatmul.f32.gmra.mxu0 %v138
    %v219 = vpop.f32.mrf.mxu0
    %v220 = vadd.f32 %v106, %v219
    %221 = vmatmul.f32.gmra.mxu0 %v141
    %v222 = vpop.f32.mrf.mxu0
    %v223 = vadd.f32 %v106, %v222
    %224 = vmatmul.f32.gmra.mxu0 %v144
    %v225 = vpop.f32.mrf.mxu0
    %v226 = vadd.f32 %v106, %v225
    %227 = vdwg.mxu0
    %228 = vmatpush.msra.mxu0 0.0
    %229 = vmatpush.msra.mxu0 0.0
    %230 = vmatpush.msra.mxu0 0.0
    %231 = vmatpush.msra.mxu0 0.0
    %232 = vmatpush.msra.mxu0 0.0
    %233 = vmatpush.msra.mxu0 0.0
    %234 = vmatpush.msra.mxu0 0.0
    %235 = vmatpush.msra.mxu0 0.0
    %236 = vmatpush.msra.mxu0 0.0
    %237 = vmatpush.msra.mxu0 0.0
    %238 = vmatpush.msra.mxu0 0.0
    %239 = vmatpush.msra.mxu0 0.0
    %240 = vmatpush.msra.mxu0 0.0
    %241 = vmatpush.msra.mxu0 0.0
    %242 = vmatpush.msra.mxu0 %v97
    %243 = vmatpush.msra.mxu0 %v89
    %244 = vmatmul.f32.gmra.mxu0 %v123
    %v245 = vpop.f32.mrf.mxu0
    %v246 = vadd.f32 %v107, %v245
    %247 = vmatmul.f32.gmra.mxu0 %v126
    %v248 = vpop.f32.mrf.mxu0
    %v249 = vadd.f32 %v107, %v248
    %250 = vmatmul.f32.gmra.mxu0 %v129
    %v251 = vpop.f32.mrf.mxu0
    %v252 = vadd.f32 %v107, %v251
    %253 = vmatmul.f32.gmra.mxu0 %v132
    %v254 = vpop.f32.mrf.mxu0
    %v255 = vadd.f32 %v107, %v254
    %256 = vmatmul.f32.gmra.mxu0 %v135
    %v257 = vpop.f32.mrf.mxu0
    %v258 = vadd.f32 %v107, %v257
    %259 = vmatmul.f32.gmra.mxu0 %v138
    %v260 = vpop.f32.mrf.mxu0
    %v261 = vadd.f32 %v107, %v260
    %262 = vmatmul.f32.gmra.mxu0 %v141
    %v263 = vpop.f32.mrf.mxu0
    %v264 = vadd.f32 %v107, %v263
    %265 = vmatmul.f32.gmra.mxu0 %v144
    %v266 = vpop.f32.mrf.mxu0
    %v267 = vadd.f32 %v107, %v266
    %268 = vdwg.mxu0
    %269 = vmatpush.msra.mxu0 0.0
    %270 = vmatpush.msra.mxu0 0.0
    %271 = vmatpush.msra.mxu0 0.0
    %272 = vmatpush.msra.mxu0 0.0
    %273 = vmatpush.msra.mxu0 0.0
    %274 = vmatpush.msra.mxu0 0.0
    %275 = vmatpush.msra.mxu0 0.0
    %276 = vmatpush.msra.mxu0 0.0
    %277 = vmatpush.msra.mxu0 0.0
    %278 = vmatpush.msra.mxu0 0.0
    %279 = vmatpush.msra.mxu0 0.0
    %280 = vmatpush.msra.mxu0 0.0
    %281 = vmatpush.msra.mxu0 0.0
    %282 = vmatpush.msra.mxu0 0.0
    %283 = vmatpush.msra.mxu0 %v98
    %284 = vmatpush.msra.mxu0 %v90
    %285 = vmatmul.f32.gmra.mxu0 %v123
    %v286 = vpop.f32.mrf.mxu0
    %v287 = vadd.f32 %v108, %v286
    %288 = vmatmul.f32.gmra.mxu0 %v126
    %v289 = vpop.f32.mrf.mxu0
    %v290 = vadd.f32 %v108, %v289
    %291 = vmatmul.f32.gmra.mxu0 %v129
    %v292 = vpop.f32.mrf.mxu0
    %v293 = vadd.f32 %v108, %v292
    %294 = vmatmul.f32.gmra.mxu0 %v132
    %v295 = vpop.f32.mrf.mxu0
    %v296 = vadd.f32 %v108, %v295
    %297 = vmatmul.f32.gmra.mxu0 %v135
    %v298 = vpop.f32.mrf.mxu0
    %v299 = vadd.f32 %v108, %v298
    %300 = vmatmul.f32.gmra.mxu0 %v138
    %v301 = vpop.f32.mrf.mxu0
    %v302 = vadd.f32 %v108, %v301
    %303 = vmatmul.f32.gmra.mxu0 %v141
    %v304 = vpop.f32.mrf.mxu0
    %v305 = vadd.f32 %v108, %v304
    %306 = vmatmul.f32.gmra.mxu0 %v144
    %v307 = vpop.f32.mrf.mxu0
    %v308 = vadd.f32 %v108, %v307
    %309 = vdwg.mxu0
    %310 = vmatpush.msra.mxu0 0.0
    %311 = vmatpush.msra.mxu0 0.0
    %312 = vmatpush.msra.mxu0 0.0
    %313 = vmatpush.msra.mxu0 0.0
    %314 = vmatpush.msra.mxu0 0.0
    %315 = vmatpush.msra.mxu0 0.0
    %316 = vmatpush.msra.mxu0 0.0
    %317 = vmatpush.msra.mxu0 0.0
    %318 = vmatpush.msra.mxu0 0.0
    %319 = vmatpush.msra.mxu0 0.0
    %320 = vmatpush.msra.mxu0 0.0
    %321 = vmatpush.msra.mxu0 0.0
    %322 = vmatpush.msra.mxu0 0.0
    %323 = vmatpush.msra.mxu0 0.0
    %324 = vmatpush.msra.mxu0 %v99
    %325 = vmatpush.msra.mxu0 %v91
    %326 = vmatmul.f32.gmra.mxu0 %v123
    %v327 = vpop.f32.mrf.mxu0
    %v328 = vadd.f32 %v109, %v327
    %329 = vmatmul.f32.gmra.mxu0 %v126
    %v330 = vpop.f32.mrf.mxu0
    %v331 = vadd.f32 %v109, %v330
    %332 = vmatmul.f32.gmra.mxu0 %v129
    %v333 = vpop.f32.mrf.mxu0
    %v334 = vadd.f32 %v109, %v333
    %335 = vmatmul.f32.gmra.mxu0 %v132
    %v336 = vpop.f32.mrf.mxu0
    %v337 = vadd.f32 %v109, %v336
    %338 = vmatmul.f32.gmra.mxu0 %v135
    %v339 = vpop.f32.mrf.mxu0
    %v340 = vadd.f32 %v109, %v339
    %341 = vmatmul.f32.gmra.mxu0 %v138
    %v342 = vpop.f32.mrf.mxu0
    %v343 = vadd.f32 %v109, %v342
    %344 = vmatmul.f32.gmra.mxu0 %v141
    %v345 = vpop.f32.mrf.mxu0
    %v346 = vadd.f32 %v109, %v345
    %347 = vmatmul.f32.gmra.mxu0 %v144
    %v348 = vpop.f32.mrf.mxu0
    %v349 = vadd.f32 %v109, %v348
    %350 = vdwg.mxu0
    %351 = vmatpush.msra.mxu0 0.0
    %352 = vmatpush.msra.mxu0 0.0
    %353 = vmatpush.msra.mxu0 0.0
    %354 = vmatpush.msra.mxu0 0.0
    %355 = vmatpush.msra.mxu0 0.0
    %356 = vmatpush.msra.mxu0 0.0
    %357 = vmatpush.msra.mxu0 0.0
    %358 = vmatpush.msra.mxu0 0.0
    %359 = vmatpush.msra.mxu0 0.0
    %360 = vmatpush.msra.mxu0 0.0
    %361 = vmatpush.msra.mxu0 0.0
    %362 = vmatpush.msra.mxu0 0.0
    %363 = vmatpush.msra.mxu0 0.0
    %364 = vmatpush.msra.mxu0 0.0
    %365 = vmatpush.msra.mxu0 %v100
    %366 = vmatpush.msra.mxu0 %v92
    %367 = vmatmul.f32.gmra.mxu0 %v123
    %v368 = vpop.f32.mrf.mxu0
    %v369 = vadd.f32 %v110, %v368
    %370 = vmatmul.f32.gmra.mxu0 %v126
    %v371 = vpop.f32.mrf.mxu0
    %v372 = vadd.f32 %v110, %v371
    %373 = vmatmul.f32.gmra.mxu0 %v129
    %v374 = vpop.f32.mrf.mxu0
    %v375 = vadd.f32 %v110, %v374
    %376 = vmatmul.f32.gmra.mxu0 %v132
    %v377 = vpop.f32.mrf.mxu0
    %v378 = vadd.f32 %v110, %v377
    %379 = vmatmul.f32.gmra.mxu0 %v135
    %v380 = vpop.f32.mrf.mxu0
    %v381 = vadd.f32 %v110, %v380
    %382 = vmatmul.f32.gmra.mxu0 %v138
    %v383 = vpop.f32.mrf.mxu0
    %v384 = vadd.f32 %v110, %v383
    %385 = vmatmul.f32.gmra.mxu0 %v141
    %v386 = vpop.f32.mrf.mxu0
    %v387 = vadd.f32 %v110, %v386
    %388 = vmatmul.f32.gmra.mxu0 %v144
    %v389 = vpop.f32.mrf.mxu0
    %v390 = vadd.f32 %v110, %v389
    %391 = vdwg.mxu0
    %392 = vmatpush.msra.mxu0 0.0
    %393 = vmatpush.msra.mxu0 0.0
    %394 = vmatpush.msra.mxu0 0.0
    %395 = vmatpush.msra.mxu0 0.0
    %396 = vmatpush.msra.mxu0 0.0
    %397 = vmatpush.msra.mxu0 0.0
    %398 = vmatpush.msra.mxu0 0.0
    %399 = vmatpush.msra.mxu0 0.0
    %400 = vmatpush.msra.mxu0 0.0
    %401 = vmatpush.msra.mxu0 0.0
    %402 = vmatpush.msra.mxu0 0.0
    %403 = vmatpush.msra.mxu0 0.0
    %404 = vmatpush.msra.mxu0 0.0
    %405 = vmatpush.msra.mxu0 0.0
    %406 = vmatpush.msra.mxu0 %v101
    %407 = vmatpush.msra.mxu0 %v93
    %408 = vmatmul.f32.gmra.mxu0 %v123
    %v409 = vpop.f32.mrf.mxu0
    %v410 = vadd.f32 %v111, %v409
    %411 = vmatmul.f32.gmra.mxu0 %v126
    %v412 = vpop.f32.mrf.mxu0
    %v413 = vadd.f32 %v111, %v412
    %414 = vmatmul.f32.gmra.mxu0 %v129
    %v415 = vpop.f32.mrf.mxu0
    %v416 = vadd.f32 %v111, %v415
    %417 = vmatmul.f32.gmra.mxu0 %v132
    %v418 = vpop.f32.mrf.mxu0
    %v419 = vadd.f32 %v111, %v418
    %420 = vmatmul.f32.gmra.mxu0 %v135
    %v421 = vpop.f32.mrf.mxu0
    %v422 = vadd.f32 %v111, %v421
    %423 = vmatmul.f32.gmra.mxu0 %v138
    %v424 = vpop.f32.mrf.mxu0
    %v425 = vadd.f32 %v111, %v424
    %426 = vmatmul.f32.gmra.mxu0 %v141
    %v427 = vpop.f32.mrf.mxu0
    %v428 = vadd.f32 %v111, %v427
    %429 = vmatmul.f32.gmra.mxu0 %v144
    %v430 = vpop.f32.mrf.mxu0
    %v431 = vadd.f32 %v111, %v430
    %432 = vdwg.mxu0
    %433 = vmatpush.msra.mxu0 0.0
    %434 = vmatpush.msra.mxu0 0.0
    %435 = vmatpush.msra.mxu0 0.0
    %436 = vmatpush.msra.mxu0 0.0
    %437 = vmatpush.msra.mxu0 0.0
    %438 = vmatpush.msra.mxu0 0.0
    %439 = vmatpush.msra.mxu0 0.0
    %440 = vmatpush.msra.mxu0 0.0
    %441 = vmatpush.msra.mxu0 0.0
    %442 = vmatpush.msra.mxu0 0.0
    %443 = vmatpush.msra.mxu0 0.0
    %444 = vmatpush.msra.mxu0 0.0
    %445 = vmatpush.msra.mxu0 0.0
    %446 = vmatpush.msra.mxu0 0.0
    %447 = vmatpush.msra.mxu0 %v102
    %448 = vmatpush.msra.mxu0 %v94
    %449 = vmatmul.f32.gmra.mxu0 %v123
    %v450 = vpop.f32.mrf.mxu0
    %v451 = vadd.f32 %v112, %v450
    %452 = vmatmul.f32.gmra.mxu0 %v126
    %v453 = vpop.f32.mrf.mxu0
    %v454 = vadd.f32 %v112, %v453
    %455 = vmatmul.f32.gmra.mxu0 %v129
    %v456 = vpop.f32.mrf.mxu0
    %v457 = vadd.f32 %v112, %v456
    %458 = vmatmul.f32.gmra.mxu0 %v132
    %v459 = vpop.f32.mrf.mxu0
    %v460 = vadd.f32 %v112, %v459
    %461 = vmatmul.f32.gmra.mxu0 %v135
    %v462 = vpop.f32.mrf.mxu0
    %v463 = vadd.f32 %v112, %v462
    %464 = vmatmul.f32.gmra.mxu0 %v138
    %v465 = vpop.f32.mrf.mxu0
    %v466 = vadd.f32 %v112, %v465
    %467 = vmatmul.f32.gmra.mxu0 %v141
    %v468 = vpop.f32.mrf.mxu0
    %v469 = vadd.f32 %v112, %v468
    %470 = vmatmul.f32.gmra.mxu0 %v144
    %v471 = vpop.f32.mrf.mxu0
    %v472 = vadd.f32 %v112, %v471
    %473 = vdwg.mxu0
    %474 = vst [vmem:[#allocation2] sm:$0xff] %v164
    %475 = vst [vmem:[#allocation2 + $0x8] sm:$0xff] %v205
    %476 = vst [vmem:[#allocation2 + $0x10] sm:$0xff] %v246
    %477 = vst [vmem:[#allocation2 + $0x18] sm:$0xff] %v287
    %478 = vst [vmem:[#allocation2 + $0x20] sm:$0xff] %v328
    %479 = vst [vmem:[#allocation2 + $0x28] sm:$0xff] %v369
    %480 = vst [vmem:[#allocation2 + $0x30] sm:$0xff] %v410
    %481 = vst [vmem:[#allocation2 + $0x38] sm:$0xff] %v451
    %482 = vst [vmem:[#allocation2 + $0x40] sm:$0xff] %v167
    %483 = vst [vmem:[#allocation2 + $0x48] sm:$0xff] %v208
    %484 = vst [vmem:[#allocation2 + $0x50] sm:$0xff] %v249
    %485 = vst [vmem:[#allocation2 + $0x58] sm:$0xff] %v290
    %486 = vst [vmem:[#allocation2 + $0x60] sm:$0xff] %v331
    %487 = vst [vmem:[#allocation2 + $0x68] sm:$0xff] %v372
    %488 = vst [vmem:[#allocation2 + $0x70] sm:$0xff] %v413
    %489 = vst [vmem:[#allocation2 + $0x78] sm:$0xff] %v454
    %490 = vst [vmem:[#allocation2 + $0x80] sm:$0xff] %v170
    %491 = vst [vmem:[#allocation2 + $0x88] sm:$0xff] %v211
    %492 = vst [vmem:[#allocation2 + $0x90] sm:$0xff] %v252
    %493 = vst [vmem:[#allocation2 + $0x98] sm:$0xff] %v293
    %494 = vst [vmem:[#allocation2 + $0xa0] sm:$0xff] %v334
    %495 = vst [vmem:[#allocation2 + $0xa8] sm:$0xff] %v375
    %496 = vst [vmem:[#allocation2 + $0xb0] sm:$0xff] %v416
    %497 = vst [vmem:[#allocation2 + $0xb8] sm:$0xff] %v457
    %498 = vst [vmem:[#allocation2 + $0xc0] sm:$0xff] %v173
    %499 = vst [vmem:[#allocation2 + $0xc8] sm:$0xff] %v214
    %500 = vst [vmem:[#allocation2 + $0xd0] sm:$0xff] %v255
    %501 = vst [vmem:[#allocation2 + $0xd8] sm:$0xff] %v296
    %502 = vst [vmem:[#allocation2 + $0xe0] sm:$0xff] %v337
    %503 = vst [vmem:[#allocation2 + $0xe8] sm:$0xff] %v378
    %504 = vst [vmem:[#allocation2 + $0xf0] sm:$0xff] %v419
    %505 = vst [vmem:[#allocation2 + $0xf8] sm:$0xff] %v460
    %506 = vst [vmem:[#allocation2 + $0x100] sm:$0xff] %v176
    %507 = vst [vmem:[#allocation2 + $0x108] sm:$0xff] %v217
    %508 = vst [vmem:[#allocation2 + $0x110] sm:$0xff] %v258
    %509 = vst [vmem:[#allocation2 + $0x118] sm:$0xff] %v299
    %510 = vst [vmem:[#allocation2 + $0x120] sm:$0xff] %v340
    %511 = vst [vmem:[#allocation2 + $0x128] sm:$0xff] %v381
    %512 = vst [vmem:[#allocation2 + $0x130] sm:$0xff] %v422
    %513 = vst [vmem:[#allocation2 + $0x138] sm:$0xff] %v463
    %514 = vst [vmem:[#allocation2 + $0x140] sm:$0xff] %v179
    %515 = vst [vmem:[#allocation2 + $0x148] sm:$0xff] %v220
    %516 = vst [vmem:[#allocation2 + $0x150] sm:$0xff] %v261
    %517 = vst [vmem:[#allocation2 + $0x158] sm:$0xff] %v302
    %518 = vst [vmem:[#allocation2 + $0x160] sm:$0xff] %v343
    %519 = vst [vmem:[#allocation2 + $0x168] sm:$0xff] %v384
    %520 = vst [vmem:[#allocation2 + $0x170] sm:$0xff] %v425
    %521 = vst [vmem:[#allocation2 + $0x178] sm:$0xff] %v466
    %522 = vst [vmem:[#allocation2 + $0x180] sm:$0xff] %v182
    %523 = vst [vmem:[#allocation2 + $0x188] sm:$0xff] %v223
    %524 = vst [vmem:[#allocation2 + $0x190] sm:$0xff] %v264
    %525 = vst [vmem:[#allocation2 + $0x198] sm:$0xff] %v305
    %526 = vst [vmem:[#allocation2 + $0x1a0] sm:$0xff] %v346
    %527 = vst [vmem:[#allocation2 + $0x1a8] sm:$0xff] %v387
    %528 = vst [vmem:[#allocation2 + $0x1b0] sm:$0xff] %v428
    %529 = vst [vmem:[#allocation2 + $0x1b8] sm:$0xff] %v469
    %530 = vst [vmem:[#allocation2 + $0x1c0] sm:$0xff] %v185
    %531 = vst [vmem:[#allocation2 + $0x1c8] sm:$0xff] %v226
    %532 = vst [vmem:[#allocation2 + $0x1d0] sm:$0xff] %v267
    %533 = vst [vmem:[#allocation2 + $0x1d8] sm:$0xff] %v308
    %534 = vst [vmem:[#allocation2 + $0x1e0] sm:$0xff] %v349
    %535 = vst [vmem:[#allocation2 + $0x1e8] sm:$0xff] %v390
    %536 = vst [vmem:[#allocation2 + $0x1f0] sm:$0xff] %v431
    %537 = vst [vmem:[#allocation2 + $0x1f8] sm:$0xff] %v472
    %v538 = vld [vmem:[%s5] sm:$0x1]
    %v539 = vld [vmem:[%s6] sm:$0x1]
    %s540 = smul.u32 0, 8
    %s541 = smul.addr %s540, 8
    %s542 = scalar_lea.vmem [#allocation2], %s541
    %v543 = vld [vmem:[%s542] sm:$0xff]
    %v544 = vld [vmem:[%s542 + $0x8] sm:$0xff]
    %v545 = vld [vmem:[%s542 + $0x10] sm:$0xff]
    %v546 = vld [vmem:[%s542 + $0x18] sm:$0xff]
    %v547 = vld [vmem:[#allocation9] sm:$0xff]
    %v548 = vld [vmem:[#allocation9 + $0x8] sm:$0xff]
    %v549 = vld [vmem:[#allocation9 + $0x10] sm:$0xff]
    %v550 = vld [vmem:[#allocation9 + $0x18] sm:$0xff]
    %v551 = vld [vmem:[#allocation9 + $0x20] sm:$0xff]
    %v552 = vld [vmem:[#allocation9 + $0x28] sm:$0xff]
    %v553 = vld [vmem:[#allocation9 + $0x30] sm:$0xff]
    %v554 = vld [vmem:[#allocation9 + $0x38] sm:$0xff]
    %v555 = vld [vmem:[#allocation9 + $0x40] sm:$0xff]
    %v556 = vld [vmem:[#allocation9 + $0x48] sm:$0xff]
    %v557 = vld [vmem:[#allocation9 + $0x50] sm:$0xff]
    %v558 = vld [vmem:[#allocation9 + $0x58] sm:$0xff]
    %v559 = vld [vmem:[#allocation9 + $0x60] sm:$0xff]
    %v560 = vld [vmem:[#allocation9 + $0x68] sm:$0xff]
    %v561 = vld [vmem:[#allocation9 + $0x70] sm:$0xff]
    %v562 = vld [vmem:[#allocation9 + $0x78] sm:$0xff]
    %v563 = vld [vmem:[#allocation9 + $0x80] sm:$0xff]
    %v564 = vld [vmem:[#allocation9 + $0x88] sm:$0xff]
    %v565 = vld [vmem:[#allocation9 + $0x90] sm:$0xff]
    %v566 = vld [vmem:[#allocation9 + $0x98] sm:$0xff]
    %v567 = vld [vmem:[#allocation9 + $0xa0] sm:$0xff]
    %v568 = vld [vmem:[#allocation9 + $0xa8] sm:$0xff]
    %v569 = vld [vmem:[#allocation9 + $0xb0] sm:$0xff]
    %v570 = vld [vmem:[#allocation9 + $0xb8] sm:$0xff]
    %v571 = vld [vmem:[#allocation9 + $0xc0] sm:$0xff]
    %v572 = vld [vmem:[#allocation9 + $0xc8] sm:$0xff]
    %v573 = vld [vmem:[#allocation9 + $0xd0] sm:$0xff]
    %v574 = vld [vmem:[#allocation9 + $0xd8] sm:$0xff]
    %v575 = vld [vmem:[#allocation9 + $0xe0] sm:$0xff]
    %v576 = vld [vmem:[#allocation9 + $0xe8] sm:$0xff]
    %v577 = vld [vmem:[#allocation9 + $0xf0] sm:$0xff]
    %v578 = vld [vmem:[#allocation9 + $0xf8] sm:$0xff]
    %v579 = vld [vmem:[#allocation9 + $0x100] sm:$0xff]
    %v580 = vld [vmem:[#allocation9 + $0x108] sm:$0xff]
    %v581 = vld [vmem:[#allocation9 + $0x110] sm:$0xff]
    %v582 = vld [vmem:[#allocation9 + $0x118] sm:$0xff]
    %v583 = vld [vmem:[#allocation9 + $0x120] sm:$0xff]
    %v584 = vld [vmem:[#allocation9 + $0x128] sm:$0xff]
    %v585 = vld [vmem:[#allocation9 + $0x130] sm:$0xff]
    %v586 = vld [vmem:[#allocation9 + $0x138] sm:$0xff]
    %v587 = vld [vmem:[#allocation9 + $0x140] sm:$0xff]
    %v588 = vld [vmem:[#allocation9 + $0x148] sm:$0xff]
    %v589 = vld [vmem:[#allocation9 + $0x150] sm:$0xff]
    %v590 = vld [vmem:[#allocation9 + $0x158] sm:$0xff]
    %v591 = vld [vmem:[#allocation9 + $0x160] sm:$0xff]
    %v592 = vld [vmem:[#allocation9 + $0x168] sm:$0xff]
    %v593 = vld [vmem:[#allocation9 + $0x170] sm:$0xff]
    %v594 = vld [vmem:[#allocation9 + $0x178] sm:$0xff]
    %v595 = vld [vmem:[#allocation9 + $0x180] sm:$0xff]
    %v596 = vld [vmem:[#allocation9 + $0x188] sm:$0xff]
    %v597 = vld [vmem:[#allocation9 + $0x190] sm:$0xff]
    %v598 = vld [vmem:[#allocation9 + $0x198] sm:$0xff]
    %v599 = vld [vmem:[#allocation9 + $0x1a0] sm:$0xff]
    %v600 = vld [vmem:[#allocation9 + $0x1a8] sm:$0xff]
    %v601 = vld [vmem:[#allocation9 + $0x1b0] sm:$0xff]
    %v602 = vld [vmem:[#allocation9 + $0x1b8] sm:$0xff]
    %v603 = vld [vmem:[#allocation9 + $0x1c0] sm:$0xff]
    %v604 = vld [vmem:[#allocation9 + $0x1c8] sm:$0xff]
    %v605 = vld [vmem:[#allocation9 + $0x1d0] sm:$0xff]
    %v606 = vld [vmem:[#allocation9 + $0x1d8] sm:$0xff]
    %v607 = vld [vmem:[#allocation9 + $0x1e0] sm:$0xff]
    %v608 = vld [vmem:[#allocation9 + $0x1e8] sm:$0xff]
    %v609 = vld [vmem:[#allocation9 + $0x1f0] sm:$0xff]
    %v610 = vld [vmem:[#allocation9 + $0x1f8] sm:$0xff]
    %611 = vmatpush.msra.mxu0 %v607
    %612 = vmatpush.msra.mxu0 %v603
    %613 = vmatpush.msra.mxu0 %v599
    %614 = vmatpush.msra.mxu0 %v595
    %615 = vmatpush.msra.mxu0 %v591
    %616 = vmatpush.msra.mxu0 %v587
    %617 = vmatpush.msra.mxu0 %v583
    %618 = vmatpush.msra.mxu0 %v579
    %619 = vmatpush.msra.mxu0 %v575
    %620 = vmatpush.msra.mxu0 %v571
    %621 = vmatpush.msra.mxu0 %v567
    %622 = vmatpush.msra.mxu0 %v563
    %623 = vmatpush.msra.mxu0 %v559
    %624 = vmatpush.msra.mxu0 %v555
    %625 = vmatpush.msra.mxu0 %v551
    %626 = vmatpush.msra.mxu0 %v547
    %627 = vmatmul.f32.gmra.mxu0 0.0
    %v628 = vpop.f32.mrf.mxu0
    %v629 = vadd.f32 0.0, %v628
    %630 = vdwg.mxu0
    %631 = vmatpush.msra.mxu0 %v608
    %632 = vmatpush.msra.mxu0 %v604
    %633 = vmatpush.msra.mxu0 %v600
    %634 = vmatpush.msra.mxu0 %v596
    %635 = vmatpush.msra.mxu0 %v592
    %636 = vmatpush.msra.mxu0 %v588
    %637 = vmatpush.msra.mxu0 %v584
    %638 = vmatpush.msra.mxu0 %v580
    %639 = vmatpush.msra.mxu0 %v576
    %640 = vmatpush.msra.mxu0 %v572
    %641 = vmatpush.msra.mxu0 %v568
    %642 = vmatpush.msra.mxu0 %v564
    %643 = vmatpush.msra.mxu0 %v560
    %644 = vmatpush.msra.mxu0 %v556
    %645 = vmatpush.msra.mxu0 %v552
    %646 = vmatpush.msra.mxu0 %v548
    %647 = vmatmul.f32.gmra.mxu0 0.0
    %v648 = vpop.f32.mrf.mxu0
    %v649 = vadd.f32 0.0, %v648
    %650 = vdwg.mxu0
    %651 = vmatpush.msra.mxu0 %v609
    %652 = vmatpush.msra.mxu0 %v605
    %653 = vmatpush.msra.mxu0 %v601
    %654 = vmatpush.msra.mxu0 %v597
    %655 = vmatpush.msra.mxu0 %v593
    %656 = vmatpush.msra.mxu0 %v589
    %657 = vmatpush.msra.mxu0 %v585
    %658 = vmatpush.msra.mxu0 %v581
    %659 = vmatpush.msra.mxu0 %v577
    %660 = vmatpush.msra.mxu0 %v573
    %661 = vmatpush.msra.mxu0 %v569
    %662 = vmatpush.msra.mxu0 %v565
    %663 = vmatpush.msra.mxu0 %v561
    %664 = vmatpush.msra.mxu0 %v557
    %665 = vmatpush.msra.mxu0 %v553
    %666 = vmatpush.msra.mxu0 %v549
    %667 = vmatmul.f32.gmra.mxu0 0.0
    %v668 = vpop.f32.mrf.mxu0
    %v669 = vadd.f32 0.0, %v668
    %670 = vdwg.mxu0
    %671 = vmatpush.msra.mxu0 %v610
    %672 = vmatpush.msra.mxu0 %v606
    %673 = vmatpush.msra.mxu0 %v602
    %674 = vmatpush.msra.mxu0 %v598
    %675 = vmatpush.msra.mxu0 %v594
    %676 = vmatpush.msra.mxu0 %v590
    %677 = vmatpush.msra.mxu0 %v586
    %678 = vmatpush.msra.mxu0 %v582
    %679 = vmatpush.msra.mxu0 %v578
    %680 = vmatpush.msra.mxu0 %v574
    %681 = vmatpush.msra.mxu0 %v570
    %682 = vmatpush.msra.mxu0 %v566
    %683 = vmatpush.msra.mxu0 %v562
    %684 = vmatpush.msra.mxu0 %v558
    %685 = vmatpush.msra.mxu0 %v554
    %686 = vmatpush.msra.mxu0 %v550
    %687 = vmatmul.f32.gmra.mxu0 0.0
    %v688 = vpop.f32.mrf.mxu0
    %v689 = vadd.f32 0.0, %v688
    %690 = vdwg.mxu0
    %v691 = vadd.f32 %v543, %v629
    %v692 = vadd.f32 %v544, %v649
    %v693 = vadd.f32 %v545, %v669
    %v694 = vadd.f32 %v546, %v689
    %s695 = smul.u32 7, 8
    %s696 = smul.addr %s695, 8
    %s697 = scalar_lea.vmem [#allocation2], %s696
    %v698 = vld [vmem:[%s697 + $0x20] sm:$0xff]
    %v699 = vld [vmem:[%s697 + $0x28] sm:$0xff]
    %v700 = vld [vmem:[%s697 + $0x30] sm:$0xff]
    %v701 = vld [vmem:[%s697 + $0x38] sm:$0xff]
    %v702 = vld [vmem:[#allocation11] sm:$0xff]
    %v703 = vld [vmem:[#allocation11 + $0x8] sm:$0xff]
    %v704 = vld [vmem:[#allocation11 + $0x10] sm:$0xff]
    %v705 = vld [vmem:[#allocation11 + $0x18] sm:$0xff]
    %v706 = vld [vmem:[#allocation11 + $0x20] sm:$0xff]
    %v707 = vld [vmem:[#allocation11 + $0x28] sm:$0xff]
    %v708 = vld [vmem:[#allocation11 + $0x30] sm:$0xff]
    %v709 = vld [vmem:[#allocation11 + $0x38] sm:$0xff]
    %v710 = vld [vmem:[#allocation11 + $0x40] sm:$0xff]
    %v711 = vld [vmem:[#allocation11 + $0x48] sm:$0xff]
    %v712 = vld [vmem:[#allocation11 + $0x50] sm:$0xff]
    %v713 = vld [vmem:[#allocation11 + $0x58] sm:$0xff]
    %v714 = vld [vmem:[#allocation11 + $0x60] sm:$0xff]
    %v715 = vld [vmem:[#allocation11 + $0x68] sm:$0xff]
    %v716 = vld [vmem:[#allocation11 + $0x70] sm:$0xff]
    %v717 = vld [vmem:[#allocation11 + $0x78] sm:$0xff]
    %v718 = vld [vmem:[#allocation11 + $0x80] sm:$0xff]
    %v719 = vld [vmem:[#allocation11 + $0x88] sm:$0xff]
    %v720 = vld [vmem:[#allocation11 + $0x90] sm:$0xff]
    %v721 = vld [vmem:[#allocation11 + $0x98] sm:$0xff]
    %v722 = vld [vmem:[#allocation11 + $0xa0] sm:$0xff]
    %v723 = vld [vmem:[#allocation11 + $0xa8] sm:$0xff]
    %v724 = vld [vmem:[#allocation11 + $0xb0] sm:$0xff]
    %v725 = vld [vmem:[#allocation11 + $0xb8] sm:$0xff]
    %v726 = vld [vmem:[#allocation11 + $0xc0] sm:$0xff]
    %v727 = vld [vmem:[#allocation11 + $0xc8] sm:$0xff]
    %v728 = vld [vmem:[#allocation11 + $0xd0] sm:$0xff]
    %v729 = vld [vmem:[#allocation11 + $0xd8] sm:$0xff]
    %v730 = vld [vmem:[#allocation11 + $0xe0] sm:$0xff]
    %v731 = vld [vmem:[#allocation11 + $0xe8] sm:$0xff]
    %v732 = vld [vmem:[#allocation11 + $0xf0] sm:$0xff]
    %v733 = vld [vmem:[#allocation11 + $0xf8] sm:$0xff]
    %v734 = vld [vmem:[#allocation11 + $0x100] sm:$0xff]
    %v735 = vld [vmem:[#allocation11 + $0x108] sm:$0xff]
    %v736 = vld [vmem:[#allocation11 + $0x110] sm:$0xff]
    %v737 = vld [vmem:[#allocation11 + $0x118] sm:$0xff]
    %v738 = vld [vmem:[#allocation11 + $0x120] sm:$0xff]
    %v739 = vld [vmem:[#allocation11 + $0x128] sm:$0xff]
    %v740 = vld [vmem:[#allocation11 + $0x130] sm:$0xff]
    %v741 = vld [vmem:[#allocation11 + $0x138] sm:$0xff]
    %v742 = vld [vmem:[#allocation11 + $0x140] sm:$0xff]
    %v743 = vld [vmem:[#allocation11 + $0x148] sm:$0xff]
    %v744 = vld [vmem:[#allocation11 + $0x150] sm:$0xff]
    %v745 = vld [vmem:[#allocation11 + $0x158] sm:$0xff]
    %v746 = vld [vmem:[#allocation11 + $0x160] sm:$0xff]
    %v747 = vld [vmem:[#allocation11 + $0x168] sm:$0xff]
    %v748 = vld [vmem:[#allocation11 + $0x170] sm:$0xff]
    %v749 = vld [vmem:[#allocation11 + $0x178] sm:$0xff]
    %v750 = vld [vmem:[#allocation11 + $0x180] sm:$0xff]
    %v751 = vld [vmem:[#allocation11 + $0x188] sm:$0xff]
    %v752 = vld [vmem:[#allocation11 + $0x190] sm:$0xff]
    %v753 = vld [vmem:[#allocation11 + $0x198] sm:$0xff]
    %v754 = vld [vmem:[#allocation11 + $0x1a0] sm:$0xff]
    %v755 = vld [vmem:[#allocation11 + $0x1a8] sm:$0xff]
    %v756 = vld [vmem:[#allocation11 + $0x1b0] sm:$0xff]
    %v757 = vld [vmem:[#allocation11 + $0x1b8] sm:$0xff]
    %v758 = vld [vmem:[#allocation11 + $0x1c0] sm:$0xff]
    %v759 = vld [vmem:[#allocation11 + $0x1c8] sm:$0xff]
    %v760 = vld [vmem:[#allocation11 + $0x1d0] sm:$0xff]
    %v761 = vld [vmem:[#allocation11 + $0x1d8] sm:$0xff]
    %v762 = vld [vmem:[#allocation11 + $0x1e0] sm:$0xff]
    %v763 = vld [vmem:[#allocation11 + $0x1e8] sm:$0xff]
    %v764 = vld [vmem:[#allocation11 + $0x1f0] sm:$0xff]
    %v765 = vld [vmem:[#allocation11 + $0x1f8] sm:$0xff]
    %766 = vmatpush.msra.mxu0 %v762
    %767 = vmatpush.msra.mxu0 %v758
    %768 = vmatpush.msra.mxu0 %v754
    %769 = vmatpush.msra.mxu0 %v750
    %770 = vmatpush.msra.mxu0 %v746
    %771 = vmatpush.msra.mxu0 %v742
    %772 = vmatpush.msra.mxu0 %v738
    %773 = vmatpush.msra.mxu0 %v734
    %774 = vmatpush.msra.mxu0 %v730
    %775 = vmatpush.msra.mxu0 %v726
    %776 = vmatpush.msra.mxu0 %v722
    %777 = vmatpush.msra.mxu0 %v718
    %778 = vmatpush.msra.mxu0 %v714
    %779 = vmatpush.msra.mxu0 %v710
    %780 = vmatpush.msra.mxu0 %v706
    %781 = vmatpush.msra.mxu0 %v702
    %782 = vmatmul.f32.gmra.mxu0 0.0
    %v783 = vpop.f32.mrf.mxu0
    %v784 = vadd.f32 0.0, %v783
    %785 = vdwg.mxu0
    %786 = vmatpush.msra.mxu0 %v763
    %787 = vmatpush.msra.mxu0 %v759
    %788 = vmatpush.msra.mxu0 %v755
    %789 = vmatpush.msra.mxu0 %v751
    %790 = vmatpush.msra.mxu0 %v747
    %791 = vmatpush.msra.mxu0 %v743
    %792 = vmatpush.msra.mxu0 %v739
    %793 = vmatpush.msra.mxu0 %v735
    %794 = vmatpush.msra.mxu0 %v731
    %795 = vmatpush.msra.mxu0 %v727
    %796 = vmatpush.msra.mxu0 %v723
    %797 = vmatpush.msra.mxu0 %v719
    %798 = vmatpush.msra.mxu0 %v715
    %799 = vmatpush.msra.mxu0 %v711
    %800 = vmatpush.msra.mxu0 %v707
    %801 = vmatpush.msra.mxu0 %v703
    %802 = vmatmul.f32.gmra.mxu0 0.0
    %v803 = vpop.f32.mrf.mxu0
    %v804 = vadd.f32 0.0, %v803
    %805 = vdwg.mxu0
    %806 = vmatpush.msra.mxu0 %v764
    %807 = vmatpush.msra.mxu0 %v760
    %808 = vmatpush.msra.mxu0 %v756
    %809 = vmatpush.msra.mxu0 %v752
    %810 = vmatpush.msra.mxu0 %v748
    %811 = vmatpush.msra.mxu0 %v744
    %812 = vmatpush.msra.mxu0 %v740
    %813 = vmatpush.msra.mxu0 %v736
    %814 = vmatpush.msra.mxu0 %v732
    %815 = vmatpush.msra.mxu0 %v728
    %816 = vmatpush.msra.mxu0 %v724
    %817 = vmatpush.msra.mxu0 %v720
    %818 = vmatpush.msra.mxu0 %v716
    %819 = vmatpush.msra.mxu0 %v712
    %820 = vmatpush.msra.mxu0 %v708
    %821 = vmatpush.msra.mxu0 %v704
    %822 = vmatmul.f32.gmra.mxu0 0.0
    %v823 = vpop.f32.mrf.mxu0
    %v824 = vadd.f32 0.0, %v823
    %825 = vdwg.mxu0
    %826 = vmatpush.msra.mxu0 %v765
    %827 = vmatpush.msra.mxu0 %v761
    %828 = vmatpush.msra.mxu0 %v757
    %829 = vmatpush.msra.mxu0 %v753
    %830 = vmatpush.msra.mxu0 %v749
    %831 = vmatpush.msra.mxu0 %v745
    %832 = vmatpush.msra.mxu0 %v741
    %833 = vmatpush.msra.mxu0 %v737
    %834 = vmatpush.msra.mxu0 %v733
    %835 = vmatpush.msra.mxu0 %v729
    %836 = vmatpush.msra.mxu0 %v725
    %837 = vmatpush.msra.mxu0 %v721
    %838 = vmatpush.msra.mxu0 %v717
    %839 = vmatpush.msra.mxu0 %v713
    %840 = vmatpush.msra.mxu0 %v709
    %841 = vmatpush.msra.mxu0 %v705
    %842 = vmatmul.f32.gmra.mxu0 0.0
    %v843 = vpop.f32.mrf.mxu0
    %v844 = vadd.f32 0.0, %v843
    %845 = vdwg.mxu0
    %v846 = vadd.f32 %v698, %v784
    %v847 = vadd.f32 %v699, %v804
    %v848 = vadd.f32 %v700, %v824
    %v849 = vadd.f32 %v701, %v844
    %v850 = vxor.u32 %v691, 2147483648
    %v851 = vmul.f32 %v850, 1.442695
    %v852 = vpow.pop %v851
    %v853 = vadd.f32 %v852, 1.0
    %v854 = vrcp.pop %v853
    %v855 = vmul.f32 %v853, %v854
    %v856 = vsub.f32 1.0, %v855
    %v857 = vmul.f32 %v854, %v856
    %v858 = vadd.f32 %v854, %v857
    %vm859 = vweird.f32 %v853
    %vm860 = vweird.f32 %v854
    %vm861 = vmor %vm859, %vm860
    %v862 = vsel %vm861, %v854, %v858
    %v863 = vand.u32 2147483647, %v853
    %vm864 = vcmp.eq.f32.partialorder %v863, 8.507059e+37
    %v865 = vand.u32 %v853, 2147483648
    %v866 = vor.u32 1.1754944e-38, %v865
    %v867 = vsel %vm864, %v866, %v862
    %v868 = vmul.f32 1.0, %v867
    %v869 = vxor.u32 %v692, 2147483648
    %v870 = vmul.f32 %v869, 1.442695
    %v871 = vpow.pop %v870
    %v872 = vadd.f32 %v871, 1.0
    %v873 = vrcp.pop %v872
    %v874 = vmul.f32 %v872, %v873
    %v875 = vsub.f32 1.0, %v874
    %v876 = vmul.f32 %v873, %v875
    %v877 = vadd.f32 %v873, %v876
    %vm878 = vweird.f32 %v872
    %vm879 = vweird.f32 %v873
    %vm880 = vmor %vm878, %vm879
    %v881 = vsel %vm880, %v873, %v877
    %v882 = vand.u32 2147483647, %v872
    %vm883 = vcmp.eq.f32.partialorder %v882, 8.507059e+37
    %v884 = vand.u32 %v872, 2147483648
    %v885 = vor.u32 1.1754944e-38, %v884
    %v886 = vsel %vm883, %v885, %v881
    %v887 = vmul.f32 1.0, %v886
    %v888 = vtanh.pop %v693
    %v889 = vxor.u32 %v694, 2147483648
    %v890 = vmul.f32 %v889, 1.442695
    %v891 = vpow.pop %v890
    %v892 = vadd.f32 %v891, 1.0
    %v893 = vrcp.pop %v892
    %v894 = vmul.f32 %v892, %v893
    %v895 = vsub.f32 1.0, %v894
    %v896 = vmul.f32 %v893, %v895
    %v897 = vadd.f32 %v893, %v896
    %vm898 = vweird.f32 %v892
    %vm899 = vweird.f32 %v893
    %vm900 = vmor %vm898, %vm899
    %v901 = vsel %vm900, %v893, %v897
    %v902 = vand.u32 2147483647, %v892
    %vm903 = vcmp.eq.f32.partialorder %v902, 8.507059e+37
    %v904 = vand.u32 %v892, 2147483648
    %v905 = vor.u32 1.1754944e-38, %v904
    %v906 = vsel %vm903, %v905, %v901
    %v907 = vmul.f32 1.0, %v906
    %v908 = vmul.f32 %v887, 0.0
    %v909 = vmul.f32 %v868, %v888
    %v910 = vadd.f32 %v908, %v909
    %v911 = vtanh.pop %v910
    %v912 = vmul.f32 %v907, %v911
    %v913 = vxor.u32 %v846, 2147483648
    %v914 = vmul.f32 %v913, 1.442695
    %v915 = vpow.pop %v914
    %v916 = vadd.f32 %v915, 1.0
    %v917 = vrcp.pop %v916
    %v918 = vmul.f32 %v916, %v917
    %v919 = vsub.f32 1.0, %v918
    %v920 = vmul.f32 %v917, %v919
    %v921 = vadd.f32 %v917, %v920
    %vm922 = vweird.f32 %v916
    %vm923 = vweird.f32 %v917
    %vm924 = vmor %vm922, %vm923
    %v925 = vsel %vm924, %v917, %v921
    %v926 = vand.u32 2147483647, %v916
    %vm927 = vcmp.eq.f32.partialorder %v926, 8.507059e+37
    %v928 = vand.u32 %v916, 2147483648
    %v929 = vor.u32 1.1754944e-38, %v928
    %v930 = vsel %vm927, %v929, %v925
    %v931 = vmul.f32 1.0, %v930
    %v932 = vxor.u32 %v847, 2147483648
    %v933 = vmul.f32 %v932, 1.442695
    %v934 = vpow.pop %v933
    %v935 = vadd.f32 %v934, 1.0
    %v936 = vrcp.pop %v935
    %v937 = vmul.f32 %v935, %v936
    %v938 = vsub.f32 1.0, %v937
    %v939 = vmul.f32 %v936, %v938
    %v940 = vadd.f32 %v936, %v939
    %vm941 = vweird.f32 %v935
    %vm942 = vweird.f32 %v936
    %vm943 = vmor %vm941, %vm942
    %v944 = vsel %vm943, %v936, %v940
    %v945 = vand.u32 2147483647, %v935
    %vm946 = vcmp.eq.f32.partialorder %v945, 8.507059e+37
    %v947 = vand.u32 %v935, 2147483648
    %v948 = vor.u32 1.1754944e-38, %v947
    %v949 = vsel %vm946, %v948, %v944
    %v950 = vmul.f32 1.0, %v949
    %v951 = vtanh.pop %v848
    %v952 = vxor.u32 %v849, 2147483648
    %v953 = vmul.f32 %v952, 1.442695
    %v954 = vpow.pop %v953
    %v955 = vadd.f32 %v954, 1.0
    %v956 = vrcp.pop %v955
    %v957 = vmul.f32 %v955, %v956
    %v958 = vsub.f32 1.0, %v957
    %v959 = vmul.f32 %v956, %v958
    %v960 = vadd.f32 %v956, %v959
    %vm961 = vweird.f32 %v955
    %vm962 = vweird.f32 %v956
    %vm963 = vmor %vm961, %vm962
    %v964 = vsel %vm963, %v956, %v960
    %v965 = vand.u32 2147483647, %v955
    %vm966 = vcmp.eq.f32.partialorder %v965, 8.507059e+37
    %v967 = vand.u32 %v955, 2147483648
    %v968 = vor.u32 1.1754944e-38, %v967
    %v969 = vsel %vm966, %v968, %v964
    %v970 = vmul.f32 1.0, %v969
    %v971 = vmul.f32 %v950, 0.0
    %v972 = vmul.f32 %v931, %v951
    %v973 = vadd.f32 %v971, %v972
    %v974 = vtanh.pop %v973
    %v975 = vmul.f32 %v970, %v974
    %v977 = vperm.slane %v538, 0
    %v979 = vmul.f32 %v912, %v977
    %980 = vadd.xlane.f32.xlu0 %v979
    %v981 = vpop.xlane.xlu0 %980
    %v983 = vlaneseq
    %v984 = vand.u32 %v983, 127
    %v985 = vperm.slane %v981, %v984
    %vm987 = vcmask 57344
    %988 = vst.msk [vmem:[#allocation3] sm:$0x1] %vm987, %v985
    %v990 = vperm.slane %v539, 0
    %v992 = vmul.f32 %v975, %v990
    %993 = vadd.xlane.f32.xlu0 %v992
    %v994 = vpop.xlane.xlu0 %993
    %v996 = vperm.slane %v994, %v984
    %998 = vst.msk [vmem:[#allocation4 + $0x7] sm:$0x1] %vm987, %v996
    %s999 = smul.u32 1, 8
    %s1000 = smul.addr %s999, 8
    %s1001 = scalar_lea.vmem [#allocation2], %s1000
    %v1002 = vld [vmem:[%s1001] sm:$0xff]
    %v1003 = vld [vmem:[%s1001 + $0x8] sm:$0xff]
    %v1004 = vld [vmem:[%s1001 + $0x10] sm:$0xff]
    %v1005 = vld [vmem:[%s1001 + $0x18] sm:$0xff]
    %v1006 = vld [vmem:[#allocation9] sm:$0xff]
    %v1007 = vld [vmem:[#allocation9 + $0x8] sm:$0xff]
    %v1008 = vld [vmem:[#allocation9 + $0x10] sm:$0xff]
    %v1009 = vld [vmem:[#allocation9 + $0x18] sm:$0xff]
    %v1010 = vld [vmem:[#allocation9 + $0x20] sm:$0xff]
    %v1011 = vld [vmem:[#allocation9 + $0x28] sm:$0xff]
    %v1012 = vld [vmem:[#allocation9 + $0x30] sm:$0xff]
    %v1013 = vld [vmem:[#allocation9 + $0x38] sm:$0xff]
    %v1014 = vld [vmem:[#allocation9 + $0x40] sm:$0xff]
    %v1015 = vld [vmem:[#allocation9 + $0x48] sm:$0xff]
    %v1016 = vld [vmem:[#allocation9 + $0x50] sm:$0xff]
    %v1017 = vld [vmem:[#allocation9 + $0x58] sm:$0xff]
    %v1018 = vld [vmem:[#allocation9 + $0x60] sm:$0xff]
    %v1019 = vld [vmem:[#allocation9 + $0x68] sm:$0xff]
    %v1020 = vld [vmem:[#allocation9 + $0x70] sm:$0xff]
    %v1021 = vld [vmem:[#allocation9 + $0x78] sm:$0xff]
    %v1022 = vld [vmem:[#allocation9 + $0x80] sm:$0xff]
    %v1023 = vld [vmem:[#allocation9 + $0x88] sm:$0xff]
    %v1024 = vld [vmem:[#allocation9 + $0x90] sm:$0xff]
    %v1025 = vld [vmem:[#allocation9 + $0x98] sm:$0xff]
    %v1026 = vld [vmem:[#allocation9 + $0xa0] sm:$0xff]
    %v1027 = vld [vmem:[#allocation9 + $0xa8] sm:$0xff]
    %v1028 = vld [vmem:[#allocation9 + $0xb0] sm:$0xff]
    %v1029 = vld [vmem:[#allocation9 + $0xb8] sm:$0xff]
    %v1030 = vld [vmem:[#allocation9 + $0xc0] sm:$0xff]
    %v1031 = vld [vmem:[#allocation9 + $0xc8] sm:$0xff]
    %v1032 = vld [vmem:[#allocation9 + $0xd0] sm:$0xff]
    %v1033 = vld [vmem:[#allocation9 + $0xd8] sm:$0xff]
    %v1034 = vld [vmem:[#allocation9 + $0xe0] sm:$0xff]
    %v1035 = vld [vmem:[#allocation9 + $0xe8] sm:$0xff]
    %v1036 = vld [vmem:[#allocation9 + $0xf0] sm:$0xff]
    %v1037 = vld [vmem:[#allocation9 + $0xf8] sm:$0xff]
    %v1038 = vld [vmem:[#allocation9 + $0x100] sm:$0xff]
    %v1039 = vld [vmem:[#allocation9 + $0x108] sm:$0xff]
    %v1040 = vld [vmem:[#allocation9 + $0x110] sm:$0xff]
    %v1041 = vld [vmem:[#allocation9 + $0x118] sm:$0xff]
    %v1042 = vld [vmem:[#allocation9 + $0x120] sm:$0xff]
    %v1043 = vld [vmem:[#allocation9 + $0x128] sm:$0xff]
    %v1044 = vld [vmem:[#allocation9 + $0x130] sm:$0xff]
    %v1045 = vld [vmem:[#allocation9 + $0x138] sm:$0xff]
    %v1046 = vld [vmem:[#allocation9 + $0x140] sm:$0xff]
    %v1047 = vld [vmem:[#allocation9 + $0x148] sm:$0xff]
    %v1048 = vld [vmem:[#allocation9 + $0x150] sm:$0xff]
    %v1049 = vld [vmem:[#allocation9 + $0x158] sm:$0xff]
    %v1050 = vld [vmem:[#allocation9 + $0x160] sm:$0xff]
    %v1051 = vld [vmem:[#allocation9 + $0x168] sm:$0xff]
    %v1052 = vld [vmem:[#allocation9 + $0x170] sm:$0xff]
    %v1053 = vld [vmem:[#allocation9 + $0x178] sm:$0xff]
    %v1054 = vld [vmem:[#allocation9 + $0x180] sm:$0xff]
    %v1055 = vld [vmem:[#allocation9 + $0x188] sm:$0xff]
    %v1056 = vld [vmem:[#allocation9 + $0x190] sm:$0xff]
    %v1057 = vld [vmem:[#allocation9 + $0x198] sm:$0xff]
    %v1058 = vld [vmem:[#allocation9 + $0x1a0] sm:$0xff]
    %v1059 = vld [vmem:[#allocation9 + $0x1a8] sm:$0xff]
    %v1060 = vld [vmem:[#allocation9 + $0x1b0] sm:$0xff]
    %v1061 = vld [vmem:[#allocation9 + $0x1b8] sm:$0xff]
    %v1062 = vld [vmem:[#allocation9 + $0x1c0] sm:$0xff]
    %v1063 = vld [vmem:[#allocation9 + $0x1c8] sm:$0xff]
    %v1064 = vld [vmem:[#allocation9 + $0x1d0] sm:$0xff]
    %v1065 = vld [vmem:[#allocation9 + $0x1d8] sm:$0xff]
    %v1066 = vld [vmem:[#allocation9 + $0x1e0] sm:$0xff]
    %v1067 = vld [vmem:[#allocation9 + $0x1e8] sm:$0xff]
    %v1068 = vld [vmem:[#allocation9 + $0x1f0] sm:$0xff]
    %v1069 = vld [vmem:[#allocation9 + $0x1f8] sm:$0xff]
    %1070 = vmatpush.msra.mxu0 %v1066
    %1071 = vmatpush.msra.mxu0 %v1062
    %1072 = vmatpush.msra.mxu0 %v1058
    %1073 = vmatpush.msra.mxu0 %v1054
    %1074 = vmatpush.msra.mxu0 %v1050
    %1075 = vmatpush.msra.mxu0 %v1046
    %1076 = vmatpush.msra.mxu0 %v1042
    %1077 = vmatpush.msra.mxu0 %v1038
    %1078 = vmatpush.msra.mxu0 %v1034
    %1079 = vmatpush.msra.mxu0 %v1030
    %1080 = vmatpush.msra.mxu0 %v1026
    %1081 = vmatpush.msra.mxu0 %v1022
    %1082 = vmatpush.msra.mxu0 %v1018
    %1083 = vmatpush.msra.mxu0 %v1014
    %1084 = vmatpush.msra.mxu0 %v1010
    %1085 = vmatpush.msra.mxu0 %v1006
    %1086 = vmatmul.f32.gmra.mxu0 %v912
    %v1087 = vpop.f32.mrf.mxu0
    %v1088 = vadd.f32 0.0, %v1087
    %1089 = vdwg.mxu0
    %1090 = vmatpush.msra.mxu0 %v1067
    %1091 = vmatpush.msra.mxu0 %v1063
    %1092 = vmatpush.msra.mxu0 %v1059
    %1093 = vmatpush.msra.mxu0 %v1055
    %1094 = vmatpush.msra.mxu0 %v1051
    %1095 = vmatpush.msra.mxu0 %v1047
    %1096 = vmatpush.msra.mxu0 %v1043
    %1097 = vmatpush.msra.mxu0 %v1039
    %1098 = vmatpush.msra.mxu0 %v1035
    %1099 = vmatpush.msra.mxu0 %v1031
    %1100 = vmatpush.msra.mxu0 %v1027
    %1101 = vmatpush.msra.mxu0 %v1023
    %1102 = vmatpush.msra.mxu0 %v1019
    %1103 = vmatpush.msra.mxu0 %v1015
    %1104 = vmatpush.msra.mxu0 %v1011
    %1105 = vmatpush.msra.mxu0 %v1007
    %1106 = vmatmul.f32.gmra.mxu0 %v912
    %v1107 = vpop.f32.mrf.mxu0
    %v1108 = vadd.f32 0.0, %v1107
    %1109 = vdwg.mxu0
    %1110 = vmatpush.msra.mxu0 %v1068
    %1111 = vmatpush.msra.mxu0 %v1064
    %1112 = vmatpush.msra.mxu0 %v1060
    %1113 = vmatpush.msra.mxu0 %v1056
    %1114 = vmatpush.msra.mxu0 %v1052
    %1115 = vmatpush.msra.mxu0 %v1048
    %1116 = vmatpush.msra.mxu0 %v1044
    %1117 = vmatpush.msra.mxu0 %v1040
    %1118 = vmatpush.msra.mxu0 %v1036
    %1119 = vmatpush.msra.mxu0 %v1032
    %1120 = vmatpush.msra.mxu0 %v1028
    %1121 = vmatpush.msra.mxu0 %v1024
    %1122 = vmatpush.msra.mxu0 %v1020
    %1123 = vmatpush.msra.mxu0 %v1016
    %1124 = vmatpush.msra.mxu0 %v1012
    %1125 = vmatpush.msra.mxu0 %v1008
    %1126 = vmatmul.f32.gmra.mxu0 %v912
    %v1127 = vpop.f32.mrf.mxu0
    %v1128 = vadd.f32 0.0, %v1127
    %1129 = vdwg.mxu0
    %1130 = vmatpush.msra.mxu0 %v1069
    %1131 = vmatpush.msra.mxu0 %v1065
    %1132 = vmatpush.msra.mxu0 %v1061
    %1133 = vmatpush.msra.mxu0 %v1057
    %1134 = vmatpush.msra.mxu0 %v1053
    %1135 = vmatpush.msra.mxu0 %v1049
    %1136 = vmatpush.msra.mxu0 %v1045
    %1137 = vmatpush.msra.mxu0 %v1041
    %1138 = vmatpush.msra.mxu0 %v1037
    %1139 = vmatpush.msra.mxu0 %v1033
    %1140 = vmatpush.msra.mxu0 %v1029
    %1141 = vmatpush.msra.mxu0 %v1025
    %1142 = vmatpush.msra.mxu0 %v1021
    %1143 = vmatpush.msra.mxu0 %v1017
    %1144 = vmatpush.msra.mxu0 %v1013
    %1145 = vmatpush.msra.mxu0 %v1009
    %1146 = vmatmul.f32.gmra.mxu0 %v912
    %v1147 = vpop.f32.mrf.mxu0
    %v1148 = vadd.f32 0.0, %v1147
    %1149 = vdwg.mxu0
    %v1150 = vadd.f32 %v1002, %v1088
    %v1151 = vadd.f32 %v1003, %v1108
    %v1152 = vadd.f32 %v1004, %v1128
    %v1153 = vadd.f32 %v1005, %v1148
    %s1154 = smul.u32 6, 8
    %s1155 = smul.addr %s1154, 8
    %s1156 = scalar_lea.vmem [#allocation2], %s1155
    %v1157 = vld [vmem:[%s1156 + $0x20] sm:$0xff]
    %v1158 = vld [vmem:[%s1156 + $0x28] sm:$0xff]
    %v1159 = vld [vmem:[%s1156 + $0x30] sm:$0xff]
    %v1160 = vld [vmem:[%s1156 + $0x38] sm:$0xff]
    %v1161 = vld [vmem:[#allocation11] sm:$0xff]
    %v1162 = vld [vmem:[#allocation11 + $0x8] sm:$0xff]
    %v1163 = vld [vmem:[#allocation11 + $0x10] sm:$0xff]
    %v1164 = vld [vmem:[#allocation11 + $0x18] sm:$0xff]
    %v1165 = vld [vmem:[#allocation11 + $0x20] sm:$0xff]
    %v1166 = vld [vmem:[#allocation11 + $0x28] sm:$0xff]
    %v1167 = vld [vmem:[#allocation11 + $0x30] sm:$0xff]
    %v1168 = vld [vmem:[#allocation11 + $0x38] sm:$0xff]
    %v1169 = vld [vmem:[#allocation11 + $0x40] sm:$0xff]
    %v1170 = vld [vmem:[#allocation11 + $0x48] sm:$0xff]
    %v1171 = vld [vmem:[#allocation11 + $0x50] sm:$0xff]
    %v1172 = vld [vmem:[#allocation11 + $0x58] sm:$0xff]
    %v1173 = vld [vmem:[#allocation11 + $0x60] sm:$0xff]
    %v1174 = vld [vmem:[#allocation11 + $0x68] sm:$0xff]
    %v1175 = vld [vmem:[#allocation11 + $0x70] sm:$0xff]
    %v1176 = vld [vmem:[#allocation11 + $0x78] sm:$0xff]
    %v1177 = vld [vmem:[#allocation11 + $0x80] sm:$0xff]
    %v1178 = vld [vmem:[#allocation11 + $0x88] sm:$0xff]
    %v1179 = vld [vmem:[#allocation11 + $0x90] sm:$0xff]
    %v1180 = vld [vmem:[#allocation11 + $0x98] sm:$0xff]
    %v1181 = vld [vmem:[#allocation11 + $0xa0] sm:$0xff]
    %v1182 = vld [vmem:[#allocation11 + $0xa8] sm:$0xff]
    %v1183 = vld [vmem:[#allocation11 + $0xb0] sm:$0xff]
    %v1184 = vld [vmem:[#allocation11 + $0xb8] sm:$0xff]
    %v1185 = vld [vmem:[#allocation11 + $0xc0] sm:$0xff]
    %v1186 = vld [vmem:[#allocation11 + $0xc8] sm:$0xff]
    %v1187 = vld [vmem:[#allocation11 + $0xd0] sm:$0xff]
    %v1188 = vld [vmem:[#allocation11 + $0xd8] sm:$0xff]
    %v1189 = vld [vmem:[#allocation11 + $0xe0] sm:$0xff]
    %v1190 = vld [vmem:[#allocation11 + $0xe8] sm:$0xff]
    %v1191 = vld [vmem:[#allocation11 + $0xf0] sm:$0xff]
    %v1192 = vld [vmem:[#allocation11 + $0xf8] sm:$0xff]
    %v1193 = vld [vmem:[#allocation11 + $0x100] sm:$0xff]
    %v1194 = vld [vmem:[#allocation11 + $0x108] sm:$0xff]
    %v1195 = vld [vmem:[#allocation11 + $0x110] sm:$0xff]
    %v1196 = vld [vmem:[#allocation11 + $0x118] sm:$0xff]
    %v1197 = vld [vmem:[#allocation11 + $0x120] sm:$0xff]
    %v1198 = vld [vmem:[#allocation11 + $0x128] sm:$0xff]
    %v1199 = vld [vmem:[#allocation11 + $0x130] sm:$0xff]
    %v1200 = vld [vmem:[#allocation11 + $0x138] sm:$0xff]
    %v1201 = vld [vmem:[#allocation11 + $0x140] sm:$0xff]
    %v1202 = vld [vmem:[#allocation11 + $0x148] sm:$0xff]
    %v1203 = vld [vmem:[#allocation11 + $0x150] sm:$0xff]
    %v1204 = vld [vmem:[#allocation11 + $0x158] sm:$0xff]
    %v1205 = vld [vmem:[#allocation11 + $0x160] sm:$0xff]
    %v1206 = vld [vmem:[#allocation11 + $0x168] sm:$0xff]
    %v1207 = vld [vmem:[#allocation11 + $0x170] sm:$0xff]
    %v1208 = vld [vmem:[#allocation11 + $0x178] sm:$0xff]
    %v1209 = vld [vmem:[#allocation11 + $0x180] sm:$0xff]
    %v1210 = vld [vmem:[#allocation11 + $0x188] sm:$0xff]
    %v1211 = vld [vmem:[#allocation11 + $0x190] sm:$0xff]
    %v1212 = vld [vmem:[#allocation11 + $0x198] sm:$0xff]
    %v1213 = vld [vmem:[#allocation11 + $0x1a0] sm:$0xff]
    %v1214 = vld [vmem:[#allocation11 + $0x1a8] sm:$0xff]
    %v1215 = vld [vmem:[#allocation11 + $0x1b0] sm:$0xff]
    %v1216 = vld [vmem:[#allocation11 + $0x1b8] sm:$0xff]
    %v1217 = vld [vmem:[#allocation11 + $0x1c0] sm:$0xff]
    %v1218 = vld [vmem:[#allocation11 + $0x1c8] sm:$0xff]
    %v1219 = vld [vmem:[#allocation11 + $0x1d0] sm:$0xff]
    %v1220 = vld [vmem:[#allocation11 + $0x1d8] sm:$0xff]
    %v1221 = vld [vmem:[#allocation11 + $0x1e0] sm:$0xff]
    %v1222 = vld [vmem:[#allocation11 + $0x1e8] sm:$0xff]
    %v1223 = vld [vmem:[#allocation11 + $0x1f0] sm:$0xff]
    %v1224 = vld [vmem:[#allocation11 + $0x1f8] sm:$0xff]
    %1225 = vmatpush.msra.mxu0 %v1221
    %1226 = vmatpush.msra.mxu0 %v1217
    %1227 = vmatpush.msra.mxu0 %v1213
    %1228 = vmatpush.msra.mxu0 %v1209
    %1229 = vmatpush.msra.mxu0 %v1205
    %1230 = vmatpush.msra.mxu0 %v1201
    %1231 = vmatpush.msra.mxu0 %v1197
    %1232 = vmatpush.msra.mxu0 %v1193
    %1233 = vmatpush.msra.mxu0 %v1189
    %1234 = vmatpush.msra.mxu0 %v1185
    %1235 = vmatpush.msra.mxu0 %v1181
    %1236 = vmatpush.msra.mxu0 %v1177
    %1237 = vmatpush.msra.mxu0 %v1173
    %1238 = vmatpush.msra.mxu0 %v1169
    %1239 = vmatpush.msra.mxu0 %v1165
    %1240 = vmatpush.msra.mxu0 %v1161
    %1241 = vmatmul.f32.gmra.mxu0 %v975
    %v1242 = vpop.f32.mrf.mxu0
    %v1243 = vadd.f32 0.0, %v1242
    %1244 = vdwg.mxu0
    %1245 = vmatpush.msra.mxu0 %v1222
    %1246 = vmatpush.msra.mxu0 %v1218
    %1247 = vmatpush.msra.mxu0 %v1214
    %1248 = vmatpush.msra.mxu0 %v1210
    %1249 = vmatpush.msra.mxu0 %v1206
    %1250 = vmatpush.msra.mxu0 %v1202
    %1251 = vmatpush.msra.mxu0 %v1198
    %1252 = vmatpush.msra.mxu0 %v1194
    %1253 = vmatpush.msra.mxu0 %v1190
    %1254 = vmatpush.msra.mxu0 %v1186
    %1255 = vmatpush.msra.mxu0 %v1182
    %1256 = vmatpush.msra.mxu0 %v1178
    %1257 = vmatpush.msra.mxu0 %v1174
    %1258 = vmatpush.msra.mxu0 %v1170
    %1259 = vmatpush.msra.mxu0 %v1166
    %1260 = vmatpush.msra.mxu0 %v1162
    %1261 = vmatmul.f32.gmra.mxu0 %v975
    %v1262 = vpop.f32.mrf.mxu0
    %v1263 = vadd.f32 0.0, %v1262
    %1264 = vdwg.mxu0
    %1265 = vmatpush.msra.mxu0 %v1223
    %1266 = vmatpush.msra.mxu0 %v1219
    %1267 = vmatpush.msra.mxu0 %v1215
    %1268 = vmatpush.msra.mxu0 %v1211
    %1269 = vmatpush.msra.mxu0 %v1207
    %1270 = vmatpush.msra.mxu0 %v1203
    %1271 = vmatpush.msra.mxu0 %v1199
    %1272 = vmatpush.msra.mxu0 %v1195
    %1273 = vmatpush.msra.mxu0 %v1191
    %1274 = vmatpush.msra.mxu0 %v1187
    %1275 = vmatpush.msra.mxu0 %v1183
    %1276 = vmatpush.msra.mxu0 %v1179
    %1277 = vmatpush.msra.mxu0 %v1175
    %1278 = vmatpush.msra.mxu0 %v1171
    %1279 = vmatpush.msra.mxu0 %v1167
    %1280 = vmatpush.msra.mxu0 %v1163
    %1281 = vmatmul.f32.gmra.mxu0 %v975
    %v1282 = vpop.f32.mrf.mxu0
    %v1283 = vadd.f32 0.0, %v1282
    %1284 = vdwg.mxu0
    %1285 = vmatpush.msra.mxu0 %v1224
    %1286 = vmatpush.msra.mxu0 %v1220
    %1287 = vmatpush.msra.mxu0 %v1216
    %1288 = vmatpush.msra.mxu0 %v1212
    %1289 = vmatpush.msra.mxu0 %v1208
    %1290 = vmatpush.msra.mxu0 %v1204
    %1291 = vmatpush.msra.mxu0 %v1200
    %1292 = vmatpush.msra.mxu0 %v1196
    %1293 = vmatpush.msra.mxu0 %v1192
    %1294 = vmatpush.msra.mxu0 %v1188
    %1295 = vmatpush.msra.mxu0 %v1184
    %1296 = vmatpush.msra.mxu0 %v1180
    %1297 = vmatpush.msra.mxu0 %v1176
    %1298 = vmatpush.msra.mxu0 %v1172
    %1299 = vmatpush.msra.mxu0 %v1168
    %1300 = vmatpush.msra.mxu0 %v1164
    %1301 = vmatmul.f32.gmra.mxu0 %v975
    %v1302 = vpop.f32.mrf.mxu0
    %v1303 = vadd.f32 0.0, %v1302
    %1304 = vdwg.mxu0
    %v1305 = vadd.f32 %v1157, %v1243
    %v1306 = vadd.f32 %v1158, %v1263
    %v1307 = vadd.f32 %v1159, %v1283
    %v1308 = vadd.f32 %v1160, %v1303
    %v1309 = vxor.u32 %v1150, 2147483648
    %v1310 = vmul.f32 %v1309, 1.442695
    %v1311 = vpow.pop %v1310
    %v1312 = vadd.f32 %v1311, 1.0
    %v1313 = vrcp.pop %v1312
    %v1314 = vmul.f32 %v1312, %v1313
    %v1315 = vsub.f32 1.0, %v1314
    %v1316 = vmul.f32 %v1313, %v1315
    %v1317 = vadd.f32 %v1313, %v1316
    %vm1318 = vweird.f32 %v1312
    %vm1319 = vweird.f32 %v1313
    %vm1320 = vmor %vm1318, %vm1319
    %v1321 = vsel %vm1320, %v1313, %v1317
    %v1322 = vand.u32 2147483647, %v1312
    %vm1323 = vcmp.eq.f32.partialorder %v1322, 8.507059e+37
    %v1324 = vand.u32 %v1312, 2147483648
    %v1325 = vor.u32 1.1754944e-38, %v1324
    %v1326 = vsel %vm1323, %v1325, %v1321
    %v1327 = vmul.f32 1.0, %v1326
    %v1328 = vxor.u32 %v1151, 2147483648
    %v1329 = vmul.f32 %v1328, 1.442695
    %v1330 = vpow.pop %v1329
    %v1331 = vadd.f32 %v1330, 1.0
    %v1332 = vrcp.pop %v1331
    %v1333 = vmul.f32 %v1331, %v1332
    %v1334 = vsub.f32 1.0, %v1333
    %v1335 = vmul.f32 %v1332, %v1334
    %v1336 = vadd.f32 %v1332, %v1335
    %vm1337 = vweird.f32 %v1331
    %vm1338 = vweird.f32 %v1332
    %vm1339 = vmor %vm1337, %vm1338
    %v1340 = vsel %vm1339, %v1332, %v1336
    %v1341 = vand.u32 2147483647, %v1331
    %vm1342 = vcmp.eq.f32.partialorder %v1341, 8.507059e+37
    %v1343 = vand.u32 %v1331, 2147483648
    %v1344 = vor.u32 1.1754944e-38, %v1343
    %v1345 = vsel %vm1342, %v1344, %v1340
    %v1346 = vmul.f32 1.0, %v1345
    %v1347 = vtanh.pop %v1152
    %v1348 = vxor.u32 %v1153, 2147483648
    %v1349 = vmul.f32 %v1348, 1.442695
    %v1350 = vpow.pop %v1349
    %v1351 = vadd.f32 %v1350, 1.0
    %v1352 = vrcp.pop %v1351
    %v1353 = vmul.f32 %v1351, %v1352
    %v1354 = vsub.f32 1.0, %v1353
    %v1355 = vmul.f32 %v1352, %v1354
    %v1356 = vadd.f32 %v1352, %v1355
    %vm1357 = vweird.f32 %v1351
    %vm1358 = vweird.f32 %v1352
    %vm1359 = vmor %vm1357, %vm1358
    %v1360 = vsel %vm1359, %v1352, %v1356
    %v1361 = vand.u32 2147483647, %v1351
    %vm1362 = vcmp.eq.f32.partialorder %v1361, 8.507059e+37
    %v1363 = vand.u32 %v1351, 2147483648
    %v1364 = vor.u32 1.1754944e-38, %v1363
    %v1365 = vsel %vm1362, %v1364, %v1360
    %v1366 = vmul.f32 1.0, %v1365
    %v1367 = vmul.f32 %v1346, %v910
    %v1368 = vmul.f32 %v1327, %v1347
    %v1369 = vadd.f32 %v1367, %v1368
    %v1370 = vtanh.pop %v1369
    %v1371 = vmul.f32 %v1366, %v1370
    %v1372 = vxor.u32 %v1305, 2147483648
    %v1373 = vmul.f32 %v1372, 1.442695
    %v1374 = vpow.pop %v1373
    %v1375 = vadd.f32 %v1374, 1.0
    %v1376 = vrcp.pop %v1375
    %v1377 = vmul.f32 %v1375, %v1376
    %v1378 = vsub.f32 1.0, %v1377
    %v1379 = vmul.f32 %v1376, %v1378
    %v1380 = vadd.f32 %v1376, %v1379
    %vm1381 = vweird.f32 %v1375
    %vm1382 = vweird.f32 %v1376
    %vm1383 = vmor %vm1381, %vm1382
    %v1384 = vsel %vm1383, %v1376, %v1380
    %v1385 = vand.u32 2147483647, %v1375
    %vm1386 = vcmp.eq.f32.partialorder %v1385, 8.507059e+37
    %v1387 = vand.u32 %v1375, 2147483648
    %v1388 = vor.u32 1.1754944e-38, %v1387
    %v1389 = vsel %vm1386, %v1388, %v1384
    %v1390 = vmul.f32 1.0, %v1389
    %v1391 = vxor.u32 %v1306, 2147483648
    %v1392 = vmul.f32 %v1391, 1.442695
    %v1393 = vpow.pop %v1392
    %v1394 = vadd.f32 %v1393, 1.0
    %v1395 = vrcp.pop %v1394
    %v1396 = vmul.f32 %v1394, %v1395
    %v1397 = vsub.f32 1.0, %v1396
    %v1398 = vmul.f32 %v1395, %v1397
    %v1399 = vadd.f32 %v1395, %v1398
    %vm1400 = vweird.f32 %v1394
    %vm1401 = vweird.f32 %v1395
    %vm1402 = vmor %vm1400, %vm1401
    %v1403 = vsel %vm1402, %v1395, %v1399
    %v1404 = vand.u32 2147483647, %v1394
    %vm1405 = vcmp.eq.f32.partialorder %v1404, 8.507059e+37
    %v1406 = vand.u32 %v1394, 2147483648
    %v1407 = vor.u32 1.1754944e-38, %v1406
    %v1408 = vsel %vm1405, %v1407, %v1403
    %v1409 = vmul.f32 1.0, %v1408
    %v1410 = vtanh.pop %v1307
    %v1411 = vxor.u32 %v1308, 2147483648
    %v1412 = vmul.f32 %v1411, 1.442695
    %v1413 = vpow.pop %v1412
    %v1414 = vadd.f32 %v1413, 1.0
    %v1415 = vrcp.pop %v1414
    %v1416 = vmul.f32 %v1414, %v1415
    %v1417 = vsub.f32 1.0, %v1416
    %v1418 = vmul.f32 %v1415, %v1417
    %v1419 = vadd.f32 %v1415, %v1418
    %vm1420 = vweird.f32 %v1414
    %vm1421 = vweird.f32 %v1415
    %vm1422 = vmor %vm1420, %vm1421
    %v1423 = vsel %vm1422, %v1415, %v1419
    %v1424 = vand.u32 2147483647, %v1414
    %vm1425 = vcmp.eq.f32.partialorder %v1424, 8.507059e+37
    %v1426 = vand.u32 %v1414, 2147483648
    %v1427 = vor.u32 1.1754944e-38, %v1426
    %v1428 = vsel %vm1425, %v1427, %v1423
    %v1429 = vmul.f32 1.0, %v1428
    %v1430 = vmul.f32 %v1409, %v973
    %v1431 = vmul.f32 %v1390, %v1410
    %v1432 = vadd.f32 %v1430, %v1431
    %v1433 = vtanh.pop %v1432
    %v1434 = vmul.f32 %v1429, %v1433
    %v1435 = vmul.f32 %v1371, %v977
    %1436 = vadd.xlane.f32.xlu0 %v1435
    %v1437 = vpop.xlane.xlu0 %1436
    %v1439 = vperm.slane %v1437, %v984
    %1441 = vst.msk [vmem:[#allocation3 + $0x1] sm:$0x1] %vm987, %v1439
    %v1442 = vmul.f32 %v1434, %v990
    %1443 = vadd.xlane.f32.xlu0 %v1442
    %v1444 = vpop.xlane.xlu0 %1443
    %v1446 = vperm.slane %v1444, %v984
    %1448 = vst.msk [vmem:[#allocation4 + $0x6] sm:$0x1] %vm987, %v1446
    %s1449 = smul.u32 2, 8
    %s1450 = smul.addr %s1449, 8
    %s1451 = scalar_lea.vmem [#allocation2], %s1450
    %v1452 = vld [vmem:[%s1451] sm:$0xff]
    %v1453 = vld [vmem:[%s1451 + $0x8] sm:$0xff]
    %v1454 = vld [vmem:[%s1451 + $0x10] sm:$0xff]
    %v1455 = vld [vmem:[%s1451 + $0x18] sm:$0xff]
    %v1456 = vld [vmem:[#allocation9] sm:$0xff]
    %v1457 = vld [vmem:[#allocation9 + $0x8] sm:$0xff]
    %v1458 = vld [vmem:[#allocation9 + $0x10] sm:$0xff]
    %v1459 = vld [vmem:[#allocation9 + $0x18] sm:$0xff]
    %v1460 = vld [vmem:[#allocation9 + $0x20] sm:$0xff]
    %v1461 = vld [vmem:[#allocation9 + $0x28] sm:$0xff]
    %v1462 = vld [vmem:[#allocation9 + $0x30] sm:$0xff]
    %v1463 = vld [vmem:[#allocation9 + $0x38] sm:$0xff]
    %v1464 = vld [vmem:[#allocation9 + $0x40] sm:$0xff]
    %v1465 = vld [vmem:[#allocation9 + $0x48] sm:$0xff]
    %v1466 = vld [vmem:[#allocation9 + $0x50] sm:$0xff]
    %v1467 = vld [vmem:[#allocation9 + $0x58] sm:$0xff]
    %v1468 = vld [vmem:[#allocation9 + $0x60] sm:$0xff]
    %v1469 = vld [vmem:[#allocation9 + $0x68] sm:$0xff]
    %v1470 = vld [vmem:[#allocation9 + $0x70] sm:$0xff]
    %v1471 = vld [vmem:[#allocation9 + $0x78] sm:$0xff]
    %v1472 = vld [vmem:[#allocation9 + $0x80] sm:$0xff]
    %v1473 = vld [vmem:[#allocation9 + $0x88] sm:$0xff]
    %v1474 = vld [vmem:[#allocation9 + $0x90] sm:$0xff]
    %v1475 = vld [vmem:[#allocation9 + $0x98] sm:$0xff]
    %v1476 = vld [vmem:[#allocation9 + $0xa0] sm:$0xff]
    %v1477 = vld [vmem:[#allocation9 + $0xa8] sm:$0xff]
    %v1478 = vld [vmem:[#allocation9 + $0xb0] sm:$0xff]
    %v1479 = vld [vmem:[#allocation9 + $0xb8] sm:$0xff]
    %v1480 = vld [vmem:[#allocation9 + $0xc0] sm:$0xff]
    %v1481 = vld [vmem:[#allocation9 + $0xc8] sm:$0xff]
    %v1482 = vld [vmem:[#allocation9 + $0xd0] sm:$0xff]
    %v1483 = vld [vmem:[#allocation9 + $0xd8] sm:$0xff]
    %v1484 = vld [vmem:[#allocation9 + $0xe0] sm:$0xff]
    %v1485 = vld [vmem:[#allocation9 + $0xe8] sm:$0xff]
    %v1486 = vld [vmem:[#allocation9 + $0xf0] sm:$0xff]
    %v1487 = vld [vmem:[#allocation9 + $0xf8] sm:$0xff]
    %v1488 = vld [vmem:[#allocation9 + $0x100] sm:$0xff]
    %v1489 = vld [vmem:[#allocation9 + $0x108] sm:$0xff]
    %v1490 = vld [vmem:[#allocation9 + $0x110] sm:$0xff]
    %v1491 = vld [vmem:[#allocation9 + $0x118] sm:$0xff]
    %v1492 = vld [vmem:[#allocation9 + $0x120] sm:$0xff]
    %v1493 = vld [vmem:[#allocation9 + $0x128] sm:$0xff]
    %v1494 = vld [vmem:[#allocation9 + $0x130] sm:$0xff]
    %v1495 = vld [vmem:[#allocation9 + $0x138] sm:$0xff]
    %v1496 = vld [vmem:[#allocation9 + $0x140] sm:$0xff]
    %v1497 = vld [vmem:[#allocation9 + $0x148] sm:$0xff]
    %v1498 = vld [vmem:[#allocation9 + $0x150] sm:$0xff]
    %v1499 = vld [vmem:[#allocation9 + $0x158] sm:$0xff]
    %v1500 = vld [vmem:[#allocation9 + $0x160] sm:$0xff]
    %v1501 = vld [vmem:[#allocation9 + $0x168] sm:$0xff]
    %v1502 = vld [vmem:[#allocation9 + $0x170] sm:$0xff]
    %v1503 = vld [vmem:[#allocation9 + $0x178] sm:$0xff]
    %v1504 = vld [vmem:[#allocation9 + $0x180] sm:$0xff]
    %v1505 = vld [vmem:[#allocation9 + $0x188] sm:$0xff]
    %v1506 = vld [vmem:[#allocation9 + $0x190] sm:$0xff]
    %v1507 = vld [vmem:[#allocation9 + $0x198] sm:$0xff]
    %v1508 = vld [vmem:[#allocation9 + $0x1a0] sm:$0xff]
    %v1509 = vld [vmem:[#allocation9 + $0x1a8] sm:$0xff]
    %v1510 = vld [vmem:[#allocation9 + $0x1b0] sm:$0xff]
    %v1511 = vld [vmem:[#allocation9 + $0x1b8] sm:$0xff]
    %v1512 = vld [vmem:[#allocation9 + $0x1c0] sm:$0xff]
    %v1513 = vld [vmem:[#allocation9 + $0x1c8] sm:$0xff]
    %v1514 = vld [vmem:[#allocation9 + $0x1d0] sm:$0xff]
    %v1515 = vld [vmem:[#allocation9 + $0x1d8] sm:$0xff]
    %v1516 = vld [vmem:[#allocation9 + $0x1e0] sm:$0xff]
    %v1517 = vld [vmem:[#allocation9 + $0x1e8] sm:$0xff]
    %v1518 = vld [vmem:[#allocation9 + $0x1f0] sm:$0xff]
    %v1519 = vld [vmem:[#allocation9 + $0x1f8] sm:$0xff]
    %1520 = vmatpush.msra.mxu0 %v1516
    %1521 = vmatpush.msra.mxu0 %v1512
    %1522 = vmatpush.msra.mxu0 %v1508
    %1523 = vmatpush.msra.mxu0 %v1504
    %1524 = vmatpush.msra.mxu0 %v1500
    %1525 = vmatpush.msra.mxu0 %v1496
    %1526 = vmatpush.msra.mxu0 %v1492
    %1527 = vmatpush.msra.mxu0 %v1488
    %1528 = vmatpush.msra.mxu0 %v1484
    %1529 = vmatpush.msra.mxu0 %v1480
    %1530 = vmatpush.msra.mxu0 %v1476
    %1531 = vmatpush.msra.mxu0 %v1472
    %1532 = vmatpush.msra.mxu0 %v1468
    %1533 = vmatpush.msra.mxu0 %v1464
    %1534 = vmatpush.msra.mxu0 %v1460
    %1535 = vmatpush.msra.mxu0 %v1456
    %1536 = vmatmul.f32.gmra.mxu0 %v1371
    %v1537 = vpop.f32.mrf.mxu0
    %v1538 = vadd.f32 0.0, %v1537
    %1539 = vdwg.mxu0
    %1540 = vmatpush.msra.mxu0 %v1517
    %1541 = vmatpush.msra.mxu0 %v1513
    %1542 = vmatpush.msra.mxu0 %v1509
    %1543 = vmatpush.msra.mxu0 %v1505
    %1544 = vmatpush.msra.mxu0 %v1501
    %1545 = vmatpush.msra.mxu0 %v1497
    %1546 = vmatpush.msra.mxu0 %v1493
    %1547 = vmatpush.msra.mxu0 %v1489
    %1548 = vmatpush.msra.mxu0 %v1485
    %1549 = vmatpush.msra.mxu0 %v1481
    %1550 = vmatpush.msra.mxu0 %v1477
    %1551 = vmatpush.msra.mxu0 %v1473
    %1552 = vmatpush.msra.mxu0 %v1469
    %1553 = vmatpush.msra.mxu0 %v1465
    %1554 = vmatpush.msra.mxu0 %v1461
    %1555 = vmatpush.msra.mxu0 %v1457
    %1556 = vmatmul.f32.gmra.mxu0 %v1371
    %v1557 = vpop.f32.mrf.mxu0
    %v1558 = vadd.f32 0.0, %v1557
    %1559 = vdwg.mxu0
    %1560 = vmatpush.msra.mxu0 %v1518
    %1561 = vmatpush.msra.mxu0 %v1514
    %1562 = vmatpush.msra.mxu0 %v1510
    %1563 = vmatpush.msra.mxu0 %v1506
    %1564 = vmatpush.msra.mxu0 %v1502
    %1565 = vmatpush.msra.mxu0 %v1498
    %1566 = vmatpush.msra.mxu0 %v1494
    %1567 = vmatpush.msra.mxu0 %v1490
    %1568 = vmatpush.msra.mxu0 %v1486
    %1569 = vmatpush.msra.mxu0 %v1482
    %1570 = vmatpush.msra.mxu0 %v1478
    %1571 = vmatpush.msra.mxu0 %v1474
    %1572 = vmatpush.msra.mxu0 %v1470
    %1573 = vmatpush.msra.mxu0 %v1466
    %1574 = vmatpush.msra.mxu0 %v1462
    %1575 = vmatpush.msra.mxu0 %v1458
    %1576 = vmatmul.f32.gmra.mxu0 %v1371
    %v1577 = vpop.f32.mrf.mxu0
    %v1578 = vadd.f32 0.0, %v1577
    %1579 = vdwg.mxu0
    %1580 = vmatpush.msra.mxu0 %v1519
    %1581 = vmatpush.msra.mxu0 %v1515
    %1582 = vmatpush.msra.mxu0 %v1511
    %1583 = vmatpush.msra.mxu0 %v1507
    %1584 = vmatpush.msra.mxu0 %v1503
    %1585 = vmatpush.msra.mxu0 %v1499
    %1586 = vmatpush.msra.mxu0 %v1495
    %1587 = vmatpush.msra.mxu0 %v1491
    %1588 = vmatpush.msra.mxu0 %v1487
    %1589 = vmatpush.msra.mxu0 %v1483
    %1590 = vmatpush.msra.mxu0 %v1479
    %1591 = vmatpush.msra.mxu0 %v1475
    %1592 = vmatpush.msra.mxu0 %v1471
    %1593 = vmatpush.msra.mxu0 %v1467
    %1594 = vmatpush.msra.mxu0 %v1463
    %1595 = vmatpush.msra.mxu0 %v1459
    %1596 = vmatmul.f32.gmra.mxu0 %v1371
    %v1597 = vpop.f32.mrf.mxu0
    %v1598 = vadd.f32 0.0, %v1597
    %1599 = vdwg.mxu0
    %v1600 = vadd.f32 %v1452, %v1538
    %v1601 = vadd.f32 %v1453, %v1558
    %v1602 = vadd.f32 %v1454, %v1578
    %v1603 = vadd.f32 %v1455, %v1598
    %s1604 = smul.u32 5, 8
    %s1605 = smul.addr %s1604, 8
    %s1606 = scalar_lea.vmem [#allocation2], %s1605
    %v1607 = vld [vmem:[%s1606 + $0x20] sm:$0xff]
    %v1608 = vld [vmem:[%s1606 + $0x28] sm:$0xff]
    %v1609 = vld [vmem:[%s1606 + $0x30] sm:$0xff]
    %v1610 = vld [vmem:[%s1606 + $0x38] sm:$0xff]
    %v1611 = vld [vmem:[#allocation11] sm:$0xff]
    %v1612 = vld [vmem:[#allocation11 + $0x8] sm:$0xff]
    %v1613 = vld [vmem:[#allocation11 + $0x10] sm:$0xff]
    %v1614 = vld [vmem:[#allocation11 + $0x18] sm:$0xff]
    %v1615 = vld [vmem:[#allocation11 + $0x20] sm:$0xff]
    %v1616 = vld [vmem:[#allocation11 + $0x28] sm:$0xff]
    %v1617 = vld [vmem:[#allocation11 + $0x30] sm:$0xff]
    %v1618 = vld [vmem:[#allocation11 + $0x38] sm:$0xff]
    %v1619 = vld [vmem:[#allocation11 + $0x40] sm:$0xff]
    %v1620 = vld [vmem:[#allocation11 + $0x48] sm:$0xff]
    %v1621 = vld [vmem:[#allocation11 + $0x50] sm:$0xff]
    %v1622 = vld [vmem:[#allocation11 + $0x58] sm:$0xff]
    %v1623 = vld [vmem:[#allocation11 + $0x60] sm:$0xff]
    %v1624 = vld [vmem:[#allocation11 + $0x68] sm:$0xff]
    %v1625 = vld [vmem:[#allocation11 + $0x70] sm:$0xff]
    %v1626 = vld [vmem:[#allocation11 + $0x78] sm:$0xff]
    %v1627 = vld [vmem:[#allocation11 + $0x80] sm:$0xff]
    %v1628 = vld [vmem:[#allocation11 + $0x88] sm:$0xff]
    %v1629 = vld [vmem:[#allocation11 + $0x90] sm:$0xff]
    %v1630 = vld [vmem:[#allocation11 + $0x98] sm:$0xff]
    %v1631 = vld [vmem:[#allocation11 + $0xa0] sm:$0xff]
    %v1632 = vld [vmem:[#allocation11 + $0xa8] sm:$0xff]
    %v1633 = vld [vmem:[#allocation11 + $0xb0] sm:$0xff]
    %v1634 = vld [vmem:[#allocation11 + $0xb8] sm:$0xff]
    %v1635 = vld [vmem:[#allocation11 + $0xc0] sm:$0xff]
    %v1636 = vld [vmem:[#allocation11 + $0xc8] sm:$0xff]
    %v1637 = vld [vmem:[#allocation11 + $0xd0] sm:$0xff]
    %v1638 = vld [vmem:[#allocation11 + $0xd8] sm:$0xff]
    %v1639 = vld [vmem:[#allocation11 + $0xe0] sm:$0xff]
    %v1640 = vld [vmem:[#allocation11 + $0xe8] sm:$0xff]
    %v1641 = vld [vmem:[#allocation11 + $0xf0] sm:$0xff]
    %v1642 = vld [vmem:[#allocation11 + $0xf8] sm:$0xff]
    %v1643 = vld [vmem:[#allocation11 + $0x100] sm:$0xff]
    %v1644 = vld [vmem:[#allocation11 + $0x108] sm:$0xff]
    %v1645 = vld [vmem:[#allocation11 + $0x110] sm:$0xff]
    %v1646 = vld [vmem:[#allocation11 + $0x118] sm:$0xff]
    %v1647 = vld [vmem:[#allocation11 + $0x120] sm:$0xff]
    %v1648 = vld [vmem:[#allocation11 + $0x128] sm:$0xff]
    %v1649 = vld [vmem:[#allocation11 + $0x130] sm:$0xff]
    %v1650 = vld [vmem:[#allocation11 + $0x138] sm:$0xff]
    %v1651 = vld [vmem:[#allocation11 + $0x140] sm:$0xff]
    %v1652 = vld [vmem:[#allocation11 + $0x148] sm:$0xff]
    %v1653 = vld [vmem:[#allocation11 + $0x150] sm:$0xff]
    %v1654 = vld [vmem:[#allocation11 + $0x158] sm:$0xff]
    %v1655 = vld [vmem:[#allocation11 + $0x160] sm:$0xff]
    %v1656 = vld [vmem:[#allocation11 + $0x168] sm:$0xff]
    %v1657 = vld [vmem:[#allocation11 + $0x170] sm:$0xff]
    %v1658 = vld [vmem:[#allocation11 + $0x178] sm:$0xff]
    %v1659 = vld [vmem:[#allocation11 + $0x180] sm:$0xff]
    %v1660 = vld [vmem:[#allocation11 + $0x188] sm:$0xff]
    %v1661 = vld [vmem:[#allocation11 + $0x190] sm:$0xff]
    %v1662 = vld [vmem:[#allocation11 + $0x198] sm:$0xff]
    %v1663 = vld [vmem:[#allocation11 + $0x1a0] sm:$0xff]
    %v1664 = vld [vmem:[#allocation11 + $0x1a8] sm:$0xff]
    %v1665 = vld [vmem:[#allocation11 + $0x1b0] sm:$0xff]
    %v1666 = vld [vmem:[#allocation11 + $0x1b8] sm:$0xff]
    %v1667 = vld [vmem:[#allocation11 + $0x1c0] sm:$0xff]
    %v1668 = vld [vmem:[#allocation11 + $0x1c8] sm:$0xff]
    %v1669 = vld [vmem:[#allocation11 + $0x1d0] sm:$0xff]
    %v1670 = vld [vmem:[#allocation11 + $0x1d8] sm:$0xff]
    %v1671 = vld [vmem:[#allocation11 + $0x1e0] sm:$0xff]
    %v1672 = vld [vmem:[#allocation11 + $0x1e8] sm:$0xff]
    %v1673 = vld [vmem:[#allocation11 + $0x1f0] sm:$0xff]
    %v1674 = vld [vmem:[#allocation11 + $0x1f8] sm:$0xff]
    %1675 = vmatpush.msra.mxu0 %v1671
    %1676 = vmatpush.msra.mxu0 %v1667
    %1677 = vmatpush.msra.mxu0 %v1663
    %1678 = vmatpush.msra.mxu0 %v1659
    %1679 = vmatpush.msra.mxu0 %v1655
    %1680 = vmatpush.msra.mxu0 %v1651
    %1681 = vmatpush.msra.mxu0 %v1647
    %1682 = vmatpush.msra.mxu0 %v1643
    %1683 = vmatpush.msra.mxu0 %v1639
    %1684 = vmatpush.msra.mxu0 %v1635
    %1685 = vmatpush.msra.mxu0 %v1631
    %1686 = vmatpush.msra.mxu0 %v1627
    %1687 = vmatpush.msra.mxu0 %v1623
    %1688 = vmatpush.msra.mxu0 %v1619
    %1689 = vmatpush.msra.mxu0 %v1615
    %1690 = vmatpush.msra.mxu0 %v1611
    %1691 = vmatmul.f32.gmra.mxu0 %v1434
    %v1692 = vpop.f32.mrf.mxu0
    %v1693 = vadd.f32 0.0, %v1692
    %1694 = vdwg.mxu0
    %1695 = vmatpush.msra.mxu0 %v1672
    %1696 = vmatpush.msra.mxu0 %v1668
    %1697 = vmatpush.msra.mxu0 %v1664
    %1698 = vmatpush.msra.mxu0 %v1660
    %1699 = vmatpush.msra.mxu0 %v1656
    %1700 = vmatpush.msra.mxu0 %v1652
    %1701 = vmatpush.msra.mxu0 %v1648
    %1702 = vmatpush.msra.mxu0 %v1644
    %1703 = vmatpush.msra.mxu0 %v1640
    %1704 = vmatpush.msra.mxu0 %v1636
    %1705 = vmatpush.msra.mxu0 %v1632
    %1706 = vmatpush.msra.mxu0 %v1628
    %1707 = vmatpush.msra.mxu0 %v1624
    %1708 = vmatpush.msra.mxu0 %v1620
    %1709 = vmatpush.msra.mxu0 %v1616
    %1710 = vmatpush.msra.mxu0 %v1612
    %1711 = vmatmul.f32.gmra.mxu0 %v1434
    %v1712 = vpop.f32.mrf.mxu0
    %v1713 = vadd.f32 0.0, %v1712
    %1714 = vdwg.mxu0
    %1715 = vmatpush.msra.mxu0 %v1673
    %1716 = vmatpush.msra.mxu0 %v1669
    %1717 = vmatpush.msra.mxu0 %v1665
    %1718 = vmatpush.msra.mxu0 %v1661
    %1719 = vmatpush.msra.mxu0 %v1657
    %1720 = vmatpush.msra.mxu0 %v1653
    %1721 = vmatpush.msra.mxu0 %v1649
    %1722 = vmatpush.msra.mxu0 %v1645
    %1723 = vmatpush.msra.mxu0 %v1641
    %1724 = vmatpush.msra.mxu0 %v1637
    %1725 = vmatpush.msra.mxu0 %v1633
    %1726 = vmatpush.msra.mxu0 %v1629
    %1727 = vmatpush.msra.mxu0 %v1625
    %1728 = vmatpush.msra.mxu0 %v1621
    %1729 = vmatpush.msra.mxu0 %v1617
    %1730 = vmatpush.msra.mxu0 %v1613
    %1731 = vmatmul.f32.gmra.mxu0 %v1434
    %v1732 = vpop.f32.mrf.mxu0
    %v1733 = vadd.f32 0.0, %v1732
    %1734 = vdwg.mxu0
    %1735 = vmatpush.msra.mxu0 %v1674
    %1736 = vmatpush.msra.mxu0 %v1670
    %1737 = vmatpush.msra.mxu0 %v1666
    %1738 = vmatpush.msra.mxu0 %v1662
    %1739 = vmatpush.msra.mxu0 %v1658
    %1740 = vmatpush.msra.mxu0 %v1654
    %1741 = vmatpush.msra.mxu0 %v1650
    %1742 = vmatpush.msra.mxu0 %v1646
    %1743 = vmatpush.msra.mxu0 %v1642
    %1744 = vmatpush.msra.mxu0 %v1638
    %1745 = vmatpush.msra.mxu0 %v1634
    %1746 = vmatpush.msra.mxu0 %v1630
    %1747 = vmatpush.msra.mxu0 %v1626
    %1748 = vmatpush.msra.mxu0 %v1622
    %1749 = vmatpush.msra.mxu0 %v1618
    %1750 = vmatpush.msra.mxu0 %v1614
    %1751 = vmatmul.f32.gmra.mxu0 %v1434
    %v1752 = vpop.f32.mrf.mxu0
    %v1753 = vadd.f32 0.0, %v1752
    %1754 = vdwg.mxu0
    %v1755 = vadd.f32 %v1607, %v1693
    %v1756 = vadd.f32 %v1608, %v1713
    %v1757 = vadd.f32 %v1609, %v1733
    %v1758 = vadd.f32 %v1610, %v1753
    %v1759 = vxor.u32 %v1600, 2147483648
    %v1760 = vmul.f32 %v1759, 1.442695
    %v1761 = vpow.pop %v1760
    %v1762 = vadd.f32 %v1761, 1.0
    %v1763 = vrcp.pop %v1762
    %v1764 = vmul.f32 %v1762, %v1763
    %v1765 = vsub.f32 1.0, %v1764
    %v1766 = vmul.f32 %v1763, %v1765
    %v1767 = vadd.f32 %v1763, %v1766
    %vm1768 = vweird.f32 %v1762
    %vm1769 = vweird.f32 %v1763
    %vm1770 = vmor %vm1768, %vm1769
    %v1771 = vsel %vm1770, %v1763, %v1767
    %v1772 = vand.u32 2147483647, %v1762
    %vm1773 = vcmp.eq.f32.partialorder %v1772, 8.507059e+37
    %v1774 = vand.u32 %v1762, 2147483648
    %v1775 = vor.u32 1.1754944e-38, %v1774
    %v1776 = vsel %vm1773, %v1775, %v1771
    %v1777 = vmul.f32 1.0, %v1776
    %v1778 = vxor.u32 %v1601, 2147483648
    %v1779 = vmul.f32 %v1778, 1.442695
    %v1780 = vpow.pop %v1779
    %v1781 = vadd.f32 %v1780, 1.0
    %v1782 = vrcp.pop %v1781
    %v1783 = vmul.f32 %v1781, %v1782
    %v1784 = vsub.f32 1.0, %v1783
    %v1785 = vmul.f32 %v1782, %v1784
    %v1786 = vadd.f32 %v1782, %v1785
    %vm1787 = vweird.f32 %v1781
    %vm1788 = vweird.f32 %v1782
    %vm1789 = vmor %vm1787, %vm1788
    %v1790 = vsel %vm1789, %v1782, %v1786
    %v1791 = vand.u32 2147483647, %v1781
    %vm1792 = vcmp.eq.f32.partialorder %v1791, 8.507059e+37
    %v1793 = vand.u32 %v1781, 2147483648
    %v1794 = vor.u32 1.1754944e-38, %v1793
    %v1795 = vsel %vm1792, %v1794, %v1790
    %v1796 = vmul.f32 1.0, %v1795
    %v1797 = vtanh.pop %v1602
    %v1798 = vxor.u32 %v1603, 2147483648
    %v1799 = vmul.f32 %v1798, 1.442695
    %v1800 = vpow.pop %v1799
    %v1801 = vadd.f32 %v1800, 1.0
    %v1802 = vrcp.pop %v1801
    %v1803 = vmul.f32 %v1801, %v1802
    %v1804 = vsub.f32 1.0, %v1803
    %v1805 = vmul.f32 %v1802, %v1804
    %v1806 = vadd.f32 %v1802, %v1805
    %vm1807 = vweird.f32 %v1801
    %vm1808 = vweird.f32 %v1802
    %vm1809 = vmor %vm1807, %vm1808
    %v1810 = vsel %vm1809, %v1802, %v1806
    %v1811 = vand.u32 2147483647, %v1801
    %vm1812 = vcmp.eq.f32.partialorder %v1811, 8.507059e+37
    %v1813 = vand.u32 %v1801, 2147483648
    %v1814 = vor.u32 1.1754944e-38, %v1813
    %v1815 = vsel %vm1812, %v1814, %v1810
    %v1816 = vmul.f32 1.0, %v1815
    %v1817 = vmul.f32 %v1796, %v1369
    %v1818 = vmul.f32 %v1777, %v1797
    %v1819 = vadd.f32 %v1817, %v1818
    %v1820 = vtanh.pop %v1819
    %v1821 = vmul.f32 %v1816, %v1820
    %v1822 = vxor.u32 %v1755, 2147483648
    %v1823 = vmul.f32 %v1822, 1.442695
    %v1824 = vpow.pop %v1823
    %v1825 = vadd.f32 %v1824, 1.0
    %v1826 = vrcp.pop %v1825
    %v1827 = vmul.f32 %v1825, %v1826
    %v1828 = vsub.f32 1.0, %v1827
    %v1829 = vmul.f32 %v1826, %v1828
    %v1830 = vadd.f32 %v1826, %v1829
    %vm1831 = vweird.f32 %v1825
    %vm1832 = vweird.f32 %v1826
    %vm1833 = vmor %vm1831, %vm1832
    %v1834 = vsel %vm1833, %v1826, %v1830
    %v1835 = vand.u32 2147483647, %v1825
    %vm1836 = vcmp.eq.f32.partialorder %v1835, 8.507059e+37
    %v1837 = vand.u32 %v1825, 2147483648
    %v1838 = vor.u32 1.1754944e-38, %v1837
    %v1839 = vsel %vm1836, %v1838, %v1834
    %v1840 = vmul.f32 1.0, %v1839
    %v1841 = vxor.u32 %v1756, 2147483648
    %v1842 = vmul.f32 %v1841, 1.442695
    %v1843 = vpow.pop %v1842
    %v1844 = vadd.f32 %v1843, 1.0
    %v1845 = vrcp.pop %v1844
    %v1846 = vmul.f32 %v1844, %v1845
    %v1847 = vsub.f32 1.0, %v1846
    %v1848 = vmul.f32 %v1845, %v1847
    %v1849 = vadd.f32 %v1845, %v1848
    %vm1850 = vweird.f32 %v1844
    %vm1851 = vweird.f32 %v1845
    %vm1852 = vmor %vm1850, %vm1851
    %v1853 = vsel %vm1852, %v1845, %v1849
    %v1854 = vand.u32 2147483647, %v1844
    %vm1855 = vcmp.eq.f32.partialorder %v1854, 8.507059e+37
    %v1856 = vand.u32 %v1844, 2147483648
    %v1857 = vor.u32 1.1754944e-38, %v1856
    %v1858 = vsel %vm1855, %v1857, %v1853
    %v1859 = vmul.f32 1.0, %v1858
    %v1860 = vtanh.pop %v1757
    %v1861 = vxor.u32 %v1758, 2147483648
    %v1862 = vmul.f32 %v1861, 1.442695
    %v1863 = vpow.pop %v1862
    %v1864 = vadd.f32 %v1863, 1.0
    %v1865 = vrcp.pop %v1864
    %v1866 = vmul.f32 %v1864, %v1865
    %v1867 = vsub.f32 1.0, %v1866
    %v1868 = vmul.f32 %v1865, %v1867
    %v1869 = vadd.f32 %v1865, %v1868
    %vm1870 = vweird.f32 %v1864
    %vm1871 = vweird.f32 %v1865
    %vm1872 = vmor %vm1870, %vm1871
    %v1873 = vsel %vm1872, %v1865, %v1869
    %v1874 = vand.u32 2147483647, %v1864
    %vm1875 = vcmp.eq.f32.partialorder %v1874, 8.507059e+37
    %v1876 = vand.u32 %v1864, 2147483648
    %v1877 = vor.u32 1.1754944e-38, %v1876
    %v1878 = vsel %vm1875, %v1877, %v1873
    %v1879 = vmul.f32 1.0, %v1878
    %v1880 = vmul.f32 %v1859, %v1432
    %v1881 = vmul.f32 %v1840, %v1860
    %v1882 = vadd.f32 %v1880, %v1881
    %v1883 = vtanh.pop %v1882
    %v1884 = vmul.f32 %v1879, %v1883
    %v1885 = vmul.f32 %v1821, %v977
    %1886 = vadd.xlane.f32.xlu0 %v1885
    %v1887 = vpop.xlane.xlu0 %1886
    %v1889 = vperm.slane %v1887, %v984
    %1891 = vst.msk [vmem:[#allocation3 + $0x2] sm:$0x1] %vm987, %v1889
    %v1892 = vmul.f32 %v1884, %v990
    %1893 = vadd.xlane.f32.xlu0 %v1892
    %v1894 = vpop.xlane.xlu0 %1893
    %v1896 = vperm.slane %v1894, %v984
    %1898 = vst.msk [vmem:[#allocation4 + $0x5] sm:$0x1] %vm987, %v1896
    %s1899 = smul.u32 3, 8
    %s1900 = smul.addr %s1899, 8
    %s1901 = scalar_lea.vmem [#allocation2], %s1900
    %v1902 = vld [vmem:[%s1901] sm:$0xff]
    %v1903 = vld [vmem:[%s1901 + $0x8] sm:$0xff]
    %v1904 = vld [vmem:[%s1901 + $0x10] sm:$0xff]
    %v1905 = vld [vmem:[%s1901 + $0x18] sm:$0xff]
    %v1906 = vld [vmem:[#allocation9] sm:$0xff]
    %v1907 = vld [vmem:[#allocation9 + $0x8] sm:$0xff]
    %v1908 = vld [vmem:[#allocation9 + $0x10] sm:$0xff]
    %v1909 = vld [vmem:[#allocation9 + $0x18] sm:$0xff]
    %v1910 = vld [vmem:[#allocation9 + $0x20] sm:$0xff]
    %v1911 = vld [vmem:[#allocation9 + $0x28] sm:$0xff]
    %v1912 = vld [vmem:[#allocation9 + $0x30] sm:$0xff]
    %v1913 = vld [vmem:[#allocation9 + $0x38] sm:$0xff]
    %v1914 = vld [vmem:[#allocation9 + $0x40] sm:$0xff]
    %v1915 = vld [vmem:[#allocation9 + $0x48] sm:$0xff]
    %v1916 = vld [vmem:[#allocation9 + $0x50] sm:$0xff]
    %v1917 = vld [vmem:[#allocation9 + $0x58] sm:$0xff]
    %v1918 = vld [vmem:[#allocation9 + $0x60] sm:$0xff]
    %v1919 = vld [vmem:[#allocation9 + $0x68] sm:$0xff]
    %v1920 = vld [vmem:[#allocation9 + $0x70] sm:$0xff]
    %v1921 = vld [vmem:[#allocation9 + $0x78] sm:$0xff]
    %v1922 = vld [vmem:[#allocation9 + $0x80] sm:$0xff]
    %v1923 = vld [vmem:[#allocation9 + $0x88] sm:$0xff]
    %v1924 = vld [vmem:[#allocation9 + $0x90] sm:$0xff]
    %v1925 = vld [vmem:[#allocation9 + $0x98] sm:$0xff]
    %v1926 = vld [vmem:[#allocation9 + $0xa0] sm:$0xff]
    %v1927 = vld [vmem:[#allocation9 + $0xa8] sm:$0xff]
    %v1928 = vld [vmem:[#allocation9 + $0xb0] sm:$0xff]
    %v1929 = vld [vmem:[#allocation9 + $0xb8] sm:$0xff]
    %v1930 = vld [vmem:[#allocation9 + $0xc0] sm:$0xff]
    %v1931 = vld [vmem:[#allocation9 + $0xc8] sm:$0xff]
    %v1932 = vld [vmem:[#allocation9 + $0xd0] sm:$0xff]
    %v1933 = vld [vmem:[#allocation9 + $0xd8] sm:$0xff]
    %v1934 = vld [vmem:[#allocation9 + $0xe0] sm:$0xff]
    %v1935 = vld [vmem:[#allocation9 + $0xe8] sm:$0xff]
    %v1936 = vld [vmem:[#allocation9 + $0xf0] sm:$0xff]
    %v1937 = vld [vmem:[#allocation9 + $0xf8] sm:$0xff]
    %v1938 = vld [vmem:[#allocation9 + $0x100] sm:$0xff]
    %v1939 = vld [vmem:[#allocation9 + $0x108] sm:$0xff]
    %v1940 = vld [vmem:[#allocation9 + $0x110] sm:$0xff]
    %v1941 = vld [vmem:[#allocation9 + $0x118] sm:$0xff]
    %v1942 = vld [vmem:[#allocation9 + $0x120] sm:$0xff]
    %v1943 = vld [vmem:[#allocation9 + $0x128] sm:$0xff]
    %v1944 = vld [vmem:[#allocation9 + $0x130] sm:$0xff]
    %v1945 = vld [vmem:[#allocation9 + $0x138] sm:$0xff]
    %v1946 = vld [vmem:[#allocation9 + $0x140] sm:$0xff]
    %v1947 = vld [vmem:[#allocation9 + $0x148] sm:$0xff]
    %v1948 = vld [vmem:[#allocation9 + $0x150] sm:$0xff]
    %v1949 = vld [vmem:[#allocation9 + $0x158] sm:$0xff]
    %v1950 = vld [vmem:[#allocation9 + $0x160] sm:$0xff]
    %v1951 = vld [vmem:[#allocation9 + $0x168] sm:$0xff]
    %v1952 = vld [vmem:[#allocation9 + $0x170] sm:$0xff]
    %v1953 = vld [vmem:[#allocation9 + $0x178] sm:$0xff]
    %v1954 = vld [vmem:[#allocation9 + $0x180] sm:$0xff]
    %v1955 = vld [vmem:[#allocation9 + $0x188] sm:$0xff]
    %v1956 = vld [vmem:[#allocation9 + $0x190] sm:$0xff]
    %v1957 = vld [vmem:[#allocation9 + $0x198] sm:$0xff]
    %v1958 = vld [vmem:[#allocation9 + $0x1a0] sm:$0xff]
    %v1959 = vld [vmem:[#allocation9 + $0x1a8] sm:$0xff]
    %v1960 = vld [vmem:[#allocation9 + $0x1b0] sm:$0xff]
    %v1961 = vld [vmem:[#allocation9 + $0x1b8] sm:$0xff]
    %v1962 = vld [vmem:[#allocation9 + $0x1c0] sm:$0xff]
    %v1963 = vld [vmem:[#allocation9 + $0x1c8] sm:$0xff]
    %v1964 = vld [vmem:[#allocation9 + $0x1d0] sm:$0xff]
    %v1965 = vld [vmem:[#allocation9 + $0x1d8] sm:$0xff]
    %v1966 = vld [vmem:[#allocation9 + $0x1e0] sm:$0xff]
    %v1967 = vld [vmem:[#allocation9 + $0x1e8] sm:$0xff]
    %v1968 = vld [vmem:[#allocation9 + $0x1f0] sm:$0xff]
    %v1969 = vld [vmem:[#allocation9 + $0x1f8] sm:$0xff]
    %1970 = vmatpush.msra.mxu0 %v1966
    %1971 = vmatpush.msra.mxu0 %v1962
    %1972 = vmatpush.msra.mxu0 %v1958
    %1973 = vmatpush.msra.mxu0 %v1954
    %1974 = vmatpush.msra.mxu0 %v1950
    %1975 = vmatpush.msra.mxu0 %v1946
    %1976 = vmatpush.msra.mxu0 %v1942
    %1977 = vmatpush.msra.mxu0 %v1938
    %1978 = vmatpush.msra.mxu0 %v1934
    %1979 = vmatpush.msra.mxu0 %v1930
    %1980 = vmatpush.msra.mxu0 %v1926
    %1981 = vmatpush.msra.mxu0 %v1922
    %1982 = vmatpush.msra.mxu0 %v1918
    %1983 = vmatpush.msra.mxu0 %v1914
    %1984 = vmatpush.msra.mxu0 %v1910
    %1985 = vmatpush.msra.mxu0 %v1906
    %1986 = vmatmul.f32.gmra.mxu0 %v1821
    %v1987 = vpop.f32.mrf.mxu0
    %v1988 = vadd.f32 0.0, %v1987
    %1989 = vdwg.mxu0
    %1990 = vmatpush.msra.mxu0 %v1967
    %1991 = vmatpush.msra.mxu0 %v1963
    %1992 = vmatpush.msra.mxu0 %v1959
    %1993 = vmatpush.msra.mxu0 %v1955
    %1994 = vmatpush.msra.mxu0 %v1951
    %1995 = vmatpush.msra.mxu0 %v1947
    %1996 = vmatpush.msra.mxu0 %v1943
    %1997 = vmatpush.msra.mxu0 %v1939
    %1998 = vmatpush.msra.mxu0 %v1935
    %1999 = vmatpush.msra.mxu0 %v1931
    %2000 = vmatpush.msra.mxu0 %v1927
    %2001 = vmatpush.msra.mxu0 %v1923
    %2002 = vmatpush.msra.mxu0 %v1919
    %2003 = vmatpush.msra.mxu0 %v1915
    %2004 = vmatpush.msra.mxu0 %v1911
    %2005 = vmatpush.msra.mxu0 %v1907
    %2006 = vmatmul.f32.gmra.mxu0 %v1821
    %v2007 = vpop.f32.mrf.mxu0
    %v2008 = vadd.f32 0.0, %v2007
    %2009 = vdwg.mxu0
    %2010 = vmatpush.msra.mxu0 %v1968
    %2011 = vmatpush.msra.mxu0 %v1964
    %2012 = vmatpush.msra.mxu0 %v1960
    %2013 = vmatpush.msra.mxu0 %v1956
    %2014 = vmatpush.msra.mxu0 %v1952
    %2015 = vmatpush.msra.mxu0 %v1948
    %2016 = vmatpush.msra.mxu0 %v1944
    %2017 = vmatpush.msra.mxu0 %v1940
    %2018 = vmatpush.msra.mxu0 %v1936
    %2019 = vmatpush.msra.mxu0 %v1932
    %2020 = vmatpush.msra.mxu0 %v1928
    %2021 = vmatpush.msra.mxu0 %v1924
    %2022 = vmatpush.msra.mxu0 %v1920
    %2023 = vmatpush.msra.mxu0 %v1916
    %2024 = vmatpush.msra.mxu0 %v1912
    %2025 = vmatpush.msra.mxu0 %v1908
    %2026 = vmatmul.f32.gmra.mxu0 %v1821
    %v2027 = vpop.f32.mrf.mxu0
    %v2028 = vadd.f32 0.0, %v2027
    %2029 = vdwg.mxu0
    %2030 = vmatpush.msra.mxu0 %v1969
    %2031 = vmatpush.msra.mxu0 %v1965
    %2032 = vmatpush.msra.mxu0 %v1961
    %2033 = vmatpush.msra.mxu0 %v1957
    %2034 = vmatpush.msra.mxu0 %v1953
    %2035 = vmatpush.msra.mxu0 %v1949
    %2036 = vmatpush.msra.mxu0 %v1945
    %2037 = vmatpush.msra.mxu0 %v1941
    %2038 = vmatpush.msra.mxu0 %v1937
    %2039 = vmatpush.msra.mxu0 %v1933
    %2040 = vmatpush.msra.mxu0 %v1929
    %2041 = vmatpush.msra.mxu0 %v1925
    %2042 = vmatpush.msra.mxu0 %v1921
    %2043 = vmatpush.msra.mxu0 %v1917
    %2044 = vmatpush.msra.mxu0 %v1913
    %2045 = vmatpush.msra.mxu0 %v1909
    %2046 = vmatmul.f32.gmra.mxu0 %v1821
    %v2047 = vpop.f32.mrf.mxu0
    %v2048 = vadd.f32 0.0, %v2047
    %2049 = vdwg.mxu0
    %v2050 = vadd.f32 %v1902, %v1988
    %v2051 = vadd.f32 %v1903, %v2008
    %v2052 = vadd.f32 %v1904, %v2028
    %v2053 = vadd.f32 %v1905, %v2048
    %s2054 = smul.u32 4, 8
    %s2055 = smul.addr %s2054, 8
    %s2056 = scalar_lea.vmem [#allocation2], %s2055
    %v2057 = vld [vmem:[%s2056 + $0x20] sm:$0xff]
    %v2058 = vld [vmem:[%s2056 + $0x28] sm:$0xff]
    %v2059 = vld [vmem:[%s2056 + $0x30] sm:$0xff]
    %v2060 = vld [vmem:[%s2056 + $0x38] sm:$0xff]
    %v2061 = vld [vmem:[#allocation11] sm:$0xff]
    %v2062 = vld [vmem:[#allocation11 + $0x8] sm:$0xff]
    %v2063 = vld [vmem:[#allocation11 + $0x10] sm:$0xff]
    %v2064 = vld [vmem:[#allocation11 + $0x18] sm:$0xff]
    %v2065 = vld [vmem:[#allocation11 + $0x20] sm:$0xff]
    %v2066 = vld [vmem:[#allocation11 + $0x28] sm:$0xff]
    %v2067 = vld [vmem:[#allocation11 + $0x30] sm:$0xff]
    %v2068 = vld [vmem:[#allocation11 + $0x38] sm:$0xff]
    %v2069 = vld [vmem:[#allocation11 + $0x40] sm:$0xff]
    %v2070 = vld [vmem:[#allocation11 + $0x48] sm:$0xff]
    %v2071 = vld [vmem:[#allocation11 + $0x50] sm:$0xff]
    %v2072 = vld [vmem:[#allocation11 + $0x58] sm:$0xff]
    %v2073 = vld [vmem:[#allocation11 + $0x60] sm:$0xff]
    %v2074 = vld [vmem:[#allocation11 + $0x68] sm:$0xff]
    %v2075 = vld [vmem:[#allocation11 + $0x70] sm:$0xff]
    %v2076 = vld [vmem:[#allocation11 + $0x78] sm:$0xff]
    %v2077 = vld [vmem:[#allocation11 + $0x80] sm:$0xff]
    %v2078 = vld [vmem:[#allocation11 + $0x88] sm:$0xff]
    %v2079 = vld [vmem:[#allocation11 + $0x90] sm:$0xff]
    %v2080 = vld [vmem:[#allocation11 + $0x98] sm:$0xff]
    %v2081 = vld [vmem:[#allocation11 + $0xa0] sm:$0xff]
    %v2082 = vld [vmem:[#allocation11 + $0xa8] sm:$0xff]
    %v2083 = vld [vmem:[#allocation11 + $0xb0] sm:$0xff]
    %v2084 = vld [vmem:[#allocation11 + $0xb8] sm:$0xff]
    %v2085 = vld [vmem:[#allocation11 + $0xc0] sm:$0xff]
    %v2086 = vld [vmem:[#allocation11 + $0xc8] sm:$0xff]
    %v2087 = vld [vmem:[#allocation11 + $0xd0] sm:$0xff]
    %v2088 = vld [vmem:[#allocation11 + $0xd8] sm:$0xff]
    %v2089 = vld [vmem:[#allocation11 + $0xe0] sm:$0xff]
    %v2090 = vld [vmem:[#allocation11 + $0xe8] sm:$0xff]
    %v2091 = vld [vmem:[#allocation11 + $0xf0] sm:$0xff]
    %v2092 = vld [vmem:[#allocation11 + $0xf8] sm:$0xff]
    %v2093 = vld [vmem:[#allocation11 + $0x100] sm:$0xff]
    %v2094 = vld [vmem:[#allocation11 + $0x108] sm:$0xff]
    %v2095 = vld [vmem:[#allocation11 + $0x110] sm:$0xff]
    %v2096 = vld [vmem:[#allocation11 + $0x118] sm:$0xff]
    %v2097 = vld [vmem:[#allocation11 + $0x120] sm:$0xff]
    %v2098 = vld [vmem:[#allocation11 + $0x128] sm:$0xff]
    %v2099 = vld [vmem:[#allocation11 + $0x130] sm:$0xff]
    %v2100 = vld [vmem:[#allocation11 + $0x138] sm:$0xff]
    %v2101 = vld [vmem:[#allocation11 + $0x140] sm:$0xff]
    %v2102 = vld [vmem:[#allocation11 + $0x148] sm:$0xff]
    %v2103 = vld [vmem:[#allocation11 + $0x150] sm:$0xff]
    %v2104 = vld [vmem:[#allocation11 + $0x158] sm:$0xff]
    %v2105 = vld [vmem:[#allocation11 + $0x160] sm:$0xff]
    %v2106 = vld [vmem:[#allocation11 + $0x168] sm:$0xff]
    %v2107 = vld [vmem:[#allocation11 + $0x170] sm:$0xff]
    %v2108 = vld [vmem:[#allocation11 + $0x178] sm:$0xff]
    %v2109 = vld [vmem:[#allocation11 + $0x180] sm:$0xff]
    %v2110 = vld [vmem:[#allocation11 + $0x188] sm:$0xff]
    %v2111 = vld [vmem:[#allocation11 + $0x190] sm:$0xff]
    %v2112 = vld [vmem:[#allocation11 + $0x198] sm:$0xff]
    %v2113 = vld [vmem:[#allocation11 + $0x1a0] sm:$0xff]
    %v2114 = vld [vmem:[#allocation11 + $0x1a8] sm:$0xff]
    %v2115 = vld [vmem:[#allocation11 + $0x1b0] sm:$0xff]
    %v2116 = vld [vmem:[#allocation11 + $0x1b8] sm:$0xff]
    %v2117 = vld [vmem:[#allocation11 + $0x1c0] sm:$0xff]
    %v2118 = vld [vmem:[#allocation11 + $0x1c8] sm:$0xff]
    %v2119 = vld [vmem:[#allocation11 + $0x1d0] sm:$0xff]
    %v2120 = vld [vmem:[#allocation11 + $0x1d8] sm:$0xff]
    %v2121 = vld [vmem:[#allocation11 + $0x1e0] sm:$0xff]
    %v2122 = vld [vmem:[#allocation11 + $0x1e8] sm:$0xff]
    %v2123 = vld [vmem:[#allocation11 + $0x1f0] sm:$0xff]
    %v2124 = vld [vmem:[#allocation11 + $0x1f8] sm:$0xff]
    %2125 = vmatpush.msra.mxu0 %v2121
    %2126 = vmatpush.msra.mxu0 %v2117
    %2127 = vmatpush.msra.mxu0 %v2113
    %2128 = vmatpush.msra.mxu0 %v2109
    %2129 = vmatpush.msra.mxu0 %v2105
    %2130 = vmatpush.msra.mxu0 %v2101
    %2131 = vmatpush.msra.mxu0 %v2097
    %2132 = vmatpush.msra.mxu0 %v2093
    %2133 = vmatpush.msra.mxu0 %v2089
    %2134 = vmatpush.msra.mxu0 %v2085
    %2135 = vmatpush.msra.mxu0 %v2081
    %2136 = vmatpush.msra.mxu0 %v2077
    %2137 = vmatpush.msra.mxu0 %v2073
    %2138 = vmatpush.msra.mxu0 %v2069
    %2139 = vmatpush.msra.mxu0 %v2065
    %2140 = vmatpush.msra.mxu0 %v2061
    %2141 = vmatmul.f32.gmra.mxu0 %v1884
    %v2142 = vpop.f32.mrf.mxu0
    %v2143 = vadd.f32 0.0, %v2142
    %2144 = vdwg.mxu0
    %2145 = vmatpush.msra.mxu0 %v2122
    %2146 = vmatpush.msra.mxu0 %v2118
    %2147 = vmatpush.msra.mxu0 %v2114
    %2148 = vmatpush.msra.mxu0 %v2110
    %2149 = vmatpush.msra.mxu0 %v2106
    %2150 = vmatpush.msra.mxu0 %v2102
    %2151 = vmatpush.msra.mxu0 %v2098
    %2152 = vmatpush.msra.mxu0 %v2094
    %2153 = vmatpush.msra.mxu0 %v2090
    %2154 = vmatpush.msra.mxu0 %v2086
    %2155 = vmatpush.msra.mxu0 %v2082
    %2156 = vmatpush.msra.mxu0 %v2078
    %2157 = vmatpush.msra.mxu0 %v2074
    %2158 = vmatpush.msra.mxu0 %v2070
    %2159 = vmatpush.msra.mxu0 %v2066
    %2160 = vmatpush.msra.mxu0 %v2062
    %2161 = vmatmul.f32.gmra.mxu0 %v1884
    %v2162 = vpop.f32.mrf.mxu0
    %v2163 = vadd.f32 0.0, %v2162
    %2164 = vdwg.mxu0
    %2165 = vmatpush.msra.mxu0 %v2123
    %2166 = vmatpush.msra.mxu0 %v2119
    %2167 = vmatpush.msra.mxu0 %v2115
    %2168 = vmatpush.msra.mxu0 %v2111
    %2169 = vmatpush.msra.mxu0 %v2107
    %2170 = vmatpush.msra.mxu0 %v2103
    %2171 = vmatpush.msra.mxu0 %v2099
    %2172 = vmatpush.msra.mxu0 %v2095
    %2173 = vmatpush.msra.mxu0 %v2091
    %2174 = vmatpush.msra.mxu0 %v2087
    %2175 = vmatpush.msra.mxu0 %v2083
    %2176 = vmatpush.msra.mxu0 %v2079
    %2177 = vmatpush.msra.mxu0 %v2075
    %2178 = vmatpush.msra.mxu0 %v2071
    %2179 = vmatpush.msra.mxu0 %v2067
    %2180 = vmatpush.msra.mxu0 %v2063
    %2181 = vmatmul.f32.gmra.mxu0 %v1884
    %v2182 = vpop.f32.mrf.mxu0
    %v2183 = vadd.f32 0.0, %v2182
    %2184 = vdwg.mxu0
    %2185 = vmatpush.msra.mxu0 %v2124
    %2186 = vmatpush.msra.mxu0 %v2120
    %2187 = vmatpush.msra.mxu0 %v2116
    %2188 = vmatpush.msra.mxu0 %v2112
    %2189 = vmatpush.msra.mxu0 %v2108
    %2190 = vmatpush.msra.mxu0 %v2104
    %2191 = vmatpush.msra.mxu0 %v2100
    %2192 = vmatpush.msra.mxu0 %v2096
    %2193 = vmatpush.msra.mxu0 %v2092
    %2194 = vmatpush.msra.mxu0 %v2088
    %2195 = vmatpush.msra.mxu0 %v2084
    %2196 = vmatpush.msra.mxu0 %v2080
    %2197 = vmatpush.msra.mxu0 %v2076
    %2198 = vmatpush.msra.mxu0 %v2072
    %2199 = vmatpush.msra.mxu0 %v2068
    %2200 = vmatpush.msra.mxu0 %v2064
    %2201 = vmatmul.f32.gmra.mxu0 %v1884
    %v2202 = vpop.f32.mrf.mxu0
    %v2203 = vadd.f32 0.0, %v2202
    %2204 = vdwg.mxu0
    %v2205 = vadd.f32 %v2057, %v2143
    %v2206 = vadd.f32 %v2058, %v2163
    %v2207 = vadd.f32 %v2059, %v2183
    %v2208 = vadd.f32 %v2060, %v2203
    %v2209 = vxor.u32 %v2050, 2147483648
    %v2210 = vmul.f32 %v2209, 1.442695
    %v2211 = vpow.pop %v2210
    %v2212 = vadd.f32 %v2211, 1.0
    %v2213 = vrcp.pop %v2212
    %v2214 = vmul.f32 %v2212, %v2213
    %v2215 = vsub.f32 1.0, %v2214
    %v2216 = vmul.f32 %v2213, %v2215
    %v2217 = vadd.f32 %v2213, %v2216
    %vm2218 = vweird.f32 %v2212
    %vm2219 = vweird.f32 %v2213
    %vm2220 = vmor %vm2218, %vm2219
    %v2221 = vsel %vm2220, %v2213, %v2217
    %v2222 = vand.u32 2147483647, %v2212
    %vm2223 = vcmp.eq.f32.partialorder %v2222, 8.507059e+37
    %v2224 = vand.u32 %v2212, 2147483648
    %v2225 = vor.u32 1.1754944e-38, %v2224
    %v2226 = vsel %vm2223, %v2225, %v2221
    %v2227 = vmul.f32 1.0, %v2226
    %v2228 = vxor.u32 %v2051, 2147483648
    %v2229 = vmul.f32 %v2228, 1.442695
    %v2230 = vpow.pop %v2229
    %v2231 = vadd.f32 %v2230, 1.0
    %v2232 = vrcp.pop %v2231
    %v2233 = vmul.f32 %v2231, %v2232
    %v2234 = vsub.f32 1.0, %v2233
    %v2235 = vmul.f32 %v2232, %v2234
    %v2236 = vadd.f32 %v2232, %v2235
    %vm2237 = vweird.f32 %v2231
    %vm2238 = vweird.f32 %v2232
    %vm2239 = vmor %vm2237, %vm2238
    %v2240 = vsel %vm2239, %v2232, %v2236
    %v2241 = vand.u32 2147483647, %v2231
    %vm2242 = vcmp.eq.f32.partialorder %v2241, 8.507059e+37
    %v2243 = vand.u32 %v2231, 2147483648
    %v2244 = vor.u32 1.1754944e-38, %v2243
    %v2245 = vsel %vm2242, %v2244, %v2240
    %v2246 = vmul.f32 1.0, %v2245
    %v2247 = vtanh.pop %v2052
    %v2248 = vxor.u32 %v2053, 2147483648
    %v2249 = vmul.f32 %v2248, 1.442695
    %v2250 = vpow.pop %v2249
    %v2251 = vadd.f32 %v2250, 1.0
    %v2252 = vrcp.pop %v2251
    %v2253 = vmul.f32 %v2251, %v2252
    %v2254 = vsub.f32 1.0, %v2253
    %v2255 = vmul.f32 %v2252, %v2254
    %v2256 = vadd.f32 %v2252, %v2255
    %vm2257 = vweird.f32 %v2251
    %vm2258 = vweird.f32 %v2252
    %vm2259 = vmor %vm2257, %vm2258
    %v2260 = vsel %vm2259, %v2252, %v2256
    %v2261 = vand.u32 2147483647, %v2251
    %vm2262 = vcmp.eq.f32.partialorder %v2261, 8.507059e+37
    %v2263 = vand.u32 %v2251, 2147483648
    %v2264 = vor.u32 1.1754944e-38, %v2263
    %v2265 = vsel %vm2262, %v2264, %v2260
    %v2266 = vmul.f32 1.0, %v2265
    %v2267 = vmul.f32 %v2246, %v1819
    %v2268 = vmul.f32 %v2227, %v2247
    %v2269 = vadd.f32 %v2267, %v2268
    %v2270 = vtanh.pop %v2269
    %v2271 = vmul.f32 %v2266, %v2270
    %v2272 = vxor.u32 %v2205, 2147483648
    %v2273 = vmul.f32 %v2272, 1.442695
    %v2274 = vpow.pop %v2273
    %v2275 = vadd.f32 %v2274, 1.0
    %v2276 = vrcp.pop %v2275
    %v2277 = vmul.f32 %v2275, %v2276
    %v2278 = vsub.f32 1.0, %v2277
    %v2279 = vmul.f32 %v2276, %v2278
    %v2280 = vadd.f32 %v2276, %v2279
    %vm2281 = vweird.f32 %v2275
    %vm2282 = vweird.f32 %v2276
    %vm2283 = vmor %vm2281, %vm2282
    %v2284 = vsel %vm2283, %v2276, %v2280
    %v2285 = vand.u32 2147483647, %v2275
    %vm2286 = vcmp.eq.f32.partialorder %v2285, 8.507059e+37
    %v2287 = vand.u32 %v2275, 2147483648
    %v2288 = vor.u32 1.1754944e-38, %v2287
    %v2289 = vsel %vm2286, %v2288, %v2284
    %v2290 = vmul.f32 1.0, %v2289
    %v2291 = vxor.u32 %v2206, 2147483648
    %v2292 = vmul.f32 %v2291, 1.442695
    %v2293 = vpow.pop %v2292
    %v2294 = vadd.f32 %v2293, 1.0
    %v2295 = vrcp.pop %v2294
    %v2296 = vmul.f32 %v2294, %v2295
    %v2297 = vsub.f32 1.0, %v2296
    %v2298 = vmul.f32 %v2295, %v2297
    %v2299 = vadd.f32 %v2295, %v2298
    %vm2300 = vweird.f32 %v2294
    %vm2301 = vweird.f32 %v2295
    %vm2302 = vmor %vm2300, %vm2301
    %v2303 = vsel %vm2302, %v2295, %v2299
    %v2304 = vand.u32 2147483647, %v2294
    %vm2305 = vcmp.eq.f32.partialorder %v2304, 8.507059e+37
    %v2306 = vand.u32 %v2294, 2147483648
    %v2307 = vor.u32 1.1754944e-38, %v2306
    %v2308 = vsel %vm2305, %v2307, %v2303
    %v2309 = vmul.f32 1.0, %v2308
    %v2310 = vtanh.pop %v2207
    %v2311 = vxor.u32 %v2208, 2147483648
    %v2312 = vmul.f32 %v2311, 1.442695
    %v2313 = vpow.pop %v2312
    %v2314 = vadd.f32 %v2313, 1.0
    %v2315 = vrcp.pop %v2314
    %v2316 = vmul.f32 %v2314, %v2315
    %v2317 = vsub.f32 1.0, %v2316
    %v2318 = vmul.f32 %v2315, %v2317
    %v2319 = vadd.f32 %v2315, %v2318
    %vm2320 = vweird.f32 %v2314
    %vm2321 = vweird.f32 %v2315
    %vm2322 = vmor %vm2320, %vm2321
    %v2323 = vsel %vm2322, %v2315, %v2319
    %v2324 = vand.u32 2147483647, %v2314
    %vm2325 = vcmp.eq.f32.partialorder %v2324, 8.507059e+37
    %v2326 = vand.u32 %v2314, 2147483648
    %v2327 = vor.u32 1.1754944e-38, %v2326
    %v2328 = vsel %vm2325, %v2327, %v2323
    %v2329 = vmul.f32 1.0, %v2328
    %v2330 = vmul.f32 %v2309, %v1882
    %v2331 = vmul.f32 %v2290, %v2310
    %v2332 = vadd.f32 %v2330, %v2331
    %v2333 = vtanh.pop %v2332
    %v2334 = vmul.f32 %v2329, %v2333
    %v2335 = vmul.f32 %v2271, %v977
    %2336 = vadd.xlane.f32.xlu0 %v2335
    %v2337 = vpop.xlane.xlu0 %2336
    %v2339 = vperm.slane %v2337, %v984
    %2341 = vst.msk [vmem:[#allocation3 + $0x3] sm:$0x1] %vm987, %v2339
    %v2342 = vmul.f32 %v2334, %v990
    %2343 = vadd.xlane.f32.xlu0 %v2342
    %v2344 = vpop.xlane.xlu0 %2343
    %v2346 = vperm.slane %v2344, %v984
    %2348 = vst.msk [vmem:[#allocation4 + $0x4] sm:$0x1] %vm987, %v2346
    %v2349 = vld [vmem:[%s2056] sm:$0xff]
    %v2350 = vld [vmem:[%s2056 + $0x8] sm:$0xff]
    %v2351 = vld [vmem:[%s2056 + $0x10] sm:$0xff]
    %v2352 = vld [vmem:[%s2056 + $0x18] sm:$0xff]
    %v2353 = vld [vmem:[#allocation9] sm:$0xff]
    %v2354 = vld [vmem:[#allocation9 + $0x8] sm:$0xff]
    %v2355 = vld [vmem:[#allocation9 + $0x10] sm:$0xff]
    %v2356 = vld [vmem:[#allocation9 + $0x18] sm:$0xff]
    %v2357 = vld [vmem:[#allocation9 + $0x20] sm:$0xff]
    %v2358 = vld [vmem:[#allocation9 + $0x28] sm:$0xff]
    %v2359 = vld [vmem:[#allocation9 + $0x30] sm:$0xff]
    %v2360 = vld [vmem:[#allocation9 + $0x38] sm:$0xff]
    %v2361 = vld [vmem:[#allocation9 + $0x40] sm:$0xff]
    %v2362 = vld [vmem:[#allocation9 + $0x48] sm:$0xff]
    %v2363 = vld [vmem:[#allocation9 + $0x50] sm:$0xff]
    %v2364 = vld [vmem:[#allocation9 + $0x58] sm:$0xff]
    %v2365 = vld [vmem:[#allocation9 + $0x60] sm:$0xff]
    %v2366 = vld [vmem:[#allocation9 + $0x68] sm:$0xff]
    %v2367 = vld [vmem:[#allocation9 + $0x70] sm:$0xff]
    %v2368 = vld [vmem:[#allocation9 + $0x78] sm:$0xff]
    %v2369 = vld [vmem:[#allocation9 + $0x80] sm:$0xff]
    %v2370 = vld [vmem:[#allocation9 + $0x88] sm:$0xff]
    %v2371 = vld [vmem:[#allocation9 + $0x90] sm:$0xff]
    %v2372 = vld [vmem:[#allocation9 + $0x98] sm:$0xff]
    %v2373 = vld [vmem:[#allocation9 + $0xa0] sm:$0xff]
    %v2374 = vld [vmem:[#allocation9 + $0xa8] sm:$0xff]
    %v2375 = vld [vmem:[#allocation9 + $0xb0] sm:$0xff]
    %v2376 = vld [vmem:[#allocation9 + $0xb8] sm:$0xff]
    %v2377 = vld [vmem:[#allocation9 + $0xc0] sm:$0xff]
    %v2378 = vld [vmem:[#allocation9 + $0xc8] sm:$0xff]
    %v2379 = vld [vmem:[#allocation9 + $0xd0] sm:$0xff]
    %v2380 = vld [vmem:[#allocation9 + $0xd8] sm:$0xff]
    %v2381 = vld [vmem:[#allocation9 + $0xe0] sm:$0xff]
    %v2382 = vld [vmem:[#allocation9 + $0xe8] sm:$0xff]
    %v2383 = vld [vmem:[#allocation9 + $0xf0] sm:$0xff]
    %v2384 = vld [vmem:[#allocation9 + $0xf8] sm:$0xff]
    %v2385 = vld [vmem:[#allocation9 + $0x100] sm:$0xff]
    %v2386 = vld [vmem:[#allocation9 + $0x108] sm:$0xff]
    %v2387 = vld [vmem:[#allocation9 + $0x110] sm:$0xff]
    %v2388 = vld [vmem:[#allocation9 + $0x118] sm:$0xff]
    %v2389 = vld [vmem:[#allocation9 + $0x120] sm:$0xff]
    %v2390 = vld [vmem:[#allocation9 + $0x128] sm:$0xff]
    %v2391 = vld [vmem:[#allocation9 + $0x130] sm:$0xff]
    %v2392 = vld [vmem:[#allocation9 + $0x138] sm:$0xff]
    %v2393 = vld [vmem:[#allocation9 + $0x140] sm:$0xff]
    %v2394 = vld [vmem:[#allocation9 + $0x148] sm:$0xff]
    %v2395 = vld [vmem:[#allocation9 + $0x150] sm:$0xff]
    %v2396 = vld [vmem:[#allocation9 + $0x158] sm:$0xff]
    %v2397 = vld [vmem:[#allocation9 + $0x160] sm:$0xff]
    %v2398 = vld [vmem:[#allocation9 + $0x168] sm:$0xff]
    %v2399 = vld [vmem:[#allocation9 + $0x170] sm:$0xff]
    %v2400 = vld [vmem:[#allocation9 + $0x178] sm:$0xff]
    %v2401 = vld [vmem:[#allocation9 + $0x180] sm:$0xff]
    %v2402 = vld [vmem:[#allocation9 + $0x188] sm:$0xff]
    %v2403 = vld [vmem:[#allocation9 + $0x190] sm:$0xff]
    %v2404 = vld [vmem:[#allocation9 + $0x198] sm:$0xff]
    %v2405 = vld [vmem:[#allocation9 + $0x1a0] sm:$0xff]
    %v2406 = vld [vmem:[#allocation9 + $0x1a8] sm:$0xff]
    %v2407 = vld [vmem:[#allocation9 + $0x1b0] sm:$0xff]
    %v2408 = vld [vmem:[#allocation9 + $0x1b8] sm:$0xff]
    %v2409 = vld [vmem:[#allocation9 + $0x1c0] sm:$0xff]
    %v2410 = vld [vmem:[#allocation9 + $0x1c8] sm:$0xff]
    %v2411 = vld [vmem:[#allocation9 + $0x1d0] sm:$0xff]
    %v2412 = vld [vmem:[#allocation9 + $0x1d8] sm:$0xff]
    %v2413 = vld [vmem:[#allocation9 + $0x1e0] sm:$0xff]
    %v2414 = vld [vmem:[#allocation9 + $0x1e8] sm:$0xff]
    %v2415 = vld [vmem:[#allocation9 + $0x1f0] sm:$0xff]
    %v2416 = vld [vmem:[#allocation9 + $0x1f8] sm:$0xff]
    %2417 = vmatpush.msra.mxu0 %v2413
    %2418 = vmatpush.msra.mxu0 %v2409
    %2419 = vmatpush.msra.mxu0 %v2405
    %2420 = vmatpush.msra.mxu0 %v2401
    %2421 = vmatpush.msra.mxu0 %v2397
    %2422 = vmatpush.msra.mxu0 %v2393
    %2423 = vmatpush.msra.mxu0 %v2389
    %2424 = vmatpush.msra.mxu0 %v2385
    %2425 = vmatpush.msra.mxu0 %v2381
    %2426 = vmatpush.msra.mxu0 %v2377
    %2427 = vmatpush.msra.mxu0 %v2373
    %2428 = vmatpush.msra.mxu0 %v2369
    %2429 = vmatpush.msra.mxu0 %v2365
    %2430 = vmatpush.msra.mxu0 %v2361
    %2431 = vmatpush.msra.mxu0 %v2357
    %2432 = vmatpush.msra.mxu0 %v2353
    %2433 = vmatmul.f32.gmra.mxu0 %v2271
    %v2434 = vpop.f32.mrf.mxu0
    %v2435 = vadd.f32 0.0, %v2434
    %2436 = vdwg.mxu0
    %2437 = vmatpush.msra.mxu0 %v2414
    %2438 = vmatpush.msra.mxu0 %v2410
    %2439 = vmatpush.msra.mxu0 %v2406
    %2440 = vmatpush.msra.mxu0 %v2402
    %2441 = vmatpush.msra.mxu0 %v2398
    %2442 = vmatpush.msra.mxu0 %v2394
    %2443 = vmatpush.msra.mxu0 %v2390
    %2444 = vmatpush.msra.mxu0 %v2386
    %2445 = vmatpush.msra.mxu0 %v2382
    %2446 = vmatpush.msra.mxu0 %v2378
    %2447 = vmatpush.msra.mxu0 %v2374
    %2448 = vmatpush.msra.mxu0 %v2370
    %2449 = vmatpush.msra.mxu0 %v2366
    %2450 = vmatpush.msra.mxu0 %v2362
    %2451 = vmatpush.msra.mxu0 %v2358
    %2452 = vmatpush.msra.mxu0 %v2354
    %2453 = vmatmul.f32.gmra.mxu0 %v2271
    %v2454 = vpop.f32.mrf.mxu0
    %v2455 = vadd.f32 0.0, %v2454
    %2456 = vdwg.mxu0
    %2457 = vmatpush.msra.mxu0 %v2415
    %2458 = vmatpush.msra.mxu0 %v2411
    %2459 = vmatpush.msra.mxu0 %v2407
    %2460 = vmatpush.msra.mxu0 %v2403
    %2461 = vmatpush.msra.mxu0 %v2399
    %2462 = vmatpush.msra.mxu0 %v2395
    %2463 = vmatpush.msra.mxu0 %v2391
    %2464 = vmatpush.msra.mxu0 %v2387
    %2465 = vmatpush.msra.mxu0 %v2383
    %2466 = vmatpush.msra.mxu0 %v2379
    %2467 = vmatpush.msra.mxu0 %v2375
    %2468 = vmatpush.msra.mxu0 %v2371
    %2469 = vmatpush.msra.mxu0 %v2367
    %2470 = vmatpush.msra.mxu0 %v2363
    %2471 = vmatpush.msra.mxu0 %v2359
    %2472 = vmatpush.msra.mxu0 %v2355
    %2473 = vmatmul.f32.gmra.mxu0 %v2271
    %v2474 = vpop.f32.mrf.mxu0
    %v2475 = vadd.f32 0.0, %v2474
    %2476 = vdwg.mxu0
    %2477 = vmatpush.msra.mxu0 %v2416
    %2478 = vmatpush.msra.mxu0 %v2412
    %2479 = vmatpush.msra.mxu0 %v2408
    %2480 = vmatpush.msra.mxu0 %v2404
    %2481 = vmatpush.msra.mxu0 %v2400
    %2482 = vmatpush.msra.mxu0 %v2396
    %2483 = vmatpush.msra.mxu0 %v2392
    %2484 = vmatpush.msra.mxu0 %v2388
    %2485 = vmatpush.msra.mxu0 %v2384
    %2486 = vmatpush.msra.mxu0 %v2380
    %2487 = vmatpush.msra.mxu0 %v2376
    %2488 = vmatpush.msra.mxu0 %v2372
    %2489 = vmatpush.msra.mxu0 %v2368
    %2490 = vmatpush.msra.mxu0 %v2364
    %2491 = vmatpush.msra.mxu0 %v2360
    %2492 = vmatpush.msra.mxu0 %v2356
    %2493 = vmatmul.f32.gmra.mxu0 %v2271
    %v2494 = vpop.f32.mrf.mxu0
    %v2495 = vadd.f32 0.0, %v2494
    %2496 = vdwg.mxu0
    %v2497 = vadd.f32 %v2349, %v2435
    %v2498 = vadd.f32 %v2350, %v2455
    %v2499 = vadd.f32 %v2351, %v2475
    %v2500 = vadd.f32 %v2352, %v2495
    %v2501 = vld [vmem:[%s1901 + $0x20] sm:$0xff]
    %v2502 = vld [vmem:[%s1901 + $0x28] sm:$0xff]
    %v2503 = vld [vmem:[%s1901 + $0x30] sm:$0xff]
    %v2504 = vld [vmem:[%s1901 + $0x38] sm:$0xff]
    %v2505 = vld [vmem:[#allocation11] sm:$0xff]
    %v2506 = vld [vmem:[#allocation11 + $0x8] sm:$0xff]
    %v2507 = vld [vmem:[#allocation11 + $0x10] sm:$0xff]
    %v2508 = vld [vmem:[#allocation11 + $0x18] sm:$0xff]
    %v2509 = vld [vmem:[#allocation11 + $0x20] sm:$0xff]
    %v2510 = vld [vmem:[#allocation11 + $0x28] sm:$0xff]
    %v2511 = vld [vmem:[#allocation11 + $0x30] sm:$0xff]
    %v2512 = vld [vmem:[#allocation11 + $0x38] sm:$0xff]
    %v2513 = vld [vmem:[#allocation11 + $0x40] sm:$0xff]
    %v2514 = vld [vmem:[#allocation11 + $0x48] sm:$0xff]
    %v2515 = vld [vmem:[#allocation11 + $0x50] sm:$0xff]
    %v2516 = vld [vmem:[#allocation11 + $0x58] sm:$0xff]
    %v2517 = vld [vmem:[#allocation11 + $0x60] sm:$0xff]
    %v2518 = vld [vmem:[#allocation11 + $0x68] sm:$0xff]
    %v2519 = vld [vmem:[#allocation11 + $0x70] sm:$0xff]
    %v2520 = vld [vmem:[#allocation11 + $0x78] sm:$0xff]
    %v2521 = vld [vmem:[#allocation11 + $0x80] sm:$0xff]
    %v2522 = vld [vmem:[#allocation11 + $0x88] sm:$0xff]
    %v2523 = vld [vmem:[#allocation11 + $0x90] sm:$0xff]
    %v2524 = vld [vmem:[#allocation11 + $0x98] sm:$0xff]
    %v2525 = vld [vmem:[#allocation11 + $0xa0] sm:$0xff]
    %v2526 = vld [vmem:[#allocation11 + $0xa8] sm:$0xff]
    %v2527 = vld [vmem:[#allocation11 + $0xb0] sm:$0xff]
    %v2528 = vld [vmem:[#allocation11 + $0xb8] sm:$0xff]
    %v2529 = vld [vmem:[#allocation11 + $0xc0] sm:$0xff]
    %v2530 = vld [vmem:[#allocation11 + $0xc8] sm:$0xff]
    %v2531 = vld [vmem:[#allocation11 + $0xd0] sm:$0xff]
    %v2532 = vld [vmem:[#allocation11 + $0xd8] sm:$0xff]
    %v2533 = vld [vmem:[#allocation11 + $0xe0] sm:$0xff]
    %v2534 = vld [vmem:[#allocation11 + $0xe8] sm:$0xff]
    %v2535 = vld [vmem:[#allocation11 + $0xf0] sm:$0xff]
    %v2536 = vld [vmem:[#allocation11 + $0xf8] sm:$0xff]
    %v2537 = vld [vmem:[#allocation11 + $0x100] sm:$0xff]
    %v2538 = vld [vmem:[#allocation11 + $0x108] sm:$0xff]
    %v2539 = vld [vmem:[#allocation11 + $0x110] sm:$0xff]
    %v2540 = vld [vmem:[#allocation11 + $0x118] sm:$0xff]
    %v2541 = vld [vmem:[#allocation11 + $0x120] sm:$0xff]
    %v2542 = vld [vmem:[#allocation11 + $0x128] sm:$0xff]
    %v2543 = vld [vmem:[#allocation11 + $0x130] sm:$0xff]
    %v2544 = vld [vmem:[#allocation11 + $0x138] sm:$0xff]
    %v2545 = vld [vmem:[#allocation11 + $0x140] sm:$0xff]
    %v2546 = vld [vmem:[#allocation11 + $0x148] sm:$0xff]
    %v2547 = vld [vmem:[#allocation11 + $0x150] sm:$0xff]
    %v2548 = vld [vmem:[#allocation11 + $0x158] sm:$0xff]
    %v2549 = vld [vmem:[#allocation11 + $0x160] sm:$0xff]
    %v2550 = vld [vmem:[#allocation11 + $0x168] sm:$0xff]
    %v2551 = vld [vmem:[#allocation11 + $0x170] sm:$0xff]
    %v2552 = vld [vmem:[#allocation11 + $0x178] sm:$0xff]
    %v2553 = vld [vmem:[#allocation11 + $0x180] sm:$0xff]
    %v2554 = vld [vmem:[#allocation11 + $0x188] sm:$0xff]
    %v2555 = vld [vmem:[#allocation11 + $0x190] sm:$0xff]
    %v2556 = vld [vmem:[#allocation11 + $0x198] sm:$0xff]
    %v2557 = vld [vmem:[#allocation11 + $0x1a0] sm:$0xff]
    %v2558 = vld [vmem:[#allocation11 + $0x1a8] sm:$0xff]
    %v2559 = vld [vmem:[#allocation11 + $0x1b0] sm:$0xff]
    %v2560 = vld [vmem:[#allocation11 + $0x1b8] sm:$0xff]
    %v2561 = vld [vmem:[#allocation11 + $0x1c0] sm:$0xff]
    %v2562 = vld [vmem:[#allocation11 + $0x1c8] sm:$0xff]
    %v2563 = vld [vmem:[#allocation11 + $0x1d0] sm:$0xff]
    %v2564 = vld [vmem:[#allocation11 + $0x1d8] sm:$0xff]
    %v2565 = vld [vmem:[#allocation11 + $0x1e0] sm:$0xff]
    %v2566 = vld [vmem:[#allocation11 + $0x1e8] sm:$0xff]
    %v2567 = vld [vmem:[#allocation11 + $0x1f0] sm:$0xff]
    %v2568 = vld [vmem:[#allocation11 + $0x1f8] sm:$0xff]
    %2569 = vmatpush.msra.mxu0 %v2565
    %2570 = vmatpush.msra.mxu0 %v2561
    %2571 = vmatpush.msra.mxu0 %v2557
    %2572 = vmatpush.msra.mxu0 %v2553
    %2573 = vmatpush.msra.mxu0 %v2549
    %2574 = vmatpush.msra.mxu0 %v2545
    %2575 = vmatpush.msra.mxu0 %v2541
    %2576 = vmatpush.msra.mxu0 %v2537
    %2577 = vmatpush.msra.mxu0 %v2533
    %2578 = vmatpush.msra.mxu0 %v2529
    %2579 = vmatpush.msra.mxu0 %v2525
    %2580 = vmatpush.msra.mxu0 %v2521
    %2581 = vmatpush.msra.mxu0 %v2517
    %2582 = vmatpush.msra.mxu0 %v2513
    %2583 = vmatpush.msra.mxu0 %v2509
    %2584 = vmatpush.msra.mxu0 %v2505
    %2585 = vmatmul.f32.gmra.mxu0 %v2334
    %v2586 = vpop.f32.mrf.mxu0
    %v2587 = vadd.f32 0.0, %v2586
    %2588 = vdwg.mxu0
    %2589 = vmatpush.msra.mxu0 %v2566
    %2590 = vmatpush.msra.mxu0 %v2562
    %2591 = vmatpush.msra.mxu0 %v2558
    %2592 = vmatpush.msra.mxu0 %v2554
    %2593 = vmatpush.msra.mxu0 %v2550
    %2594 = vmatpush.msra.mxu0 %v2546
    %2595 = vmatpush.msra.mxu0 %v2542
    %2596 = vmatpush.msra.mxu0 %v2538
    %2597 = vmatpush.msra.mxu0 %v2534
    %2598 = vmatpush.msra.mxu0 %v2530
    %2599 = vmatpush.msra.mxu0 %v2526
    %2600 = vmatpush.msra.mxu0 %v2522
    %2601 = vmatpush.msra.mxu0 %v2518
    %2602 = vmatpush.msra.mxu0 %v2514
    %2603 = vmatpush.msra.mxu0 %v2510
    %2604 = vmatpush.msra.mxu0 %v2506
    %2605 = vmatmul.f32.gmra.mxu0 %v2334
    %v2606 = vpop.f32.mrf.mxu0
    %v2607 = vadd.f32 0.0, %v2606
    %2608 = vdwg.mxu0
    %2609 = vmatpush.msra.mxu0 %v2567
    %2610 = vmatpush.msra.mxu0 %v2563
    %2611 = vmatpush.msra.mxu0 %v2559
    %2612 = vmatpush.msra.mxu0 %v2555
    %2613 = vmatpush.msra.mxu0 %v2551
    %2614 = vmatpush.msra.mxu0 %v2547
    %2615 = vmatpush.msra.mxu0 %v2543
    %2616 = vmatpush.msra.mxu0 %v2539
    %2617 = vmatpush.msra.mxu0 %v2535
    %2618 = vmatpush.msra.mxu0 %v2531
    %2619 = vmatpush.msra.mxu0 %v2527
    %2620 = vmatpush.msra.mxu0 %v2523
    %2621 = vmatpush.msra.mxu0 %v2519
    %2622 = vmatpush.msra.mxu0 %v2515
    %2623 = vmatpush.msra.mxu0 %v2511
    %2624 = vmatpush.msra.mxu0 %v2507
    %2625 = vmatmul.f32.gmra.mxu0 %v2334
    %v2626 = vpop.f32.mrf.mxu0
    %v2627 = vadd.f32 0.0, %v2626
    %2628 = vdwg.mxu0
    %2629 = vmatpush.msra.mxu0 %v2568
    %2630 = vmatpush.msra.mxu0 %v2564
    %2631 = vmatpush.msra.mxu0 %v2560
    %2632 = vmatpush.msra.mxu0 %v2556
    %2633 = vmatpush.msra.mxu0 %v2552
    %2634 = vmatpush.msra.mxu0 %v2548
    %2635 = vmatpush.msra.mxu0 %v2544
    %2636 = vmatpush.msra.mxu0 %v2540
    %2637 = vmatpush.msra.mxu0 %v2536
    %2638 = vmatpush.msra.mxu0 %v2532
    %2639 = vmatpush.msra.mxu0 %v2528
    %2640 = vmatpush.msra.mxu0 %v2524
    %2641 = vmatpush.msra.mxu0 %v2520
    %2642 = vmatpush.msra.mxu0 %v2516
    %2643 = vmatpush.msra.mxu0 %v2512
    %2644 = vmatpush.msra.mxu0 %v2508
    %2645 = vmatmul.f32.gmra.mxu0 %v2334
    %v2646 = vpop.f32.mrf.mxu0
    %v2647 = vadd.f32 0.0, %v2646
    %2648 = vdwg.mxu0
    %v2649 = vadd.f32 %v2501, %v2587
    %v2650 = vadd.f32 %v2502, %v2607
    %v2651 = vadd.f32 %v2503, %v2627
    %v2652 = vadd.f32 %v2504, %v2647
    %v2653 = vxor.u32 %v2497, 2147483648
    %v2654 = vmul.f32 %v2653, 1.442695
    %v2655 = vpow.pop %v2654
    %v2656 = vadd.f32 %v2655, 1.0
    %v2657 = vrcp.pop %v2656
    %v2658 = vmul.f32 %v2656, %v2657
    %v2659 = vsub.f32 1.0, %v2658
    %v2660 = vmul.f32 %v2657, %v2659
    %v2661 = vadd.f32 %v2657, %v2660
    %vm2662 = vweird.f32 %v2656
    %vm2663 = vweird.f32 %v2657
    %vm2664 = vmor %vm2662, %vm2663
    %v2665 = vsel %vm2664, %v2657, %v2661
    %v2666 = vand.u32 2147483647, %v2656
    %vm2667 = vcmp.eq.f32.partialorder %v2666, 8.507059e+37
    %v2668 = vand.u32 %v2656, 2147483648
    %v2669 = vor.u32 1.1754944e-38, %v2668
    %v2670 = vsel %vm2667, %v2669, %v2665
    %v2671 = vmul.f32 1.0, %v2670
    %v2672 = vxor.u32 %v2498, 2147483648
    %v2673 = vmul.f32 %v2672, 1.442695
    %v2674 = vpow.pop %v2673
    %v2675 = vadd.f32 %v2674, 1.0
    %v2676 = vrcp.pop %v2675
    %v2677 = vmul.f32 %v2675, %v2676
    %v2678 = vsub.f32 1.0, %v2677
    %v2679 = vmul.f32 %v2676, %v2678
    %v2680 = vadd.f32 %v2676, %v2679
    %vm2681 = vweird.f32 %v2675
    %vm2682 = vweird.f32 %v2676
    %vm2683 = vmor %vm2681, %vm2682
    %v2684 = vsel %vm2683, %v2676, %v2680
    %v2685 = vand.u32 2147483647, %v2675
    %vm2686 = vcmp.eq.f32.partialorder %v2685, 8.507059e+37
    %v2687 = vand.u32 %v2675, 2147483648
    %v2688 = vor.u32 1.1754944e-38, %v2687
    %v2689 = vsel %vm2686, %v2688, %v2684
    %v2690 = vmul.f32 1.0, %v2689
    %v2691 = vtanh.pop %v2499
    %v2692 = vxor.u32 %v2500, 2147483648
    %v2693 = vmul.f32 %v2692, 1.442695
    %v2694 = vpow.pop %v2693
    %v2695 = vadd.f32 %v2694, 1.0
    %v2696 = vrcp.pop %v2695
    %v2697 = vmul.f32 %v2695, %v2696
    %v2698 = vsub.f32 1.0, %v2697
    %v2699 = vmul.f32 %v2696, %v2698
    %v2700 = vadd.f32 %v2696, %v2699
    %vm2701 = vweird.f32 %v2695
    %vm2702 = vweird.f32 %v2696
    %vm2703 = vmor %vm2701, %vm2702
    %v2704 = vsel %vm2703, %v2696, %v2700
    %v2705 = vand.u32 2147483647, %v2695
    %vm2706 = vcmp.eq.f32.partialorder %v2705, 8.507059e+37
    %v2707 = vand.u32 %v2695, 2147483648
    %v2708 = vor.u32 1.1754944e-38, %v2707
    %v2709 = vsel %vm2706, %v2708, %v2704
    %v2710 = vmul.f32 1.0, %v2709
    %v2711 = vmul.f32 %v2690, %v2269
    %v2712 = vmul.f32 %v2671, %v2691
    %v2713 = vadd.f32 %v2711, %v2712
    %v2714 = vtanh.pop %v2713
    %v2715 = vmul.f32 %v2710, %v2714
    %v2716 = vxor.u32 %v2649, 2147483648
    %v2717 = vmul.f32 %v2716, 1.442695
    %v2718 = vpow.pop %v2717
    %v2719 = vadd.f32 %v2718, 1.0
    %v2720 = vrcp.pop %v2719
    %v2721 = vmul.f32 %v2719, %v2720
    %v2722 = vsub.f32 1.0, %v2721
    %v2723 = vmul.f32 %v2720, %v2722
    %v2724 = vadd.f32 %v2720, %v2723
    %vm2725 = vweird.f32 %v2719
    %vm2726 = vweird.f32 %v2720
    %vm2727 = vmor %vm2725, %vm2726
    %v2728 = vsel %vm2727, %v2720, %v2724
    %v2729 = vand.u32 2147483647, %v2719
    %vm2730 = vcmp.eq.f32.partialorder %v2729, 8.507059e+37
    %v2731 = vand.u32 %v2719, 2147483648
    %v2732 = vor.u32 1.1754944e-38, %v2731
    %v2733 = vsel %vm2730, %v2732, %v2728
    %v2734 = vmul.f32 1.0, %v2733
    %v2735 = vxor.u32 %v2650, 2147483648
    %v2736 = vmul.f32 %v2735, 1.442695
    %v2737 = vpow.pop %v2736
    %v2738 = vadd.f32 %v2737, 1.0
    %v2739 = vrcp.pop %v2738
    %v2740 = vmul.f32 %v2738, %v2739
    %v2741 = vsub.f32 1.0, %v2740
    %v2742 = vmul.f32 %v2739, %v2741
    %v2743 = vadd.f32 %v2739, %v2742
    %vm2744 = vweird.f32 %v2738
    %vm2745 = vweird.f32 %v2739
    %vm2746 = vmor %vm2744, %vm2745
    %v2747 = vsel %vm2746, %v2739, %v2743
    %v2748 = vand.u32 2147483647, %v2738
    %vm2749 = vcmp.eq.f32.partialorder %v2748, 8.507059e+37
    %v2750 = vand.u32 %v2738, 2147483648
    %v2751 = vor.u32 1.1754944e-38, %v2750
    %v2752 = vsel %vm2749, %v2751, %v2747
    %v2753 = vmul.f32 1.0, %v2752
    %v2754 = vtanh.pop %v2651
    %v2755 = vxor.u32 %v2652, 2147483648
    %v2756 = vmul.f32 %v2755, 1.442695
    %v2757 = vpow.pop %v2756
    %v2758 = vadd.f32 %v2757, 1.0
    %v2759 = vrcp.pop %v2758
    %v2760 = vmul.f32 %v2758, %v2759
    %v2761 = vsub.f32 1.0, %v2760
    %v2762 = vmul.f32 %v2759, %v2761
    %v2763 = vadd.f32 %v2759, %v2762
    %vm2764 = vweird.f32 %v2758
    %vm2765 = vweird.f32 %v2759
    %vm2766 = vmor %vm2764, %vm2765
    %v2767 = vsel %vm2766, %v2759, %v2763
    %v2768 = vand.u32 2147483647, %v2758
    %vm2769 = vcmp.eq.f32.partialorder %v2768, 8.507059e+37
    %v2770 = vand.u32 %v2758, 2147483648
    %v2771 = vor.u32 1.1754944e-38, %v2770
    %v2772 = vsel %vm2769, %v2771, %v2767
    %v2773 = vmul.f32 1.0, %v2772
    %v2774 = vmul.f32 %v2753, %v2332
    %v2775 = vmul.f32 %v2734, %v2754
    %v2776 = vadd.f32 %v2774, %v2775
    %v2777 = vtanh.pop %v2776
    %v2778 = vmul.f32 %v2773, %v2777
    %v2779 = vmul.f32 %v2715, %v977
    %2780 = vadd.xlane.f32.xlu0 %v2779
    %v2781 = vpop.xlane.xlu0 %2780
    %v2783 = vperm.slane %v2781, %v984
    %2785 = vst.msk [vmem:[#allocation3 + $0x4] sm:$0x1] %vm987, %v2783
    %v2786 = vmul.f32 %v2778, %v990
    %2787 = vadd.xlane.f32.xlu0 %v2786
    %v2788 = vpop.xlane.xlu0 %2787
    %v2790 = vperm.slane %v2788, %v984
    %2792 = vst.msk [vmem:[#allocation4 + $0x3] sm:$0x1] %vm987, %v2790
    %v2793 = vld [vmem:[%s1606] sm:$0xff]
    %v2794 = vld [vmem:[%s1606 + $0x8] sm:$0xff]
    %v2795 = vld [vmem:[%s1606 + $0x10] sm:$0xff]
    %v2796 = vld [vmem:[%s1606 + $0x18] sm:$0xff]
    %v2797 = vld [vmem:[#allocation9] sm:$0xff]
    %v2798 = vld [vmem:[#allocation9 + $0x8] sm:$0xff]
    %v2799 = vld [vmem:[#allocation9 + $0x10] sm:$0xff]
    %v2800 = vld [vmem:[#allocation9 + $0x18] sm:$0xff]
    %v2801 = vld [vmem:[#allocation9 + $0x20] sm:$0xff]
    %v2802 = vld [vmem:[#allocation9 + $0x28] sm:$0xff]
    %v2803 = vld [vmem:[#allocation9 + $0x30] sm:$0xff]
    %v2804 = vld [vmem:[#allocation9 + $0x38] sm:$0xff]
    %v2805 = vld [vmem:[#allocation9 + $0x40] sm:$0xff]
    %v2806 = vld [vmem:[#allocation9 + $0x48] sm:$0xff]
    %v2807 = vld [vmem:[#allocation9 + $0x50] sm:$0xff]
    %v2808 = vld [vmem:[#allocation9 + $0x58] sm:$0xff]
    %v2809 = vld [vmem:[#allocation9 + $0x60] sm:$0xff]
    %v2810 = vld [vmem:[#allocation9 + $0x68] sm:$0xff]
    %v2811 = vld [vmem:[#allocation9 + $0x70] sm:$0xff]
    %v2812 = vld [vmem:[#allocation9 + $0x78] sm:$0xff]
    %v2813 = vld [vmem:[#allocation9 + $0x80] sm:$0xff]
    %v2814 = vld [vmem:[#allocation9 + $0x88] sm:$0xff]
    %v2815 = vld [vmem:[#allocation9 + $0x90] sm:$0xff]
    %v2816 = vld [vmem:[#allocation9 + $0x98] sm:$0xff]
    %v2817 = vld [vmem:[#allocation9 + $0xa0] sm:$0xff]
    %v2818 = vld [vmem:[#allocation9 + $0xa8] sm:$0xff]
    %v2819 = vld [vmem:[#allocation9 + $0xb0] sm:$0xff]
    %v2820 = vld [vmem:[#allocation9 + $0xb8] sm:$0xff]
    %v2821 = vld [vmem:[#allocation9 + $0xc0] sm:$0xff]
    %v2822 = vld [vmem:[#allocation9 + $0xc8] sm:$0xff]
    %v2823 = vld [vmem:[#allocation9 + $0xd0] sm:$0xff]
    %v2824 = vld [vmem:[#allocation9 + $0xd8] sm:$0xff]
    %v2825 = vld [vmem:[#allocation9 + $0xe0] sm:$0xff]
    %v2826 = vld [vmem:[#allocation9 + $0xe8] sm:$0xff]
    %v2827 = vld [vmem:[#allocation9 + $0xf0] sm:$0xff]
    %v2828 = vld [vmem:[#allocation9 + $0xf8] sm:$0xff]
    %v2829 = vld [vmem:[#allocation9 + $0x100] sm:$0xff]
    %v2830 = vld [vmem:[#allocation9 + $0x108] sm:$0xff]
    %v2831 = vld [vmem:[#allocation9 + $0x110] sm:$0xff]
    %v2832 = vld [vmem:[#allocation9 + $0x118] sm:$0xff]
    %v2833 = vld [vmem:[#allocation9 + $0x120] sm:$0xff]
    %v2834 = vld [vmem:[#allocation9 + $0x128] sm:$0xff]
    %v2835 = vld [vmem:[#allocation9 + $0x130] sm:$0xff]
    %v2836 = vld [vmem:[#allocation9 + $0x138] sm:$0xff]
    %v2837 = vld [vmem:[#allocation9 + $0x140] sm:$0xff]
    %v2838 = vld [vmem:[#allocation9 + $0x148] sm:$0xff]
    %v2839 = vld [vmem:[#allocation9 + $0x150] sm:$0xff]
    %v2840 = vld [vmem:[#allocation9 + $0x158] sm:$0xff]
    %v2841 = vld [vmem:[#allocation9 + $0x160] sm:$0xff]
    %v2842 = vld [vmem:[#allocation9 + $0x168] sm:$0xff]
    %v2843 = vld [vmem:[#allocation9 + $0x170] sm:$0xff]
    %v2844 = vld [vmem:[#allocation9 + $0x178] sm:$0xff]
    %v2845 = vld [vmem:[#allocation9 + $0x180] sm:$0xff]
    %v2846 = vld [vmem:[#allocation9 + $0x188] sm:$0xff]
    %v2847 = vld [vmem:[#allocation9 + $0x190] sm:$0xff]
    %v2848 = vld [vmem:[#allocation9 + $0x198] sm:$0xff]
    %v2849 = vld [vmem:[#allocation9 + $0x1a0] sm:$0xff]
    %v2850 = vld [vmem:[#allocation9 + $0x1a8] sm:$0xff]
    %v2851 = vld [vmem:[#allocation9 + $0x1b0] sm:$0xff]
    %v2852 = vld [vmem:[#allocation9 + $0x1b8] sm:$0xff]
    %v2853 = vld [vmem:[#allocation9 + $0x1c0] sm:$0xff]
    %v2854 = vld [vmem:[#allocation9 + $0x1c8] sm:$0xff]
    %v2855 = vld [vmem:[#allocation9 + $0x1d0] sm:$0xff]
    %v2856 = vld [vmem:[#allocation9 + $0x1d8] sm:$0xff]
    %v2857 = vld [vmem:[#allocation9 + $0x1e0] sm:$0xff]
    %v2858 = vld [vmem:[#allocation9 + $0x1e8] sm:$0xff]
    %v2859 = vld [vmem:[#allocation9 + $0x1f0] sm:$0xff]
    %v2860 = vld [vmem:[#allocation9 + $0x1f8] sm:$0xff]
    %2861 = vmatpush.msra.mxu0 %v2857
    %2862 = vmatpush.msra.mxu0 %v2853
    %2863 = vmatpush.msra.mxu0 %v2849
    %2864 = vmatpush.msra.mxu0 %v2845
    %2865 = vmatpush.msra.mxu0 %v2841
    %2866 = vmatpush.msra.mxu0 %v2837
    %2867 = vmatpush.msra.mxu0 %v2833
    %2868 = vmatpush.msra.mxu0 %v2829
    %2869 = vmatpush.msra.mxu0 %v2825
    %2870 = vmatpush.msra.mxu0 %v2821
    %2871 = vmatpush.msra.mxu0 %v2817
    %2872 = vmatpush.msra.mxu0 %v2813
    %2873 = vmatpush.msra.mxu0 %v2809
    %2874 = vmatpush.msra.mxu0 %v2805
    %2875 = vmatpush.msra.mxu0 %v2801
    %2876 = vmatpush.msra.mxu0 %v2797
    %2877 = vmatmul.f32.gmra.mxu0 %v2715
    %v2878 = vpop.f32.mrf.mxu0
    %v2879 = vadd.f32 0.0, %v2878
    %2880 = vdwg.mxu0
    %2881 = vmatpush.msra.mxu0 %v2858
    %2882 = vmatpush.msra.mxu0 %v2854
    %2883 = vmatpush.msra.mxu0 %v2850
    %2884 = vmatpush.msra.mxu0 %v2846
    %2885 = vmatpush.msra.mxu0 %v2842
    %2886 = vmatpush.msra.mxu0 %v2838
    %2887 = vmatpush.msra.mxu0 %v2834
    %2888 = vmatpush.msra.mxu0 %v2830
    %2889 = vmatpush.msra.mxu0 %v2826
    %2890 = vmatpush.msra.mxu0 %v2822
    %2891 = vmatpush.msra.mxu0 %v2818
    %2892 = vmatpush.msra.mxu0 %v2814
    %2893 = vmatpush.msra.mxu0 %v2810
    %2894 = vmatpush.msra.mxu0 %v2806
    %2895 = vmatpush.msra.mxu0 %v2802
    %2896 = vmatpush.msra.mxu0 %v2798
    %2897 = vmatmul.f32.gmra.mxu0 %v2715
    %v2898 = vpop.f32.mrf.mxu0
    %v2899 = vadd.f32 0.0, %v2898
    %2900 = vdwg.mxu0
    %2901 = vmatpush.msra.mxu0 %v2859
    %2902 = vmatpush.msra.mxu0 %v2855
    %2903 = vmatpush.msra.mxu0 %v2851
    %2904 = vmatpush.msra.mxu0 %v2847
    %2905 = vmatpush.msra.mxu0 %v2843
    %2906 = vmatpush.msra.mxu0 %v2839
    %2907 = vmatpush.msra.mxu0 %v2835
    %2908 = vmatpush.msra.mxu0 %v2831
    %2909 = vmatpush.msra.mxu0 %v2827
    %2910 = vmatpush.msra.mxu0 %v2823
    %2911 = vmatpush.msra.mxu0 %v2819
    %2912 = vmatpush.msra.mxu0 %v2815
    %2913 = vmatpush.msra.mxu0 %v2811
    %2914 = vmatpush.msra.mxu0 %v2807
    %2915 = vmatpush.msra.mxu0 %v2803
    %2916 = vmatpush.msra.mxu0 %v2799
    %2917 = vmatmul.f32.gmra.mxu0 %v2715
    %v2918 = vpop.f32.mrf.mxu0
    %v2919 = vadd.f32 0.0, %v2918
    %2920 = vdwg.mxu0
    %2921 = vmatpush.msra.mxu0 %v2860
    %2922 = vmatpush.msra.mxu0 %v2856
    %2923 = vmatpush.msra.mxu0 %v2852
    %2924 = vmatpush.msra.mxu0 %v2848
    %2925 = vmatpush.msra.mxu0 %v2844
    %2926 = vmatpush.msra.mxu0 %v2840
    %2927 = vmatpush.msra.mxu0 %v2836
    %2928 = vmatpush.msra.mxu0 %v2832
    %2929 = vmatpush.msra.mxu0 %v2828
    %2930 = vmatpush.msra.mxu0 %v2824
    %2931 = vmatpush.msra.mxu0 %v2820
    %2932 = vmatpush.msra.mxu0 %v2816
    %2933 = vmatpush.msra.mxu0 %v2812
    %2934 = vmatpush.msra.mxu0 %v2808
    %2935 = vmatpush.msra.mxu0 %v2804
    %2936 = vmatpush.msra.mxu0 %v2800
    %2937 = vmatmul.f32.gmra.mxu0 %v2715
    %v2938 = vpop.f32.mrf.mxu0
    %v2939 = vadd.f32 0.0, %v2938
    %2940 = vdwg.mxu0
    %v2941 = vadd.f32 %v2793, %v2879
    %v2942 = vadd.f32 %v2794, %v2899
    %v2943 = vadd.f32 %v2795, %v2919
    %v2944 = vadd.f32 %v2796, %v2939
    %v2945 = vld [vmem:[%s1451 + $0x20] sm:$0xff]
    %v2946 = vld [vmem:[%s1451 + $0x28] sm:$0xff]
    %v2947 = vld [vmem:[%s1451 + $0x30] sm:$0xff]
    %v2948 = vld [vmem:[%s1451 + $0x38] sm:$0xff]
    %v2949 = vld [vmem:[#allocation11] sm:$0xff]
    %v2950 = vld [vmem:[#allocation11 + $0x8] sm:$0xff]
    %v2951 = vld [vmem:[#allocation11 + $0x10] sm:$0xff]
    %v2952 = vld [vmem:[#allocation11 + $0x18] sm:$0xff]
    %v2953 = vld [vmem:[#allocation11 + $0x20] sm:$0xff]
    %v2954 = vld [vmem:[#allocation11 + $0x28] sm:$0xff]
    %v2955 = vld [vmem:[#allocation11 + $0x30] sm:$0xff]
    %v2956 = vld [vmem:[#allocation11 + $0x38] sm:$0xff]
    %v2957 = vld [vmem:[#allocation11 + $0x40] sm:$0xff]
    %v2958 = vld [vmem:[#allocation11 + $0x48] sm:$0xff]
    %v2959 = vld [vmem:[#allocation11 + $0x50] sm:$0xff]
    %v2960 = vld [vmem:[#allocation11 + $0x58] sm:$0xff]
    %v2961 = vld [vmem:[#allocation11 + $0x60] sm:$0xff]
    %v2962 = vld [vmem:[#allocation11 + $0x68] sm:$0xff]
    %v2963 = vld [vmem:[#allocation11 + $0x70] sm:$0xff]
    %v2964 = vld [vmem:[#allocation11 + $0x78] sm:$0xff]
    %v2965 = vld [vmem:[#allocation11 + $0x80] sm:$0xff]
    %v2966 = vld [vmem:[#allocation11 + $0x88] sm:$0xff]
    %v2967 = vld [vmem:[#allocation11 + $0x90] sm:$0xff]
    %v2968 = vld [vmem:[#allocation11 + $0x98] sm:$0xff]
    %v2969 = vld [vmem:[#allocation11 + $0xa0] sm:$0xff]
    %v2970 = vld [vmem:[#allocation11 + $0xa8] sm:$0xff]
    %v2971 = vld [vmem:[#allocation11 + $0xb0] sm:$0xff]
    %v2972 = vld [vmem:[#allocation11 + $0xb8] sm:$0xff]
    %v2973 = vld [vmem:[#allocation11 + $0xc0] sm:$0xff]
    %v2974 = vld [vmem:[#allocation11 + $0xc8] sm:$0xff]
    %v2975 = vld [vmem:[#allocation11 + $0xd0] sm:$0xff]
    %v2976 = vld [vmem:[#allocation11 + $0xd8] sm:$0xff]
    %v2977 = vld [vmem:[#allocation11 + $0xe0] sm:$0xff]
    %v2978 = vld [vmem:[#allocation11 + $0xe8] sm:$0xff]
    %v2979 = vld [vmem:[#allocation11 + $0xf0] sm:$0xff]
    %v2980 = vld [vmem:[#allocation11 + $0xf8] sm:$0xff]
    %v2981 = vld [vmem:[#allocation11 + $0x100] sm:$0xff]
    %v2982 = vld [vmem:[#allocation11 + $0x108] sm:$0xff]
    %v2983 = vld [vmem:[#allocation11 + $0x110] sm:$0xff]
    %v2984 = vld [vmem:[#allocation11 + $0x118] sm:$0xff]
    %v2985 = vld [vmem:[#allocation11 + $0x120] sm:$0xff]
    %v2986 = vld [vmem:[#allocation11 + $0x128] sm:$0xff]
    %v2987 = vld [vmem:[#allocation11 + $0x130] sm:$0xff]
    %v2988 = vld [vmem:[#allocation11 + $0x138] sm:$0xff]
    %v2989 = vld [vmem:[#allocation11 + $0x140] sm:$0xff]
    %v2990 = vld [vmem:[#allocation11 + $0x148] sm:$0xff]
    %v2991 = vld [vmem:[#allocation11 + $0x150] sm:$0xff]
    %v2992 = vld [vmem:[#allocation11 + $0x158] sm:$0xff]
    %v2993 = vld [vmem:[#allocation11 + $0x160] sm:$0xff]
    %v2994 = vld [vmem:[#allocation11 + $0x168] sm:$0xff]
    %v2995 = vld [vmem:[#allocation11 + $0x170] sm:$0xff]
    %v2996 = vld [vmem:[#allocation11 + $0x178] sm:$0xff]
    %v2997 = vld [vmem:[#allocation11 + $0x180] sm:$0xff]
    %v2998 = vld [vmem:[#allocation11 + $0x188] sm:$0xff]
    %v2999 = vld [vmem:[#allocation11 + $0x190] sm:$0xff]
    %v3000 = vld [vmem:[#allocation11 + $0x198] sm:$0xff]
    %v3001 = vld [vmem:[#allocation11 + $0x1a0] sm:$0xff]
    %v3002 = vld [vmem:[#allocation11 + $0x1a8] sm:$0xff]
    %v3003 = vld [vmem:[#allocation11 + $0x1b0] sm:$0xff]
    %v3004 = vld [vmem:[#allocation11 + $0x1b8] sm:$0xff]
    %v3005 = vld [vmem:[#allocation11 + $0x1c0] sm:$0xff]
    %v3006 = vld [vmem:[#allocation11 + $0x1c8] sm:$0xff]
    %v3007 = vld [vmem:[#allocation11 + $0x1d0] sm:$0xff]
    %v3008 = vld [vmem:[#allocation11 + $0x1d8] sm:$0xff]
    %v3009 = vld [vmem:[#allocation11 + $0x1e0] sm:$0xff]
    %v3010 = vld [vmem:[#allocation11 + $0x1e8] sm:$0xff]
    %v3011 = vld [vmem:[#allocation11 + $0x1f0] sm:$0xff]
    %v3012 = vld [vmem:[#allocation11 + $0x1f8] sm:$0xff]
    %3013 = vmatpush.msra.mxu0 %v3009
    %3014 = vmatpush.msra.mxu0 %v3005
    %3015 = vmatpush.msra.mxu0 %v3001
    %3016 = vmatpush.msra.mxu0 %v2997
    %3017 = vmatpush.msra.mxu0 %v2993
    %3018 = vmatpush.msra.mxu0 %v2989
    %3019 = vmatpush.msra.mxu0 %v2985
    %3020 = vmatpush.msra.mxu0 %v2981
    %3021 = vmatpush.msra.mxu0 %v2977
    %3022 = vmatpush.msra.mxu0 %v2973
    %3023 = vmatpush.msra.mxu0 %v2969
    %3024 = vmatpush.msra.mxu0 %v2965
    %3025 = vmatpush.msra.mxu0 %v2961
    %3026 = vmatpush.msra.mxu0 %v2957
    %3027 = vmatpush.msra.mxu0 %v2953
    %3028 = vmatpush.msra.mxu0 %v2949
    %3029 = vmatmul.f32.gmra.mxu0 %v2778
    %v3030 = vpop.f32.mrf.mxu0
    %v3031 = vadd.f32 0.0, %v3030
    %3032 = vdwg.mxu0
    %3033 = vmatpush.msra.mxu0 %v3010
    %3034 = vmatpush.msra.mxu0 %v3006
    %3035 = vmatpush.msra.mxu0 %v3002
    %3036 = vmatpush.msra.mxu0 %v2998
    %3037 = vmatpush.msra.mxu0 %v2994
    %3038 = vmatpush.msra.mxu0 %v2990
    %3039 = vmatpush.msra.mxu0 %v2986
    %3040 = vmatpush.msra.mxu0 %v2982
    %3041 = vmatpush.msra.mxu0 %v2978
    %3042 = vmatpush.msra.mxu0 %v2974
    %3043 = vmatpush.msra.mxu0 %v2970
    %3044 = vmatpush.msra.mxu0 %v2966
    %3045 = vmatpush.msra.mxu0 %v2962
    %3046 = vmatpush.msra.mxu0 %v2958
    %3047 = vmatpush.msra.mxu0 %v2954
    %3048 = vmatpush.msra.mxu0 %v2950
    %3049 = vmatmul.f32.gmra.mxu0 %v2778
    %v3050 = vpop.f32.mrf.mxu0
    %v3051 = vadd.f32 0.0, %v3050
    %3052 = vdwg.mxu0
    %3053 = vmatpush.msra.mxu0 %v3011
    %3054 = vmatpush.msra.mxu0 %v3007
    %3055 = vmatpush.msra.mxu0 %v3003
    %3056 = vmatpush.msra.mxu0 %v2999
    %3057 = vmatpush.msra.mxu0 %v2995
    %3058 = vmatpush.msra.mxu0 %v2991
    %3059 = vmatpush.msra.mxu0 %v2987
    %3060 = vmatpush.msra.mxu0 %v2983
    %3061 = vmatpush.msra.mxu0 %v2979
    %3062 = vmatpush.msra.mxu0 %v2975
    %3063 = vmatpush.msra.mxu0 %v2971
    %3064 = vmatpush.msra.mxu0 %v2967
    %3065 = vmatpush.msra.mxu0 %v2963
    %3066 = vmatpush.msra.mxu0 %v2959
    %3067 = vmatpush.msra.mxu0 %v2955
    %3068 = vmatpush.msra.mxu0 %v2951
    %3069 = vmatmul.f32.gmra.mxu0 %v2778
    %v3070 = vpop.f32.mrf.mxu0
    %v3071 = vadd.f32 0.0, %v3070
    %3072 = vdwg.mxu0
    %3073 = vmatpush.msra.mxu0 %v3012
    %3074 = vmatpush.msra.mxu0 %v3008
    %3075 = vmatpush.msra.mxu0 %v3004
    %3076 = vmatpush.msra.mxu0 %v3000
    %3077 = vmatpush.msra.mxu0 %v2996
    %3078 = vmatpush.msra.mxu0 %v2992
    %3079 = vmatpush.msra.mxu0 %v2988
    %3080 = vmatpush.msra.mxu0 %v2984
    %3081 = vmatpush.msra.mxu0 %v2980
    %3082 = vmatpush.msra.mxu0 %v2976
    %3083 = vmatpush.msra.mxu0 %v2972
    %3084 = vmatpush.msra.mxu0 %v2968
    %3085 = vmatpush.msra.mxu0 %v2964
    %3086 = vmatpush.msra.mxu0 %v2960
    %3087 = vmatpush.msra.mxu0 %v2956
    %3088 = vmatpush.msra.mxu0 %v2952
    %3089 = vmatmul.f32.gmra.mxu0 %v2778
    %v3090 = vpop.f32.mrf.mxu0
    %v3091 = vadd.f32 0.0, %v3090
    %3092 = vdwg.mxu0
    %v3093 = vadd.f32 %v2945, %v3031
    %v3094 = vadd.f32 %v2946, %v3051
    %v3095 = vadd.f32 %v2947, %v3071
    %v3096 = vadd.f32 %v2948, %v3091
    %v3097 = vxor.u32 %v2941, 2147483648
    %v3098 = vmul.f32 %v3097, 1.442695
    %v3099 = vpow.pop %v3098
    %v3100 = vadd.f32 %v3099, 1.0
    %v3101 = vrcp.pop %v3100
    %v3102 = vmul.f32 %v3100, %v3101
    %v3103 = vsub.f32 1.0, %v3102
    %v3104 = vmul.f32 %v3101, %v3103
    %v3105 = vadd.f32 %v3101, %v3104
    %vm3106 = vweird.f32 %v3100
    %vm3107 = vweird.f32 %v3101
    %vm3108 = vmor %vm3106, %vm3107
    %v3109 = vsel %vm3108, %v3101, %v3105
    %v3110 = vand.u32 2147483647, %v3100
    %vm3111 = vcmp.eq.f32.partialorder %v3110, 8.507059e+37
    %v3112 = vand.u32 %v3100, 2147483648
    %v3113 = vor.u32 1.1754944e-38, %v3112
    %v3114 = vsel %vm3111, %v3113, %v3109
    %v3115 = vmul.f32 1.0, %v3114
    %v3116 = vxor.u32 %v2942, 2147483648
    %v3117 = vmul.f32 %v3116, 1.442695
    %v3118 = vpow.pop %v3117
    %v3119 = vadd.f32 %v3118, 1.0
    %v3120 = vrcp.pop %v3119
    %v3121 = vmul.f32 %v3119, %v3120
    %v3122 = vsub.f32 1.0, %v3121
    %v3123 = vmul.f32 %v3120, %v3122
    %v3124 = vadd.f32 %v3120, %v3123
    %vm3125 = vweird.f32 %v3119
    %vm3126 = vweird.f32 %v3120
    %vm3127 = vmor %vm3125, %vm3126
    %v3128 = vsel %vm3127, %v3120, %v3124
    %v3129 = vand.u32 2147483647, %v3119
    %vm3130 = vcmp.eq.f32.partialorder %v3129, 8.507059e+37
    %v3131 = vand.u32 %v3119, 2147483648
    %v3132 = vor.u32 1.1754944e-38, %v3131
    %v3133 = vsel %vm3130, %v3132, %v3128
    %v3134 = vmul.f32 1.0, %v3133
    %v3135 = vtanh.pop %v2943
    %v3136 = vxor.u32 %v2944, 2147483648
    %v3137 = vmul.f32 %v3136, 1.442695
    %v3138 = vpow.pop %v3137
    %v3139 = vadd.f32 %v3138, 1.0
    %v3140 = vrcp.pop %v3139
    %v3141 = vmul.f32 %v3139, %v3140
    %v3142 = vsub.f32 1.0, %v3141
    %v3143 = vmul.f32 %v3140, %v3142
    %v3144 = vadd.f32 %v3140, %v3143
    %vm3145 = vweird.f32 %v3139
    %vm3146 = vweird.f32 %v3140
    %vm3147 = vmor %vm3145, %vm3146
    %v3148 = vsel %vm3147, %v3140, %v3144
    %v3149 = vand.u32 2147483647, %v3139
    %vm3150 = vcmp.eq.f32.partialorder %v3149, 8.507059e+37
    %v3151 = vand.u32 %v3139, 2147483648
    %v3152 = vor.u32 1.1754944e-38, %v3151
    %v3153 = vsel %vm3150, %v3152, %v3148
    %v3154 = vmul.f32 1.0, %v3153
    %v3155 = vmul.f32 %v3134, %v2713
    %v3156 = vmul.f32 %v3115, %v3135
    %v3157 = vadd.f32 %v3155, %v3156
    %v3158 = vtanh.pop %v3157
    %v3159 = vmul.f32 %v3154, %v3158
    %v3160 = vxor.u32 %v3093, 2147483648
    %v3161 = vmul.f32 %v3160, 1.442695
    %v3162 = vpow.pop %v3161
    %v3163 = vadd.f32 %v3162, 1.0
    %v3164 = vrcp.pop %v3163
    %v3165 = vmul.f32 %v3163, %v3164
    %v3166 = vsub.f32 1.0, %v3165
    %v3167 = vmul.f32 %v3164, %v3166
    %v3168 = vadd.f32 %v3164, %v3167
    %vm3169 = vweird.f32 %v3163
    %vm3170 = vweird.f32 %v3164
    %vm3171 = vmor %vm3169, %vm3170
    %v3172 = vsel %vm3171, %v3164, %v3168
    %v3173 = vand.u32 2147483647, %v3163
    %vm3174 = vcmp.eq.f32.partialorder %v3173, 8.507059e+37
    %v3175 = vand.u32 %v3163, 2147483648
    %v3176 = vor.u32 1.1754944e-38, %v3175
    %v3177 = vsel %vm3174, %v3176, %v3172
    %v3178 = vmul.f32 1.0, %v3177
    %v3179 = vxor.u32 %v3094, 2147483648
    %v3180 = vmul.f32 %v3179, 1.442695
    %v3181 = vpow.pop %v3180
    %v3182 = vadd.f32 %v3181, 1.0
    %v3183 = vrcp.pop %v3182
    %v3184 = vmul.f32 %v3182, %v3183
    %v3185 = vsub.f32 1.0, %v3184
    %v3186 = vmul.f32 %v3183, %v3185
    %v3187 = vadd.f32 %v3183, %v3186
    %vm3188 = vweird.f32 %v3182
    %vm3189 = vweird.f32 %v3183
    %vm3190 = vmor %vm3188, %vm3189
    %v3191 = vsel %vm3190, %v3183, %v3187
    %v3192 = vand.u32 2147483647, %v3182
    %vm3193 = vcmp.eq.f32.partialorder %v3192, 8.507059e+37
    %v3194 = vand.u32 %v3182, 2147483648
    %v3195 = vor.u32 1.1754944e-38, %v3194
    %v3196 = vsel %vm3193, %v3195, %v3191
    %v3197 = vmul.f32 1.0, %v3196
    %v3198 = vtanh.pop %v3095
    %v3199 = vxor.u32 %v3096, 2147483648
    %v3200 = vmul.f32 %v3199, 1.442695
    %v3201 = vpow.pop %v3200
    %v3202 = vadd.f32 %v3201, 1.0
    %v3203 = vrcp.pop %v3202
    %v3204 = vmul.f32 %v3202, %v3203
    %v3205 = vsub.f32 1.0, %v3204
    %v3206 = vmul.f32 %v3203, %v3205
    %v3207 = vadd.f32 %v3203, %v3206
    %vm3208 = vweird.f32 %v3202
    %vm3209 = vweird.f32 %v3203
    %vm3210 = vmor %vm3208, %vm3209
    %v3211 = vsel %vm3210, %v3203, %v3207
    %v3212 = vand.u32 2147483647, %v3202
    %vm3213 = vcmp.eq.f32.partialorder %v3212, 8.507059e+37
    %v3214 = vand.u32 %v3202, 2147483648
    %v3215 = vor.u32 1.1754944e-38, %v3214
    %v3216 = vsel %vm3213, %v3215, %v3211
    %v3217 = vmul.f32 1.0, %v3216
    %v3218 = vmul.f32 %v3197, %v2776
    %v3219 = vmul.f32 %v3178, %v3198
    %v3220 = vadd.f32 %v3218, %v3219
    %v3221 = vtanh.pop %v3220
    %v3222 = vmul.f32 %v3217, %v3221
    %v3223 = vmul.f32 %v3159, %v977
    %3224 = vadd.xlane.f32.xlu0 %v3223
    %v3225 = vpop.xlane.xlu0 %3224
    %v3227 = vperm.slane %v3225, %v984
    %3229 = vst.msk [vmem:[#allocation3 + $0x5] sm:$0x1] %vm987, %v3227
    %v3230 = vmul.f32 %v3222, %v990
    %3231 = vadd.xlane.f32.xlu0 %v3230
    %v3232 = vpop.xlane.xlu0 %3231
    %v3234 = vperm.slane %v3232, %v984
    %3236 = vst.msk [vmem:[#allocation4 + $0x2] sm:$0x1] %vm987, %v3234
    %v3237 = vld [vmem:[%s1156] sm:$0xff]
    %v3238 = vld [vmem:[%s1156 + $0x8] sm:$0xff]
    %v3239 = vld [vmem:[%s1156 + $0x10] sm:$0xff]
    %v3240 = vld [vmem:[%s1156 + $0x18] sm:$0xff]
    %v3241 = vld [vmem:[#allocation9] sm:$0xff]
    %v3242 = vld [vmem:[#allocation9 + $0x8] sm:$0xff]
    %v3243 = vld [vmem:[#allocation9 + $0x10] sm:$0xff]
    %v3244 = vld [vmem:[#allocation9 + $0x18] sm:$0xff]
    %v3245 = vld [vmem:[#allocation9 + $0x20] sm:$0xff]
    %v3246 = vld [vmem:[#allocation9 + $0x28] sm:$0xff]
    %v3247 = vld [vmem:[#allocation9 + $0x30] sm:$0xff]
    %v3248 = vld [vmem:[#allocation9 + $0x38] sm:$0xff]
    %v3249 = vld [vmem:[#allocation9 + $0x40] sm:$0xff]
    %v3250 = vld [vmem:[#allocation9 + $0x48] sm:$0xff]
    %v3251 = vld [vmem:[#allocation9 + $0x50] sm:$0xff]
    %v3252 = vld [vmem:[#allocation9 + $0x58] sm:$0xff]
    %v3253 = vld [vmem:[#allocation9 + $0x60] sm:$0xff]
    %v3254 = vld [vmem:[#allocation9 + $0x68] sm:$0xff]
    %v3255 = vld [vmem:[#allocation9 + $0x70] sm:$0xff]
    %v3256 = vld [vmem:[#allocation9 + $0x78] sm:$0xff]
    %v3257 = vld [vmem:[#allocation9 + $0x80] sm:$0xff]
    %v3258 = vld [vmem:[#allocation9 + $0x88] sm:$0xff]
    %v3259 = vld [vmem:[#allocation9 + $0x90] sm:$0xff]
    %v3260 = vld [vmem:[#allocation9 + $0x98] sm:$0xff]
    %v3261 = vld [vmem:[#allocation9 + $0xa0] sm:$0xff]
    %v3262 = vld [vmem:[#allocation9 + $0xa8] sm:$0xff]
    %v3263 = vld [vmem:[#allocation9 + $0xb0] sm:$0xff]
    %v3264 = vld [vmem:[#allocation9 + $0xb8] sm:$0xff]
    %v3265 = vld [vmem:[#allocation9 + $0xc0] sm:$0xff]
    %v3266 = vld [vmem:[#allocation9 + $0xc8] sm:$0xff]
    %v3267 = vld [vmem:[#allocation9 + $0xd0] sm:$0xff]
    %v3268 = vld [vmem:[#allocation9 + $0xd8] sm:$0xff]
    %v3269 = vld [vmem:[#allocation9 + $0xe0] sm:$0xff]
    %v3270 = vld [vmem:[#allocation9 + $0xe8] sm:$0xff]
    %v3271 = vld [vmem:[#allocation9 + $0xf0] sm:$0xff]
    %v3272 = vld [vmem:[#allocation9 + $0xf8] sm:$0xff]
    %v3273 = vld [vmem:[#allocation9 + $0x100] sm:$0xff]
    %v3274 = vld [vmem:[#allocation9 + $0x108] sm:$0xff]
    %v3275 = vld [vmem:[#allocation9 + $0x110] sm:$0xff]
    %v3276 = vld [vmem:[#allocation9 + $0x118] sm:$0xff]
    %v3277 = vld [vmem:[#allocation9 + $0x120] sm:$0xff]
    %v3278 = vld [vmem:[#allocation9 + $0x128] sm:$0xff]
    %v3279 = vld [vmem:[#allocation9 + $0x130] sm:$0xff]
    %v3280 = vld [vmem:[#allocation9 + $0x138] sm:$0xff]
    %v3281 = vld [vmem:[#allocation9 + $0x140] sm:$0xff]
    %v3282 = vld [vmem:[#allocation9 + $0x148] sm:$0xff]
    %v3283 = vld [vmem:[#allocation9 + $0x150] sm:$0xff]
    %v3284 = vld [vmem:[#allocation9 + $0x158] sm:$0xff]
    %v3285 = vld [vmem:[#allocation9 + $0x160] sm:$0xff]
    %v3286 = vld [vmem:[#allocation9 + $0x168] sm:$0xff]
    %v3287 = vld [vmem:[#allocation9 + $0x170] sm:$0xff]
    %v3288 = vld [vmem:[#allocation9 + $0x178] sm:$0xff]
    %v3289 = vld [vmem:[#allocation9 + $0x180] sm:$0xff]
    %v3290 = vld [vmem:[#allocation9 + $0x188] sm:$0xff]
    %v3291 = vld [vmem:[#allocation9 + $0x190] sm:$0xff]
    %v3292 = vld [vmem:[#allocation9 + $0x198] sm:$0xff]
    %v3293 = vld [vmem:[#allocation9 + $0x1a0] sm:$0xff]
    %v3294 = vld [vmem:[#allocation9 + $0x1a8] sm:$0xff]
    %v3295 = vld [vmem:[#allocation9 + $0x1b0] sm:$0xff]
    %v3296 = vld [vmem:[#allocation9 + $0x1b8] sm:$0xff]
    %v3297 = vld [vmem:[#allocation9 + $0x1c0] sm:$0xff]
    %v3298 = vld [vmem:[#allocation9 + $0x1c8] sm:$0xff]
    %v3299 = vld [vmem:[#allocation9 + $0x1d0] sm:$0xff]
    %v3300 = vld [vmem:[#allocation9 + $0x1d8] sm:$0xff]
    %v3301 = vld [vmem:[#allocation9 + $0x1e0] sm:$0xff]
    %v3302 = vld [vmem:[#allocation9 + $0x1e8] sm:$0xff]
    %v3303 = vld [vmem:[#allocation9 + $0x1f0] sm:$0xff]
    %v3304 = vld [vmem:[#allocation9 + $0x1f8] sm:$0xff]
    %3305 = vmatpush.msra.mxu0 %v3301
    %3306 = vmatpush.msra.mxu0 %v3297
    %3307 = vmatpush.msra.mxu0 %v3293
    %3308 = vmatpush.msra.mxu0 %v3289
    %3309 = vmatpush.msra.mxu0 %v3285
    %3310 = vmatpush.msra.mxu0 %v3281
    %3311 = vmatpush.msra.mxu0 %v3277
    %3312 = vmatpush.msra.mxu0 %v3273
    %3313 = vmatpush.msra.mxu0 %v3269
    %3314 = vmatpush.msra.mxu0 %v3265
    %3315 = vmatpush.msra.mxu0 %v3261
    %3316 = vmatpush.msra.mxu0 %v3257
    %3317 = vmatpush.msra.mxu0 %v3253
    %3318 = vmatpush.msra.mxu0 %v3249
    %3319 = vmatpush.msra.mxu0 %v3245
    %3320 = vmatpush.msra.mxu0 %v3241
    %3321 = vmatmul.f32.gmra.mxu0 %v3159
    %v3322 = vpop.f32.mrf.mxu0
    %v3323 = vadd.f32 0.0, %v3322
    %3324 = vdwg.mxu0
    %3325 = vmatpush.msra.mxu0 %v3302
    %3326 = vmatpush.msra.mxu0 %v3298
    %3327 = vmatpush.msra.mxu0 %v3294
    %3328 = vmatpush.msra.mxu0 %v3290
    %3329 = vmatpush.msra.mxu0 %v3286
    %3330 = vmatpush.msra.mxu0 %v3282
    %3331 = vmatpush.msra.mxu0 %v3278
    %3332 = vmatpush.msra.mxu0 %v3274
    %3333 = vmatpush.msra.mxu0 %v3270
    %3334 = vmatpush.msra.mxu0 %v3266
    %3335 = vmatpush.msra.mxu0 %v3262
    %3336 = vmatpush.msra.mxu0 %v3258
    %3337 = vmatpush.msra.mxu0 %v3254
    %3338 = vmatpush.msra.mxu0 %v3250
    %3339 = vmatpush.msra.mxu0 %v3246
    %3340 = vmatpush.msra.mxu0 %v3242
    %3341 = vmatmul.f32.gmra.mxu0 %v3159
    %v3342 = vpop.f32.mrf.mxu0
    %v3343 = vadd.f32 0.0, %v3342
    %3344 = vdwg.mxu0
    %3345 = vmatpush.msra.mxu0 %v3303
    %3346 = vmatpush.msra.mxu0 %v3299
    %3347 = vmatpush.msra.mxu0 %v3295
    %3348 = vmatpush.msra.mxu0 %v3291
    %3349 = vmatpush.msra.mxu0 %v3287
    %3350 = vmatpush.msra.mxu0 %v3283
    %3351 = vmatpush.msra.mxu0 %v3279
    %3352 = vmatpush.msra.mxu0 %v3275
    %3353 = vmatpush.msra.mxu0 %v3271
    %3354 = vmatpush.msra.mxu0 %v3267
    %3355 = vmatpush.msra.mxu0 %v3263
    %3356 = vmatpush.msra.mxu0 %v3259
    %3357 = vmatpush.msra.mxu0 %v3255
    %3358 = vmatpush.msra.mxu0 %v3251
    %3359 = vmatpush.msra.mxu0 %v3247
    %3360 = vmatpush.msra.mxu0 %v3243
    %3361 = vmatmul.f32.gmra.mxu0 %v3159
    %v3362 = vpop.f32.mrf.mxu0
    %v3363 = vadd.f32 0.0, %v3362
    %3364 = vdwg.mxu0
    %3365 = vmatpush.msra.mxu0 %v3304
    %3366 = vmatpush.msra.mxu0 %v3300
    %3367 = vmatpush.msra.mxu0 %v3296
    %3368 = vmatpush.msra.mxu0 %v3292
    %3369 = vmatpush.msra.mxu0 %v3288
    %3370 = vmatpush.msra.mxu0 %v3284
    %3371 = vmatpush.msra.mxu0 %v3280
    %3372 = vmatpush.msra.mxu0 %v3276
    %3373 = vmatpush.msra.mxu0 %v3272
    %3374 = vmatpush.msra.mxu0 %v3268
    %3375 = vmatpush.msra.mxu0 %v3264
    %3376 = vmatpush.msra.mxu0 %v3260
    %3377 = vmatpush.msra.mxu0 %v3256
    %3378 = vmatpush.msra.mxu0 %v3252
    %3379 = vmatpush.msra.mxu0 %v3248
    %3380 = vmatpush.msra.mxu0 %v3244
    %3381 = vmatmul.f32.gmra.mxu0 %v3159
    %v3382 = vpop.f32.mrf.mxu0
    %v3383 = vadd.f32 0.0, %v3382
    %3384 = vdwg.mxu0
    %v3385 = vadd.f32 %v3237, %v3323
    %v3386 = vadd.f32 %v3238, %v3343
    %v3387 = vadd.f32 %v3239, %v3363
    %v3388 = vadd.f32 %v3240, %v3383
    %v3389 = vld [vmem:[%s1001 + $0x20] sm:$0xff]
    %v3390 = vld [vmem:[%s1001 + $0x28] sm:$0xff]
    %v3391 = vld [vmem:[%s1001 + $0x30] sm:$0xff]
    %v3392 = vld [vmem:[%s1001 + $0x38] sm:$0xff]
    %v3393 = vld [vmem:[#allocation11] sm:$0xff]
    %v3394 = vld [vmem:[#allocation11 + $0x8] sm:$0xff]
    %v3395 = vld [vmem:[#allocation11 + $0x10] sm:$0xff]
    %v3396 = vld [vmem:[#allocation11 + $0x18] sm:$0xff]
    %v3397 = vld [vmem:[#allocation11 + $0x20] sm:$0xff]
    %v3398 = vld [vmem:[#allocation11 + $0x28] sm:$0xff]
    %v3399 = vld [vmem:[#allocation11 + $0x30] sm:$0xff]
    %v3400 = vld [vmem:[#allocation11 + $0x38] sm:$0xff]
    %v3401 = vld [vmem:[#allocation11 + $0x40] sm:$0xff]
    %v3402 = vld [vmem:[#allocation11 + $0x48] sm:$0xff]
    %v3403 = vld [vmem:[#allocation11 + $0x50] sm:$0xff]
    %v3404 = vld [vmem:[#allocation11 + $0x58] sm:$0xff]
    %v3405 = vld [vmem:[#allocation11 + $0x60] sm:$0xff]
    %v3406 = vld [vmem:[#allocation11 + $0x68] sm:$0xff]
    %v3407 = vld [vmem:[#allocation11 + $0x70] sm:$0xff]
    %v3408 = vld [vmem:[#allocation11 + $0x78] sm:$0xff]
    %v3409 = vld [vmem:[#allocation11 + $0x80] sm:$0xff]
    %v3410 = vld [vmem:[#allocation11 + $0x88] sm:$0xff]
    %v3411 = vld [vmem:[#allocation11 + $0x90] sm:$0xff]
    %v3412 = vld [vmem:[#allocation11 + $0x98] sm:$0xff]
    %v3413 = vld [vmem:[#allocation11 + $0xa0] sm:$0xff]
    %v3414 = vld [vmem:[#allocation11 + $0xa8] sm:$0xff]
    %v3415 = vld [vmem:[#allocation11 + $0xb0] sm:$0xff]
    %v3416 = vld [vmem:[#allocation11 + $0xb8] sm:$0xff]
    %v3417 = vld [vmem:[#allocation11 + $0xc0] sm:$0xff]
    %v3418 = vld [vmem:[#allocation11 + $0xc8] sm:$0xff]
    %v3419 = vld [vmem:[#allocation11 + $0xd0] sm:$0xff]
    %v3420 = vld [vmem:[#allocation11 + $0xd8] sm:$0xff]
    %v3421 = vld [vmem:[#allocation11 + $0xe0] sm:$0xff]
    %v3422 = vld [vmem:[#allocation11 + $0xe8] sm:$0xff]
    %v3423 = vld [vmem:[#allocation11 + $0xf0] sm:$0xff]
    %v3424 = vld [vmem:[#allocation11 + $0xf8] sm:$0xff]
    %v3425 = vld [vmem:[#allocation11 + $0x100] sm:$0xff]
    %v3426 = vld [vmem:[#allocation11 + $0x108] sm:$0xff]
    %v3427 = vld [vmem:[#allocation11 + $0x110] sm:$0xff]
    %v3428 = vld [vmem:[#allocation11 + $0x118] sm:$0xff]
    %v3429 = vld [vmem:[#allocation11 + $0x120] sm:$0xff]
    %v3430 = vld [vmem:[#allocation11 + $0x128] sm:$0xff]
    %v3431 = vld [vmem:[#allocation11 + $0x130] sm:$0xff]
    %v3432 = vld [vmem:[#allocation11 + $0x138] sm:$0xff]
    %v3433 = vld [vmem:[#allocation11 + $0x140] sm:$0xff]
    %v3434 = vld [vmem:[#allocation11 + $0x148] sm:$0xff]
    %v3435 = vld [vmem:[#allocation11 + $0x150] sm:$0xff]
    %v3436 = vld [vmem:[#allocation11 + $0x158] sm:$0xff]
    %v3437 = vld [vmem:[#allocation11 + $0x160] sm:$0xff]
    %v3438 = vld [vmem:[#allocation11 + $0x168] sm:$0xff]
    %v3439 = vld [vmem:[#allocation11 + $0x170] sm:$0xff]
    %v3440 = vld [vmem:[#allocation11 + $0x178] sm:$0xff]
    %v3441 = vld [vmem:[#allocation11 + $0x180] sm:$0xff]
    %v3442 = vld [vmem:[#allocation11 + $0x188] sm:$0xff]
    %v3443 = vld [vmem:[#allocation11 + $0x190] sm:$0xff]
    %v3444 = vld [vmem:[#allocation11 + $0x198] sm:$0xff]
    %v3445 = vld [vmem:[#allocation11 + $0x1a0] sm:$0xff]
    %v3446 = vld [vmem:[#allocation11 + $0x1a8] sm:$0xff]
    %v3447 = vld [vmem:[#allocation11 + $0x1b0] sm:$0xff]
    %v3448 = vld [vmem:[#allocation11 + $0x1b8] sm:$0xff]
    %v3449 = vld [vmem:[#allocation11 + $0x1c0] sm:$0xff]
    %v3450 = vld [vmem:[#allocation11 + $0x1c8] sm:$0xff]
    %v3451 = vld [vmem:[#allocation11 + $0x1d0] sm:$0xff]
    %v3452 = vld [vmem:[#allocation11 + $0x1d8] sm:$0xff]
    %v3453 = vld [vmem:[#allocation11 + $0x1e0] sm:$0xff]
    %v3454 = vld [vmem:[#allocation11 + $0x1e8] sm:$0xff]
    %v3455 = vld [vmem:[#allocation11 + $0x1f0] sm:$0xff]
    %v3456 = vld [vmem:[#allocation11 + $0x1f8] sm:$0xff]
    %3457 = vmatpush.msra.mxu0 %v3453
    %3458 = vmatpush.msra.mxu0 %v3449
    %3459 = vmatpush.msra.mxu0 %v3445
    %3460 = vmatpush.msra.mxu0 %v3441
    %3461 = vmatpush.msra.mxu0 %v3437
    %3462 = vmatpush.msra.mxu0 %v3433
    %3463 = vmatpush.msra.mxu0 %v3429
    %3464 = vmatpush.msra.mxu0 %v3425
    %3465 = vmatpush.msra.mxu0 %v3421
    %3466 = vmatpush.msra.mxu0 %v3417
    %3467 = vmatpush.msra.mxu0 %v3413
    %3468 = vmatpush.msra.mxu0 %v3409
    %3469 = vmatpush.msra.mxu0 %v3405
    %3470 = vmatpush.msra.mxu0 %v3401
    %3471 = vmatpush.msra.mxu0 %v3397
    %3472 = vmatpush.msra.mxu0 %v3393
    %3473 = vmatmul.f32.gmra.mxu0 %v3222
    %v3474 = vpop.f32.mrf.mxu0
    %v3475 = vadd.f32 0.0, %v3474
    %3476 = vdwg.mxu0
    %3477 = vmatpush.msra.mxu0 %v3454
    %3478 = vmatpush.msra.mxu0 %v3450
    %3479 = vmatpush.msra.mxu0 %v3446
    %3480 = vmatpush.msra.mxu0 %v3442
    %3481 = vmatpush.msra.mxu0 %v3438
    %3482 = vmatpush.msra.mxu0 %v3434
    %3483 = vmatpush.msra.mxu0 %v3430
    %3484 = vmatpush.msra.mxu0 %v3426
    %3485 = vmatpush.msra.mxu0 %v3422
    %3486 = vmatpush.msra.mxu0 %v3418
    %3487 = vmatpush.msra.mxu0 %v3414
    %3488 = vmatpush.msra.mxu0 %v3410
    %3489 = vmatpush.msra.mxu0 %v3406
    %3490 = vmatpush.msra.mxu0 %v3402
    %3491 = vmatpush.msra.mxu0 %v3398
    %3492 = vmatpush.msra.mxu0 %v3394
    %3493 = vmatmul.f32.gmra.mxu0 %v3222
    %v3494 = vpop.f32.mrf.mxu0
    %v3495 = vadd.f32 0.0, %v3494
    %3496 = vdwg.mxu0
    %3497 = vmatpush.msra.mxu0 %v3455
    %3498 = vmatpush.msra.mxu0 %v3451
    %3499 = vmatpush.msra.mxu0 %v3447
    %3500 = vmatpush.msra.mxu0 %v3443
    %3501 = vmatpush.msra.mxu0 %v3439
    %3502 = vmatpush.msra.mxu0 %v3435
    %3503 = vmatpush.msra.mxu0 %v3431
    %3504 = vmatpush.msra.mxu0 %v3427
    %3505 = vmatpush.msra.mxu0 %v3423
    %3506 = vmatpush.msra.mxu0 %v3419
    %3507 = vmatpush.msra.mxu0 %v3415
    %3508 = vmatpush.msra.mxu0 %v3411
    %3509 = vmatpush.msra.mxu0 %v3407
    %3510 = vmatpush.msra.mxu0 %v3403
    %3511 = vmatpush.msra.mxu0 %v3399
    %3512 = vmatpush.msra.mxu0 %v3395
    %3513 = vmatmul.f32.gmra.mxu0 %v3222
    %v3514 = vpop.f32.mrf.mxu0
    %v3515 = vadd.f32 0.0, %v3514
    %3516 = vdwg.mxu0
    %3517 = vmatpush.msra.mxu0 %v3456
    %3518 = vmatpush.msra.mxu0 %v3452
    %3519 = vmatpush.msra.mxu0 %v3448
    %3520 = vmatpush.msra.mxu0 %v3444
    %3521 = vmatpush.msra.mxu0 %v3440
    %3522 = vmatpush.msra.mxu0 %v3436
    %3523 = vmatpush.msra.mxu0 %v3432
    %3524 = vmatpush.msra.mxu0 %v3428
    %3525 = vmatpush.msra.mxu0 %v3424
    %3526 = vmatpush.msra.mxu0 %v3420
    %3527 = vmatpush.msra.mxu0 %v3416
    %3528 = vmatpush.msra.mxu0 %v3412
    %3529 = vmatpush.msra.mxu0 %v3408
    %3530 = vmatpush.msra.mxu0 %v3404
    %3531 = vmatpush.msra.mxu0 %v3400
    %3532 = vmatpush.msra.mxu0 %v3396
    %3533 = vmatmul.f32.gmra.mxu0 %v3222
    %v3534 = vpop.f32.mrf.mxu0
    %v3535 = vadd.f32 0.0, %v3534
    %3536 = vdwg.mxu0
    %v3537 = vadd.f32 %v3389, %v3475
    %v3538 = vadd.f32 %v3390, %v3495
    %v3539 = vadd.f32 %v3391, %v3515
    %v3540 = vadd.f32 %v3392, %v3535
    %v3541 = vxor.u32 %v3385, 2147483648
    %v3542 = vmul.f32 %v3541, 1.442695
    %v3543 = vpow.pop %v3542
    %v3544 = vadd.f32 %v3543, 1.0
    %v3545 = vrcp.pop %v3544
    %v3546 = vmul.f32 %v3544, %v3545
    %v3547 = vsub.f32 1.0, %v3546
    %v3548 = vmul.f32 %v3545, %v3547
    %v3549 = vadd.f32 %v3545, %v3548
    %vm3550 = vweird.f32 %v3544
    %vm3551 = vweird.f32 %v3545
    %vm3552 = vmor %vm3550, %vm3551
    %v3553 = vsel %vm3552, %v3545, %v3549
    %v3554 = vand.u32 2147483647, %v3544
    %vm3555 = vcmp.eq.f32.partialorder %v3554, 8.507059e+37
    %v3556 = vand.u32 %v3544, 2147483648
    %v3557 = vor.u32 1.1754944e-38, %v3556
    %v3558 = vsel %vm3555, %v3557, %v3553
    %v3559 = vmul.f32 1.0, %v3558
    %v3560 = vxor.u32 %v3386, 2147483648
    %v3561 = vmul.f32 %v3560, 1.442695
    %v3562 = vpow.pop %v3561
    %v3563 = vadd.f32 %v3562, 1.0
    %v3564 = vrcp.pop %v3563
    %v3565 = vmul.f32 %v3563, %v3564
    %v3566 = vsub.f32 1.0, %v3565
    %v3567 = vmul.f32 %v3564, %v3566
    %v3568 = vadd.f32 %v3564, %v3567
    %vm3569 = vweird.f32 %v3563
    %vm3570 = vweird.f32 %v3564
    %vm3571 = vmor %vm3569, %vm3570
    %v3572 = vsel %vm3571, %v3564, %v3568
    %v3573 = vand.u32 2147483647, %v3563
    %vm3574 = vcmp.eq.f32.partialorder %v3573, 8.507059e+37
    %v3575 = vand.u32 %v3563, 2147483648
    %v3576 = vor.u32 1.1754944e-38, %v3575
    %v3577 = vsel %vm3574, %v3576, %v3572
    %v3578 = vmul.f32 1.0, %v3577
    %v3579 = vtanh.pop %v3387
    %v3580 = vxor.u32 %v3388, 2147483648
    %v3581 = vmul.f32 %v3580, 1.442695
    %v3582 = vpow.pop %v3581
    %v3583 = vadd.f32 %v3582, 1.0
    %v3584 = vrcp.pop %v3583
    %v3585 = vmul.f32 %v3583, %v3584
    %v3586 = vsub.f32 1.0, %v3585
    %v3587 = vmul.f32 %v3584, %v3586
    %v3588 = vadd.f32 %v3584, %v3587
    %vm3589 = vweird.f32 %v3583
    %vm3590 = vweird.f32 %v3584
    %vm3591 = vmor %vm3589, %vm3590
    %v3592 = vsel %vm3591, %v3584, %v3588
    %v3593 = vand.u32 2147483647, %v3583
    %vm3594 = vcmp.eq.f32.partialorder %v3593, 8.507059e+37
    %v3595 = vand.u32 %v3583, 2147483648
    %v3596 = vor.u32 1.1754944e-38, %v3595
    %v3597 = vsel %vm3594, %v3596, %v3592
    %v3598 = vmul.f32 1.0, %v3597
    %v3599 = vmul.f32 %v3578, %v3157
    %v3600 = vmul.f32 %v3559, %v3579
    %v3601 = vadd.f32 %v3599, %v3600
    %v3602 = vtanh.pop %v3601
    %v3603 = vmul.f32 %v3598, %v3602
    %v3604 = vxor.u32 %v3537, 2147483648
    %v3605 = vmul.f32 %v3604, 1.442695
    %v3606 = vpow.pop %v3605
    %v3607 = vadd.f32 %v3606, 1.0
    %v3608 = vrcp.pop %v3607
    %v3609 = vmul.f32 %v3607, %v3608
    %v3610 = vsub.f32 1.0, %v3609
    %v3611 = vmul.f32 %v3608, %v3610
    %v3612 = vadd.f32 %v3608, %v3611
    %vm3613 = vweird.f32 %v3607
    %vm3614 = vweird.f32 %v3608
    %vm3615 = vmor %vm3613, %vm3614
    %v3616 = vsel %vm3615, %v3608, %v3612
    %v3617 = vand.u32 2147483647, %v3607
    %vm3618 = vcmp.eq.f32.partialorder %v3617, 8.507059e+37
    %v3619 = vand.u32 %v3607, 2147483648
    %v3620 = vor.u32 1.1754944e-38, %v3619
    %v3621 = vsel %vm3618, %v3620, %v3616
    %v3622 = vmul.f32 1.0, %v3621
    %v3623 = vxor.u32 %v3538, 2147483648
    %v3624 = vmul.f32 %v3623, 1.442695
    %v3625 = vpow.pop %v3624
    %v3626 = vadd.f32 %v3625, 1.0
    %v3627 = vrcp.pop %v3626
    %v3628 = vmul.f32 %v3626, %v3627
    %v3629 = vsub.f32 1.0, %v3628
    %v3630 = vmul.f32 %v3627, %v3629
    %v3631 = vadd.f32 %v3627, %v3630
    %vm3632 = vweird.f32 %v3626
    %vm3633 = vweird.f32 %v3627
    %vm3634 = vmor %vm3632, %vm3633
    %v3635 = vsel %vm3634, %v3627, %v3631
    %v3636 = vand.u32 2147483647, %v3626
    %vm3637 = vcmp.eq.f32.partialorder %v3636, 8.507059e+37
    %v3638 = vand.u32 %v3626, 2147483648
    %v3639 = vor.u32 1.1754944e-38, %v3638
    %v3640 = vsel %vm3637, %v3639, %v3635
    %v3641 = vmul.f32 1.0, %v3640
    %v3642 = vtanh.pop %v3539
    %v3643 = vxor.u32 %v3540, 2147483648
    %v3644 = vmul.f32 %v3643, 1.442695
    %v3645 = vpow.pop %v3644
    %v3646 = vadd.f32 %v3645, 1.0
    %v3647 = vrcp.pop %v3646
    %v3648 = vmul.f32 %v3646, %v3647
    %v3649 = vsub.f32 1.0, %v3648
    %v3650 = vmul.f32 %v3647, %v3649
    %v3651 = vadd.f32 %v3647, %v3650
    %vm3652 = vweird.f32 %v3646
    %vm3653 = vweird.f32 %v3647
    %vm3654 = vmor %vm3652, %vm3653
    %v3655 = vsel %vm3654, %v3647, %v3651
    %v3656 = vand.u32 2147483647, %v3646
    %vm3657 = vcmp.eq.f32.partialorder %v3656, 8.507059e+37
    %v3658 = vand.u32 %v3646, 2147483648
    %v3659 = vor.u32 1.1754944e-38, %v3658
    %v3660 = vsel %vm3657, %v3659, %v3655
    %v3661 = vmul.f32 1.0, %v3660
    %v3662 = vmul.f32 %v3641, %v3220
    %v3663 = vmul.f32 %v3622, %v3642
    %v3664 = vadd.f32 %v3662, %v3663
    %v3665 = vtanh.pop %v3664
    %v3666 = vmul.f32 %v3661, %v3665
    %v3667 = vmul.f32 %v3603, %v977
    %3668 = vadd.xlane.f32.xlu0 %v3667
    %v3669 = vpop.xlane.xlu0 %3668
    %v3671 = vperm.slane %v3669, %v984
    %3673 = vst.msk [vmem:[#allocation3 + $0x6] sm:$0x1] %vm987, %v3671
    %v3674 = vmul.f32 %v3666, %v990
    %3675 = vadd.xlane.f32.xlu0 %v3674
    %v3676 = vpop.xlane.xlu0 %3675
    %v3678 = vperm.slane %v3676, %v984
    %3680 = vst.msk [vmem:[#allocation4 + $0x1] sm:$0x1] %vm987, %v3678
    %v3681 = vld [vmem:[%s697] sm:$0xff]
    %v3682 = vld [vmem:[%s697 + $0x8] sm:$0xff]
    %v3683 = vld [vmem:[%s697 + $0x10] sm:$0xff]
    %v3684 = vld [vmem:[%s697 + $0x18] sm:$0xff]
    %v3685 = vld [vmem:[#allocation9] sm:$0xff]
    %v3686 = vld [vmem:[#allocation9 + $0x8] sm:$0xff]
    %v3687 = vld [vmem:[#allocation9 + $0x10] sm:$0xff]
    %v3688 = vld [vmem:[#allocation9 + $0x18] sm:$0xff]
    %v3689 = vld [vmem:[#allocation9 + $0x20] sm:$0xff]
    %v3690 = vld [vmem:[#allocation9 + $0x28] sm:$0xff]
    %v3691 = vld [vmem:[#allocation9 + $0x30] sm:$0xff]
    %v3692 = vld [vmem:[#allocation9 + $0x38] sm:$0xff]
    %v3693 = vld [vmem:[#allocation9 + $0x40] sm:$0xff]
    %v3694 = vld [vmem:[#allocation9 + $0x48] sm:$0xff]
    %v3695 = vld [vmem:[#allocation9 + $0x50] sm:$0xff]
    %v3696 = vld [vmem:[#allocation9 + $0x58] sm:$0xff]
    %v3697 = vld [vmem:[#allocation9 + $0x60] sm:$0xff]
    %v3698 = vld [vmem:[#allocation9 + $0x68] sm:$0xff]
    %v3699 = vld [vmem:[#allocation9 + $0x70] sm:$0xff]
    %v3700 = vld [vmem:[#allocation9 + $0x78] sm:$0xff]
    %v3701 = vld [vmem:[#allocation9 + $0x80] sm:$0xff]
    %v3702 = vld [vmem:[#allocation9 + $0x88] sm:$0xff]
    %v3703 = vld [vmem:[#allocation9 + $0x90] sm:$0xff]
    %v3704 = vld [vmem:[#allocation9 + $0x98] sm:$0xff]
    %v3705 = vld [vmem:[#allocation9 + $0xa0] sm:$0xff]
    %v3706 = vld [vmem:[#allocation9 + $0xa8] sm:$0xff]
    %v3707 = vld [vmem:[#allocation9 + $0xb0] sm:$0xff]
    %v3708 = vld [vmem:[#allocation9 + $0xb8] sm:$0xff]
    %v3709 = vld [vmem:[#allocation9 + $0xc0] sm:$0xff]
    %v3710 = vld [vmem:[#allocation9 + $0xc8] sm:$0xff]
    %v3711 = vld [vmem:[#allocation9 + $0xd0] sm:$0xff]
    %v3712 = vld [vmem:[#allocation9 + $0xd8] sm:$0xff]
    %v3713 = vld [vmem:[#allocation9 + $0xe0] sm:$0xff]
    %v3714 = vld [vmem:[#allocation9 + $0xe8] sm:$0xff]
    %v3715 = vld [vmem:[#allocation9 + $0xf0] sm:$0xff]
    %v3716 = vld [vmem:[#allocation9 + $0xf8] sm:$0xff]
    %v3717 = vld [vmem:[#allocation9 + $0x100] sm:$0xff]
    %v3718 = vld [vmem:[#allocation9 + $0x108] sm:$0xff]
    %v3719 = vld [vmem:[#allocation9 + $0x110] sm:$0xff]
    %v3720 = vld [vmem:[#allocation9 + $0x118] sm:$0xff]
    %v3721 = vld [vmem:[#allocation9 + $0x120] sm:$0xff]
    %v3722 = vld [vmem:[#allocation9 + $0x128] sm:$0xff]
    %v3723 = vld [vmem:[#allocation9 + $0x130] sm:$0xff]
    %v3724 = vld [vmem:[#allocation9 + $0x138] sm:$0xff]
    %v3725 = vld [vmem:[#allocation9 + $0x140] sm:$0xff]
    %v3726 = vld [vmem:[#allocation9 + $0x148] sm:$0xff]
    %v3727 = vld [vmem:[#allocation9 + $0x150] sm:$0xff]
    %v3728 = vld [vmem:[#allocation9 + $0x158] sm:$0xff]
    %v3729 = vld [vmem:[#allocation9 + $0x160] sm:$0xff]
    %v3730 = vld [vmem:[#allocation9 + $0x168] sm:$0xff]
    %v3731 = vld [vmem:[#allocation9 + $0x170] sm:$0xff]
    %v3732 = vld [vmem:[#allocation9 + $0x178] sm:$0xff]
    %v3733 = vld [vmem:[#allocation9 + $0x180] sm:$0xff]
    %v3734 = vld [vmem:[#allocation9 + $0x188] sm:$0xff]
    %v3735 = vld [vmem:[#allocation9 + $0x190] sm:$0xff]
    %v3736 = vld [vmem:[#allocation9 + $0x198] sm:$0xff]
    %v3737 = vld [vmem:[#allocation9 + $0x1a0] sm:$0xff]
    %v3738 = vld [vmem:[#allocation9 + $0x1a8] sm:$0xff]
    %v3739 = vld [vmem:[#allocation9 + $0x1b0] sm:$0xff]
    %v3740 = vld [vmem:[#allocation9 + $0x1b8] sm:$0xff]
    %v3741 = vld [vmem:[#allocation9 + $0x1c0] sm:$0xff]
    %v3742 = vld [vmem:[#allocation9 + $0x1c8] sm:$0xff]
    %v3743 = vld [vmem:[#allocation9 + $0x1d0] sm:$0xff]
    %v3744 = vld [vmem:[#allocation9 + $0x1d8] sm:$0xff]
    %v3745 = vld [vmem:[#allocation9 + $0x1e0] sm:$0xff]
    %v3746 = vld [vmem:[#allocation9 + $0x1e8] sm:$0xff]
    %v3747 = vld [vmem:[#allocation9 + $0x1f0] sm:$0xff]
    %v3748 = vld [vmem:[#allocation9 + $0x1f8] sm:$0xff]
    %3749 = vmatpush.msra.mxu0 %v3745
    %3750 = vmatpush.msra.mxu0 %v3741
    %3751 = vmatpush.msra.mxu0 %v3737
    %3752 = vmatpush.msra.mxu0 %v3733
    %3753 = vmatpush.msra.mxu0 %v3729
    %3754 = vmatpush.msra.mxu0 %v3725
    %3755 = vmatpush.msra.mxu0 %v3721
    %3756 = vmatpush.msra.mxu0 %v3717
    %3757 = vmatpush.msra.mxu0 %v3713
    %3758 = vmatpush.msra.mxu0 %v3709
    %3759 = vmatpush.msra.mxu0 %v3705
    %3760 = vmatpush.msra.mxu0 %v3701
    %3761 = vmatpush.msra.mxu0 %v3697
    %3762 = vmatpush.msra.mxu0 %v3693
    %3763 = vmatpush.msra.mxu0 %v3689
    %3764 = vmatpush.msra.mxu0 %v3685
    %3765 = vmatmul.f32.gmra.mxu0 %v3603
    %v3766 = vpop.f32.mrf.mxu0
    %v3767 = vadd.f32 0.0, %v3766
    %3768 = vdwg.mxu0
    %3769 = vmatpush.msra.mxu0 %v3746
    %3770 = vmatpush.msra.mxu0 %v3742
    %3771 = vmatpush.msra.mxu0 %v3738
    %3772 = vmatpush.msra.mxu0 %v3734
    %3773 = vmatpush.msra.mxu0 %v3730
    %3774 = vmatpush.msra.mxu0 %v3726
    %3775 = vmatpush.msra.mxu0 %v3722
    %3776 = vmatpush.msra.mxu0 %v3718
    %3777 = vmatpush.msra.mxu0 %v3714
    %3778 = vmatpush.msra.mxu0 %v3710
    %3779 = vmatpush.msra.mxu0 %v3706
    %3780 = vmatpush.msra.mxu0 %v3702
    %3781 = vmatpush.msra.mxu0 %v3698
    %3782 = vmatpush.msra.mxu0 %v3694
    %3783 = vmatpush.msra.mxu0 %v3690
    %3784 = vmatpush.msra.mxu0 %v3686
    %3785 = vmatmul.f32.gmra.mxu0 %v3603
    %v3786 = vpop.f32.mrf.mxu0
    %v3787 = vadd.f32 0.0, %v3786
    %3788 = vdwg.mxu0
    %3789 = vmatpush.msra.mxu0 %v3747
    %3790 = vmatpush.msra.mxu0 %v3743
    %3791 = vmatpush.msra.mxu0 %v3739
    %3792 = vmatpush.msra.mxu0 %v3735
    %3793 = vmatpush.msra.mxu0 %v3731
    %3794 = vmatpush.msra.mxu0 %v3727
    %3795 = vmatpush.msra.mxu0 %v3723
    %3796 = vmatpush.msra.mxu0 %v3719
    %3797 = vmatpush.msra.mxu0 %v3715
    %3798 = vmatpush.msra.mxu0 %v3711
    %3799 = vmatpush.msra.mxu0 %v3707
    %3800 = vmatpush.msra.mxu0 %v3703
    %3801 = vmatpush.msra.mxu0 %v3699
    %3802 = vmatpush.msra.mxu0 %v3695
    %3803 = vmatpush.msra.mxu0 %v3691
    %3804 = vmatpush.msra.mxu0 %v3687
    %3805 = vmatmul.f32.gmra.mxu0 %v3603
    %v3806 = vpop.f32.mrf.mxu0
    %v3807 = vadd.f32 0.0, %v3806
    %3808 = vdwg.mxu0
    %3809 = vmatpush.msra.mxu0 %v3748
    %3810 = vmatpush.msra.mxu0 %v3744
    %3811 = vmatpush.msra.mxu0 %v3740
    %3812 = vmatpush.msra.mxu0 %v3736
    %3813 = vmatpush.msra.mxu0 %v3732
    %3814 = vmatpush.msra.mxu0 %v3728
    %3815 = vmatpush.msra.mxu0 %v3724
    %3816 = vmatpush.msra.mxu0 %v3720
    %3817 = vmatpush.msra.mxu0 %v3716
    %3818 = vmatpush.msra.mxu0 %v3712
    %3819 = vmatpush.msra.mxu0 %v3708
    %3820 = vmatpush.msra.mxu0 %v3704
    %3821 = vmatpush.msra.mxu0 %v3700
    %3822 = vmatpush.msra.mxu0 %v3696
    %3823 = vmatpush.msra.mxu0 %v3692
    %3824 = vmatpush.msra.mxu0 %v3688
    %3825 = vmatmul.f32.gmra.mxu0 %v3603
    %v3826 = vpop.f32.mrf.mxu0
    %v3827 = vadd.f32 0.0, %v3826
    %3828 = vdwg.mxu0
    %v3829 = vadd.f32 %v3681, %v3767
    %v3830 = vadd.f32 %v3682, %v3787
    %v3831 = vadd.f32 %v3683, %v3807
    %v3832 = vadd.f32 %v3684, %v3827
    %v3833 = vld [vmem:[%s542 + $0x20] sm:$0xff]
    %v3834 = vld [vmem:[%s542 + $0x28] sm:$0xff]
    %v3835 = vld [vmem:[%s542 + $0x30] sm:$0xff]
    %v3836 = vld [vmem:[%s542 + $0x38] sm:$0xff]
    %v3837 = vld [vmem:[#allocation11] sm:$0xff]
    %v3838 = vld [vmem:[#allocation11 + $0x8] sm:$0xff]
    %v3839 = vld [vmem:[#allocation11 + $0x10] sm:$0xff]
    %v3840 = vld [vmem:[#allocation11 + $0x18] sm:$0xff]
    %v3841 = vld [vmem:[#allocation11 + $0x20] sm:$0xff]
    %v3842 = vld [vmem:[#allocation11 + $0x28] sm:$0xff]
    %v3843 = vld [vmem:[#allocation11 + $0x30] sm:$0xff]
    %v3844 = vld [vmem:[#allocation11 + $0x38] sm:$0xff]
    %v3845 = vld [vmem:[#allocation11 + $0x40] sm:$0xff]
    %v3846 = vld [vmem:[#allocation11 + $0x48] sm:$0xff]
    %v3847 = vld [vmem:[#allocation11 + $0x50] sm:$0xff]
    %v3848 = vld [vmem:[#allocation11 + $0x58] sm:$0xff]
    %v3849 = vld [vmem:[#allocation11 + $0x60] sm:$0xff]
    %v3850 = vld [vmem:[#allocation11 + $0x68] sm:$0xff]
    %v3851 = vld [vmem:[#allocation11 + $0x70] sm:$0xff]
    %v3852 = vld [vmem:[#allocation11 + $0x78] sm:$0xff]
    %v3853 = vld [vmem:[#allocation11 + $0x80] sm:$0xff]
    %v3854 = vld [vmem:[#allocation11 + $0x88] sm:$0xff]
    %v3855 = vld [vmem:[#allocation11 + $0x90] sm:$0xff]
    %v3856 = vld [vmem:[#allocation11 + $0x98] sm:$0xff]
    %v3857 = vld [vmem:[#allocation11 + $0xa0] sm:$0xff]
    %v3858 = vld [vmem:[#allocation11 + $0xa8] sm:$0xff]
    %v3859 = vld [vmem:[#allocation11 + $0xb0] sm:$0xff]
    %v3860 = vld [vmem:[#allocation11 + $0xb8] sm:$0xff]
    %v3861 = vld [vmem:[#allocation11 + $0xc0] sm:$0xff]
    %v3862 = vld [vmem:[#allocation11 + $0xc8] sm:$0xff]
    %v3863 = vld [vmem:[#allocation11 + $0xd0] sm:$0xff]
    %v3864 = vld [vmem:[#allocation11 + $0xd8] sm:$0xff]
    %v3865 = vld [vmem:[#allocation11 + $0xe0] sm:$0xff]
    %v3866 = vld [vmem:[#allocation11 + $0xe8] sm:$0xff]
    %v3867 = vld [vmem:[#allocation11 + $0xf0] sm:$0xff]
    %v3868 = vld [vmem:[#allocation11 + $0xf8] sm:$0xff]
    %v3869 = vld [vmem:[#allocation11 + $0x100] sm:$0xff]
    %v3870 = vld [vmem:[#allocation11 + $0x108] sm:$0xff]
    %v3871 = vld [vmem:[#allocation11 + $0x110] sm:$0xff]
    %v3872 = vld [vmem:[#allocation11 + $0x118] sm:$0xff]
    %v3873 = vld [vmem:[#allocation11 + $0x120] sm:$0xff]
    %v3874 = vld [vmem:[#allocation11 + $0x128] sm:$0xff]
    %v3875 = vld [vmem:[#allocation11 + $0x130] sm:$0xff]
    %v3876 = vld [vmem:[#allocation11 + $0x138] sm:$0xff]
    %v3877 = vld [vmem:[#allocation11 + $0x140] sm:$0xff]
    %v3878 = vld [vmem:[#allocation11 + $0x148] sm:$0xff]
    %v3879 = vld [vmem:[#allocation11 + $0x150] sm:$0xff]
    %v3880 = vld [vmem:[#allocation11 + $0x158] sm:$0xff]
    %v3881 = vld [vmem:[#allocation11 + $0x160] sm:$0xff]
    %v3882 = vld [vmem:[#allocation11 + $0x168] sm:$0xff]
    %v3883 = vld [vmem:[#allocation11 + $0x170] sm:$0xff]
    %v3884 = vld [vmem:[#allocation11 + $0x178] sm:$0xff]
    %v3885 = vld [vmem:[#allocation11 + $0x180] sm:$0xff]
    %v3886 = vld [vmem:[#allocation11 + $0x188] sm:$0xff]
    %v3887 = vld [vmem:[#allocation11 + $0x190] sm:$0xff]
    %v3888 = vld [vmem:[#allocation11 + $0x198] sm:$0xff]
    %v3889 = vld [vmem:[#allocation11 + $0x1a0] sm:$0xff]
    %v3890 = vld [vmem:[#allocation11 + $0x1a8] sm:$0xff]
    %v3891 = vld [vmem:[#allocation11 + $0x1b0] sm:$0xff]
    %v3892 = vld [vmem:[#allocation11 + $0x1b8] sm:$0xff]
    %v3893 = vld [vmem:[#allocation11 + $0x1c0] sm:$0xff]
    %v3894 = vld [vmem:[#allocation11 + $0x1c8] sm:$0xff]
    %v3895 = vld [vmem:[#allocation11 + $0x1d0] sm:$0xff]
    %v3896 = vld [vmem:[#allocation11 + $0x1d8] sm:$0xff]
    %v3897 = vld [vmem:[#allocation11 + $0x1e0] sm:$0xff]
    %v3898 = vld [vmem:[#allocation11 + $0x1e8] sm:$0xff]
    %v3899 = vld [vmem:[#allocation11 + $0x1f0] sm:$0xff]
    %v3900 = vld [vmem:[#allocation11 + $0x1f8] sm:$0xff]
    %3901 = vmatpush.msra.mxu0 %v3897
    %3902 = vmatpush.msra.mxu0 %v3893
    %3903 = vmatpush.msra.mxu0 %v3889
    %3904 = vmatpush.msra.mxu0 %v3885
    %3905 = vmatpush.msra.mxu0 %v3881
    %3906 = vmatpush.msra.mxu0 %v3877
    %3907 = vmatpush.msra.mxu0 %v3873
    %3908 = vmatpush.msra.mxu0 %v3869
    %3909 = vmatpush.msra.mxu0 %v3865
    %3910 = vmatpush.msra.mxu0 %v3861
    %3911 = vmatpush.msra.mxu0 %v3857
    %3912 = vmatpush.msra.mxu0 %v3853
    %3913 = vmatpush.msra.mxu0 %v3849
    %3914 = vmatpush.msra.mxu0 %v3845
    %3915 = vmatpush.msra.mxu0 %v3841
    %3916 = vmatpush.msra.mxu0 %v3837
    %3917 = vmatmul.f32.gmra.mxu0 %v3666
    %v3918 = vpop.f32.mrf.mxu0
    %v3919 = vadd.f32 0.0, %v3918
    %3920 = vdwg.mxu0
    %3921 = vmatpush.msra.mxu0 %v3898
    %3922 = vmatpush.msra.mxu0 %v3894
    %3923 = vmatpush.msra.mxu0 %v3890
    %3924 = vmatpush.msra.mxu0 %v3886
    %3925 = vmatpush.msra.mxu0 %v3882
    %3926 = vmatpush.msra.mxu0 %v3878
    %3927 = vmatpush.msra.mxu0 %v3874
    %3928 = vmatpush.msra.mxu0 %v3870
    %3929 = vmatpush.msra.mxu0 %v3866
    %3930 = vmatpush.msra.mxu0 %v3862
    %3931 = vmatpush.msra.mxu0 %v3858
    %3932 = vmatpush.msra.mxu0 %v3854
    %3933 = vmatpush.msra.mxu0 %v3850
    %3934 = vmatpush.msra.mxu0 %v3846
    %3935 = vmatpush.msra.mxu0 %v3842
    %3936 = vmatpush.msra.mxu0 %v3838
    %3937 = vmatmul.f32.gmra.mxu0 %v3666
    %v3938 = vpop.f32.mrf.mxu0
    %v3939 = vadd.f32 0.0, %v3938
    %3940 = vdwg.mxu0
    %3941 = vmatpush.msra.mxu0 %v3899
    %3942 = vmatpush.msra.mxu0 %v3895
    %3943 = vmatpush.msra.mxu0 %v3891
    %3944 = vmatpush.msra.mxu0 %v3887
    %3945 = vmatpush.msra.mxu0 %v3883
    %3946 = vmatpush.msra.mxu0 %v3879
    %3947 = vmatpush.msra.mxu0 %v3875
    %3948 = vmatpush.msra.mxu0 %v3871
    %3949 = vmatpush.msra.mxu0 %v3867
    %3950 = vmatpush.msra.mxu0 %v3863
    %3951 = vmatpush.msra.mxu0 %v3859
    %3952 = vmatpush.msra.mxu0 %v3855
    %3953 = vmatpush.msra.mxu0 %v3851
    %3954 = vmatpush.msra.mxu0 %v3847
    %3955 = vmatpush.msra.mxu0 %v3843
    %3956 = vmatpush.msra.mxu0 %v3839
    %3957 = vmatmul.f32.gmra.mxu0 %v3666
    %v3958 = vpop.f32.mrf.mxu0
    %v3959 = vadd.f32 0.0, %v3958
    %3960 = vdwg.mxu0
    %3961 = vmatpush.msra.mxu0 %v3900
    %3962 = vmatpush.msra.mxu0 %v3896
    %3963 = vmatpush.msra.mxu0 %v3892
    %3964 = vmatpush.msra.mxu0 %v3888
    %3965 = vmatpush.msra.mxu0 %v3884
    %3966 = vmatpush.msra.mxu0 %v3880
    %3967 = vmatpush.msra.mxu0 %v3876
    %3968 = vmatpush.msra.mxu0 %v3872
    %3969 = vmatpush.msra.mxu0 %v3868
    %3970 = vmatpush.msra.mxu0 %v3864
    %3971 = vmatpush.msra.mxu0 %v3860
    %3972 = vmatpush.msra.mxu0 %v3856
    %3973 = vmatpush.msra.mxu0 %v3852
    %3974 = vmatpush.msra.mxu0 %v3848
    %3975 = vmatpush.msra.mxu0 %v3844
    %3976 = vmatpush.msra.mxu0 %v3840
    %3977 = vmatmul.f32.gmra.mxu0 %v3666
    %v3978 = vpop.f32.mrf.mxu0
    %v3979 = vadd.f32 0.0, %v3978
    %3980 = vdwg.mxu0
    %v3981 = vadd.f32 %v3833, %v3919
    %v3982 = vadd.f32 %v3834, %v3939
    %v3983 = vadd.f32 %v3835, %v3959
    %v3984 = vadd.f32 %v3836, %v3979
    %v3985 = vxor.u32 %v3829, 2147483648
    %v3986 = vmul.f32 %v3985, 1.442695
    %v3987 = vpow.pop %v3986
    %v3988 = vadd.f32 %v3987, 1.0
    %v3989 = vrcp.pop %v3988
    %v3990 = vmul.f32 %v3988, %v3989
    %v3991 = vsub.f32 1.0, %v3990
    %v3992 = vmul.f32 %v3989, %v3991
    %v3993 = vadd.f32 %v3989, %v3992
    %vm3994 = vweird.f32 %v3988
    %vm3995 = vweird.f32 %v3989
    %vm3996 = vmor %vm3994, %vm3995
    %v3997 = vsel %vm3996, %v3989, %v3993
    %v3998 = vand.u32 2147483647, %v3988
    %vm3999 = vcmp.eq.f32.partialorder %v3998, 8.507059e+37
    %v4000 = vand.u32 %v3988, 2147483648
    %v4001 = vor.u32 1.1754944e-38, %v4000
    %v4002 = vsel %vm3999, %v4001, %v3997
    %v4003 = vmul.f32 1.0, %v4002
    %v4004 = vxor.u32 %v3830, 2147483648
    %v4005 = vmul.f32 %v4004, 1.442695
    %v4006 = vpow.pop %v4005
    %v4007 = vadd.f32 %v4006, 1.0
    %v4008 = vrcp.pop %v4007
    %v4009 = vmul.f32 %v4007, %v4008
    %v4010 = vsub.f32 1.0, %v4009
    %v4011 = vmul.f32 %v4008, %v4010
    %v4012 = vadd.f32 %v4008, %v4011
    %vm4013 = vweird.f32 %v4007
    %vm4014 = vweird.f32 %v4008
    %vm4015 = vmor %vm4013, %vm4014
    %v4016 = vsel %vm4015, %v4008, %v4012
    %v4017 = vand.u32 2147483647, %v4007
    %vm4018 = vcmp.eq.f32.partialorder %v4017, 8.507059e+37
    %v4019 = vand.u32 %v4007, 2147483648
    %v4020 = vor.u32 1.1754944e-38, %v4019
    %v4021 = vsel %vm4018, %v4020, %v4016
    %v4022 = vmul.f32 1.0, %v4021
    %v4023 = vtanh.pop %v3831
    %v4024 = vxor.u32 %v3832, 2147483648
    %v4025 = vmul.f32 %v4024, 1.442695
    %v4026 = vpow.pop %v4025
    %v4027 = vadd.f32 %v4026, 1.0
    %v4028 = vrcp.pop %v4027
    %v4029 = vmul.f32 %v4027, %v4028
    %v4030 = vsub.f32 1.0, %v4029
    %v4031 = vmul.f32 %v4028, %v4030
    %v4032 = vadd.f32 %v4028, %v4031
    %vm4033 = vweird.f32 %v4027
    %vm4034 = vweird.f32 %v4028
    %vm4035 = vmor %vm4033, %vm4034
    %v4036 = vsel %vm4035, %v4028, %v4032
    %v4037 = vand.u32 2147483647, %v4027
    %vm4038 = vcmp.eq.f32.partialorder %v4037, 8.507059e+37
    %v4039 = vand.u32 %v4027, 2147483648
    %v4040 = vor.u32 1.1754944e-38, %v4039
    %v4041 = vsel %vm4038, %v4040, %v4036
    %v4042 = vmul.f32 1.0, %v4041
    %v4043 = vmul.f32 %v4022, %v3601
    %v4044 = vmul.f32 %v4003, %v4023
    %v4045 = vadd.f32 %v4043, %v4044
    %v4046 = vtanh.pop %v4045
    %v4047 = vmul.f32 %v4042, %v4046
    %v4048 = vxor.u32 %v3981, 2147483648
    %v4049 = vmul.f32 %v4048, 1.442695
    %v4050 = vpow.pop %v4049
    %v4051 = vadd.f32 %v4050, 1.0
    %v4052 = vrcp.pop %v4051
    %v4053 = vmul.f32 %v4051, %v4052
    %v4054 = vsub.f32 1.0, %v4053
    %v4055 = vmul.f32 %v4052, %v4054
    %v4056 = vadd.f32 %v4052, %v4055
    %vm4057 = vweird.f32 %v4051
    %vm4058 = vweird.f32 %v4052
    %vm4059 = vmor %vm4057, %vm4058
    %v4060 = vsel %vm4059, %v4052, %v4056
    %v4061 = vand.u32 2147483647, %v4051
    %vm4062 = vcmp.eq.f32.partialorder %v4061, 8.507059e+37
    %v4063 = vand.u32 %v4051, 2147483648
    %v4064 = vor.u32 1.1754944e-38, %v4063
    %v4065 = vsel %vm4062, %v4064, %v4060
    %v4066 = vmul.f32 1.0, %v4065
    %v4067 = vxor.u32 %v3982, 2147483648
    %v4068 = vmul.f32 %v4067, 1.442695
    %v4069 = vpow.pop %v4068
    %v4070 = vadd.f32 %v4069, 1.0
    %v4071 = vrcp.pop %v4070
    %v4072 = vmul.f32 %v4070, %v4071
    %v4073 = vsub.f32 1.0, %v4072
    %v4074 = vmul.f32 %v4071, %v4073
    %v4075 = vadd.f32 %v4071, %v4074
    %vm4076 = vweird.f32 %v4070
    %vm4077 = vweird.f32 %v4071
    %vm4078 = vmor %vm4076, %vm4077
    %v4079 = vsel %vm4078, %v4071, %v4075
    %v4080 = vand.u32 2147483647, %v4070
    %vm4081 = vcmp.eq.f32.partialorder %v4080, 8.507059e+37
    %v4082 = vand.u32 %v4070, 2147483648
    %v4083 = vor.u32 1.1754944e-38, %v4082
    %v4084 = vsel %vm4081, %v4083, %v4079
    %v4085 = vmul.f32 1.0, %v4084
    %v4086 = vtanh.pop %v3983
    %v4087 = vxor.u32 %v3984, 2147483648
    %v4088 = vmul.f32 %v4087, 1.442695
    %v4089 = vpow.pop %v4088
    %v4090 = vadd.f32 %v4089, 1.0
    %v4091 = vrcp.pop %v4090
    %v4092 = vmul.f32 %v4090, %v4091
    %v4093 = vsub.f32 1.0, %v4092
    %v4094 = vmul.f32 %v4091, %v4093
    %v4095 = vadd.f32 %v4091, %v4094
    %vm4096 = vweird.f32 %v4090
    %vm4097 = vweird.f32 %v4091
    %vm4098 = vmor %vm4096, %vm4097
    %v4099 = vsel %vm4098, %v4091, %v4095
    %v4100 = vand.u32 2147483647, %v4090
    %vm4101 = vcmp.eq.f32.partialorder %v4100, 8.507059e+37
    %v4102 = vand.u32 %v4090, 2147483648
    %v4103 = vor.u32 1.1754944e-38, %v4102
    %v4104 = vsel %vm4101, %v4103, %v4099
    %v4105 = vmul.f32 1.0, %v4104
    %v4106 = vmul.f32 %v4085, %v3664
    %v4107 = vmul.f32 %v4066, %v4086
    %v4108 = vadd.f32 %v4106, %v4107
    %v4109 = vtanh.pop %v4108
    %v4110 = vmul.f32 %v4105, %v4109
    %v4111 = vmul.f32 %v4047, %v977
    %4112 = vadd.xlane.f32.xlu0 %v4111
    %v4113 = vpop.xlane.xlu0 %4112
    %v4115 = vperm.slane %v4113, %v984
    %4117 = vst.msk [vmem:[#allocation3 + $0x7] sm:$0x1] %vm987, %v4115
    %v4118 = vmul.f32 %v4110, %v990
    %4119 = vadd.xlane.f32.xlu0 %v4118
    %v4120 = vpop.xlane.xlu0 %4119
    %v4122 = vperm.slane %v4120, %v984
    %4124 = vst.msk [vmem:[#allocation4] sm:$0x1] %vm987, %v4122
    %v4125 = vld [vmem:[#allocation3] sm:$0xff]
    %v4126 = vld [vmem:[#allocation4] sm:$0xff]
    %v4127 = vadd.f32 %v4125, %v4126
    %v4128 = vld [vmem:[#allocation5] sm:$0x1]
    %v4130 = vperm.slane %v4128, 0
    %4131 = vset.pattern.permute.xlu0 0
    %4132 = vperm.xlu0 %4131, %v4130
    %v4133 = vpop.permute.xlu0 %4132
    %v4135 = vadd.f32 %v4127, %v4133
    %vm4136 = vcmask 64512
    %4137 = vst.msk [vmem:[#allocation12] sm:$0xff] %vm4136, %v4135
    // Predicated region
    $region46: #{tpu_custom_call.1} parent=1 // pred_check
      _
    $region47: #{tpu_custom_call.1} parent=1 // pred_check_branch
      %4139 = sbr.rel (0) target = $region49
    $region48: #{tpu_custom_call.1} parent=1 // pred_region
      %4141 = vsyncadd [#allocation8], 0
      %s4143 = sshll.u32 [#allocation12], 4
      %s4144 = int_to_ptr.vmem [resolvable:$true] %s4143
      %s4145 = sshll.u32 %s8, 4
      %s4146 = int_to_ptr.hbm [resolvable:$true] %s4145
      %4148 = dma.vmem_to_hbm [thread:$0]  %s4144, 128, %s4146, [#allocation8]
    $region49: #{tpu_custom_call.1} parent=1 // pred_fallthru
      _
    // Predicated region
    $region50: #{tpu_custom_call.1} parent=1 // pred_check
      _
    $region51: #{tpu_custom_call.1} parent=1 // pred_check_branch
      %4150 = sbr.rel (0) target = $region53
    $region52: #{tpu_custom_call.1} parent=1 // pred_region
      %4152 = dma.done [#allocation8], 128
    $region53: #{tpu_custom_call.1} parent=1 // pred_fallthru
      _
    %4153 = vsyncpa [#allocation7], 1
    %4154 = vsyncpa [#allocation10], 1
    %4155 = vsyncpa [#allocation8], 1

</llo_original>
